<compile_context>
chip_gen: v7x
topology: tpu7x:2x2x1
jax: 0.10.0
libtpu: 0.0.40
codegen_flags: <defaults>
</compile_context>

<pallas_src>
import functools

import jax
import jax.numpy as jnp
from jax.experimental import pallas as pl
from jax.experimental.pallas import tpu as pltpu

HIDDEN = 32        # config.model.hidden_dim
N_NODE = 8         # config.dataset.num_node (batch of 1 graph)
N_EDGE = 16        # |E|
NUM_PROP = 3       # config.model.num_prop


# ----------------------------------------------------------------------------
# Fused Pallas kernel: NUM_PROP x (msg MLP + aggregate + GRU pair) + output MLP
# ----------------------------------------------------------------------------
def _fused_gnn_kernel(
        g_in_ref, g_out_ref, s_agg_ref, mask_ref, ff1_ref,
        w1s_ref, w2m_ref, b2m_ref, w3m_ref, b3m_ref,
        wi_ref, wh_ref, bi_ref, bh_ref,
        w1o_ref, bo1_ref, w2o_ref, b2o_ref, w3o_ref, b3o_ref,
        y_ref):
    dot = lambda a, b: jnp.dot(a, b, preferred_element_type=jnp.float32)

    g_in = g_in_ref[...]        # (E, N) one-hot gather for edge_in
    g_out = g_out_ref[...]      # (E, N) one-hot gather for edge_out
    s_agg = s_agg_ref[...]      # (N, E) scatter-add matrix (segment_sum)
    mask = mask_ref[...]        # (N, H) 1.0 -> update_func1, 0.0 -> update_func2
    ff1 = ff1_ref[...]          # (E, 64) loop-invariant layer-1 part (incl. bias)
    w1_si = w1s_ref[0]          # (H, 64) layer-1 rows for state_in
    w1_so = w1s_ref[1]          # (H, 64) layer-1 rows for state_out
    w2m = w2m_ref[...]
    b2m = b2m_ref[...]
    w3m = w3m_ref[...]
    b3m = b3m_ref[...]

    n_node = g_in.shape[1]
    hidden = w3m.shape[1]

    def gru_pair(x, h):
        outs = []
        for base in (0, 3):                      # 0..2: GRU1 gates, 3..5: GRU2 gates
            gi_r = dot(x, wi_ref[base + 0]) + bi_ref[base + 0]
            gi_z = dot(x, wi_ref[base + 1]) + bi_ref[base + 1]
            gi_n = dot(x, wi_ref[base + 2]) + bi_ref[base + 2]
            gh_r = dot(h, wh_ref[base + 0]) + bh_ref[base + 0]
            gh_z = dot(h, wh_ref[base + 1]) + bh_ref[base + 1]
            gh_n = dot(h, wh_ref[base + 2]) + bh_ref[base + 2]
            r = jax.nn.sigmoid(gi_r + gh_r)
            z = jax.nn.sigmoid(gi_z + gh_z)
            n = jnp.tanh(gi_n + r * gh_n)
            outs.append((1.0 - z) * n + z * h)
        return mask * outs[0] + (1.0 - mask) * outs[1]

    # ---- propagation loop: everything stays resident on-chip -------------
    state = jnp.zeros((n_node, hidden), jnp.float32)
    for _ in range(NUM_PROP):                    # small, unrolled at trace time
        state_in = dot(g_in, state)              # gather state[edge_in]
        state_out = dot(g_out, state)            # gather state[edge_out]
        h1 = jnp.maximum(dot(state_in, w1_si) + dot(state_out, w1_so) + ff1, 0.0)
        h2 = jnp.maximum(dot(h1, w2m) + b2m, 0.0)
        msg = dot(h2, w3m) + b3m                 # (E, H)
        msg_agg = dot(s_agg, msg)                # segment_sum over edge_out
        state = gru_pair(msg_agg, state)         # (N, H)

    # ---- output MLP + log_softmax (2-wide, column arithmetic) -------------
    ho1 = jnp.maximum(dot(state, w1o_ref[...]) + bo1_ref[...], 0.0)
    ho2 = jnp.maximum(dot(ho1, w2o_ref[...]) + b2o_ref[...], 0.0)
    y = dot(ho2, w3o_ref[...]) + b3o_ref[...]    # (N, 2)
    y0 = y[:, 0:1]
    y1 = y[:, 1:2]
    m = jnp.maximum(y0, y1)
    lse = m + jnp.log(jnp.exp(y0 - m) + jnp.exp(y1 - m))
    y_ref[...] = y - lse


def _full_spec(a):
    ndim = a.ndim
    def idx(i):
        return (0,) * ndim
    return pl.BlockSpec(a.shape, idx)


# ----------------------------------------------------------------------------
# Model forward (mirrors TorchGNN_meta_edge.forward, aggregate_type='add')
# ----------------------------------------------------------------------------
def gnn_forward(J_msg, b, msg_node, node_mask, target, params):
    N = b.shape[0]
    H = HIDDEN
    edge_in = msg_node[:, 0]
    edge_out = msg_node[:, 1]

    b_in = b[edge_in]
    b_out = b[edge_out]
    ff_in = jnp.concatenate([b_in, -b_in, J_msg, -J_msg], axis=1).astype(jnp.float32)
    ff_out = jnp.concatenate([-b_out, b_out, -J_msg, J_msg], axis=1).astype(jnp.float32)

    # ---- hoist loop-invariant layer-1 contributions (done once) ----------
    (w1, b1), (w2m, b2m), (w3m, b3m) = params["msg_func"]
    # msg layer-1 input order: [state_in (H), ff_in (4), state_out (H), ff_out (4)]
    w1_si = w1[0:H]
    w1_fi = w1[H:H + 4]
    w1_so = w1[H + 4:2 * H + 4]
    w1_fo = w1[2 * H + 4:2 * H + 8]
    ff_contrib = ff_in @ w1_fi + ff_out @ w1_fo + b1          # (E, 64)
    w1_state = jnp.stack([w1_si, w1_so], axis=0)              # (2, H, 64)

    # ---- GRU weights split into lane-aligned per-gate (H, H) blocks ------
    def _split_gru(wi, wh, bi, bh):
        return ([wi[:, g * H:(g + 1) * H] for g in range(3)],
                [wh[:, g * H:(g + 1) * H] for g in range(3)],
                [bi[:, g * H:(g + 1) * H] for g in range(3)],
                [bh[:, g * H:(g + 1) * H] for g in range(3)])

    wi1, wh1, bi1, bh1 = _split_gru(*params["gru1"])
    wi2, wh2, bi2, bh2 = _split_gru(*params["gru2"])
    wi_all = jnp.stack(wi1 + wi2, axis=0)    # (6, H, H)
    wh_all = jnp.stack(wh1 + wh2, axis=0)    # (6, H, H)
    bi_all = jnp.stack(bi1 + bi2, axis=0)    # (6, 1, H)
    bh_all = jnp.stack(bh1 + bh2, axis=0)    # (6, 1, H)

    # ---- output MLP: fold the [b, -b] part of layer 1 ---------------------
    (o1w, o1b), (o2w, o2b), (o3w, o3b) = params["output_func"]
    w1o_state = o1w[0:H]                                      # (H, 64)
    bcat = jnp.concatenate([b, -b], axis=1).astype(jnp.float32)
    bo_contrib = bcat @ o1w[H:H + 2] + o1b                    # (N, 64)

    # ---- dense gather / scatter operators so the loop stays in VMEM ------
    g_in = jax.nn.one_hot(edge_in, N, dtype=jnp.float32)      # (E, N)
    g_out = jax.nn.one_hot(edge_out, N, dtype=jnp.float32)    # (E, N)
    s_agg = g_out.T                                           # (N, E): segment_sum
    mask_b = jnp.broadcast_to(node_mask.astype(jnp.float32), (N, H))

    args = (g_in, g_out, s_agg, mask_b, ff_contrib,
            w1_state, w2m, b2m, w3m, b3m,
            wi_all, wh_all, bi_all, bh_all,
            w1o_state, bo_contrib, o2w, o2b, o3w, o3b)

    y = pl.pallas_call(
        _fused_gnn_kernel,
        out_shape=jax.ShapeDtypeStruct((N, 2), jnp.float32),
        grid=(1,),
        in_specs=[_full_spec(a) for a in args],
        out_specs=pl.BlockSpec((N, 2), lambda i: (0, 0)),
        compiler_params=pltpu.CompilerParams(dimension_semantics=("arbitrary",)),
    )(*args)

    # config.model.loss == 'MSE', SSL=False  ->  MSE(y, log(target))
    log_t = jnp.log(target)
    loss = jnp.mean((y - log_t) ** 2)
    y_ = y.reshape(-1, N_NODE, 2)
    t_ = log_t.reshape(-1, N_NODE, 2)
    loss_per_batch = jnp.mean((y_ - t_) ** 2, axis=(1, 2))
    return y, loss, loss_per_batch


# ----------------------------------------------------------------------------
# Pure-JAX reference (for correctness check)
# ----------------------------------------------------------------------------
def _ref_mlp3(x, params):
    (w1, b1), (w2, b2), (w3, b3) = params
    hp = jax.lax.Precision.HIGHEST
    h = jnp.maximum(jnp.dot(x, w1, precision=hp) + b1, 0.0)
    h = jnp.maximum(jnp.dot(h, w2, precision=hp) + b2, 0.0)
    return jnp.dot(h, w3, precision=hp) + b3


def _ref_gru(x, h, p):
    wi, wh, bi, bh = p
    H = h.shape[1]
    hp = jax.lax.Precision.HIGHEST
    gi = jnp.dot(x, wi, precision=hp) + bi
    gh = jnp.dot(h, wh, precision=hp) + bh
    r = jax.nn.sigmoid(gi[:, :H] + gh[:, :H])
    z = jax.nn.sigmoid(gi[:, H:2 * H] + gh[:, H:2 * H])
    n = jnp.tanh(gi[:, 2 * H:] + r * gh[:, 2 * H:])
    return (1.0 - z) * n + z * h


def gnn_forward_ref(J_msg, b, msg_node, node_mask, target, params):
    N = b.shape[0]
    edge_in = msg_node[:, 0]
    edge_out = msg_node[:, 1]
    b_in, b_out = b[edge_in], b[edge_out]
    ff_in = jnp.concatenate([b_in, -b_in, J_msg, -J_msg], axis=1)
    ff_out = jnp.concatenate([-b_out, b_out, -J_msg, J_msg], axis=1)
    state = jnp.zeros((N, HIDDEN), jnp.float32)
    for _ in range(NUM_PROP):
        msg_input = jnp.concatenate(
            [state[edge_in], ff_in, state[edge_out], ff_out], axis=1)
        msg = _ref_mlp3(msg_input, params["msg_func"])
        msg_agg = jax.ops.segment_sum(msg, edge_out, num_segments=N)
        o1 = _ref_gru(msg_agg, state, params["gru1"])
        o2 = _ref_gru(msg_agg, state, params["gru2"])
        state = node_mask * o1 + (1.0 - node_mask) * o2
    y = _ref_mlp3(jnp.concatenate([state, b, -b], axis=1), params["output_func"])
    return jax.nn.log_softmax(y, axis=1)


# ----------------------------------------------------------------------------
# Deterministic parameter init
# ----------------------------------------------------------------------------
def _xavier(key, fan_in, fan_out):
    bound = (6.0 / (fan_in + fan_out)) ** 0.5
    return jax.random.uniform(key, (fan_in, fan_out), jnp.float32, -bound, bound)


def _linear(key, fan_in, fan_out):
    return _xavier(key, fan_in, fan_out), jnp.zeros((1, fan_out), jnp.float32)


def _mlp3_params(key, din, dout):
    k1, k2, k3 = jax.random.split(key, 3)
    return (_linear(k1, din, 64), _linear(k2, 64, 64), _linear(k3, 64, dout))


def _gru_params(key, H):
    k1, k2, k3, k4 = jax.random.split(key, 4)
    s = 1.0 / (H ** 0.5)
    wi = jax.random.uniform(k1, (H, 3 * H), jnp.float32, -s, s)
    wh = jax.random.uniform(k2, (H, 3 * H), jnp.float32, -s, s)
    bi = jax.random.uniform(k3, (1, 3 * H), jnp.float32, -s, s)
    bh = jax.random.uniform(k4, (1, 3 * H), jnp.float32, -s, s)
    return (wi, wh, bi, bh)


if __name__ == "__main__":
    key = jax.random.PRNGKey(0)
    k_msg, k_g1, k_g2, k_out, k_J, k_b, k_t = jax.random.split(key, 7)

    params = {
        "msg_func": _mlp3_params(k_msg, 2 * HIDDEN + 8, HIDDEN),
        "gru1": _gru_params(k_g1, HIDDEN),
        "gru2": _gru_params(k_g2, HIDDEN),
        "output_func": _mlp3_params(k_out, HIDDEN + 2, 2),
    }

    # Graph: bidirectional ring over N_NODE nodes -> N_EDGE directed edges.
    src = jnp.arange(N_NODE, dtype=jnp.int32)
    dst = (src + 1) % N_NODE
    msg_node = jnp.concatenate(
        [jnp.stack([src, dst], axis=1), jnp.stack([dst, src], axis=1)], axis=0)  # (E, 2)

    J_msg = jax.random.normal(k_J, (N_EDGE, 1), jnp.float32)
    b = jax.random.normal(k_b, (N_NODE, 1), jnp.float32)
    target = jax.nn.softmax(jax.random.normal(k_t, (N_NODE, 2), jnp.float32), axis=1)

    # node_idx partition: even node ids -> update_func1, odd -> update_func2.
    node_mask = ((jnp.arange(N_NODE) % 2) == 0).astype(jnp.float32)[:, None]  # (N, 1)

    fwd = jax.jit(functools.partial(gnn_forward, params=params))
    y, loss, loss_per_batch = fwd(J_msg, b, msg_node, node_mask, target)
    jax.block_until_ready((y, loss, loss_per_batch))

    # Correctness check against pure-JAX (HIGHEST precision) reference.
    # Tolerance covers default MXU precision and the changed (one-hot matmul)
    # summation order of the in-kernel aggregation.
    y_ref = gnn_forward_ref(J_msg, b, msg_node, node_mask, target, params)
    assert jnp.allclose(y, y_ref, atol=2e-3, rtol=2e-2), (y, y_ref)

    print("KERNEL_OK")
</pallas_src>

<mosaic_0001>
module attributes {stable_mosaic.version = 11 : i64} {
  func.func @_fused_gnn_kernel(%arg0: i32, %arg1: memref<16x8xf32, #tpu.memory_space<vmem>>, %arg2: memref<16x8xf32, #tpu.memory_space<vmem>>, %arg3: memref<8x16xf32, #tpu.memory_space<vmem>>, %arg4: memref<8x32xf32, #tpu.memory_space<vmem>>, %arg5: memref<16x64xf32, #tpu.memory_space<vmem>>, %arg6: memref<2x32x64xf32, #tpu.memory_space<vmem>>, %arg7: memref<64x64xf32, #tpu.memory_space<vmem>>, %arg8: memref<1x64xf32, #tpu.memory_space<vmem>>, %arg9: memref<64x32xf32, #tpu.memory_space<vmem>>, %arg10: memref<1x32xf32, #tpu.memory_space<vmem>>, %arg11: memref<6x32x32xf32, #tpu.memory_space<vmem>>, %arg12: memref<6x32x32xf32, #tpu.memory_space<vmem>>, %arg13: memref<6x1x32xf32, #tpu.memory_space<vmem>>, %arg14: memref<6x1x32xf32, #tpu.memory_space<vmem>>, %arg15: memref<32x64xf32, #tpu.memory_space<vmem>>, %arg16: memref<8x64xf32, #tpu.memory_space<vmem>>, %arg17: memref<64x64xf32, #tpu.memory_space<vmem>>, %arg18: memref<1x64xf32, #tpu.memory_space<vmem>>, %arg19: memref<64x2xf32, #tpu.memory_space<vmem>>, %arg20: memref<1x2xf32, #tpu.memory_space<vmem>>, %arg21: memref<8x2xf32, #tpu.memory_space<vmem>>) attributes {dimension_semantics = [#tpu.dimension_semantics<arbitrary>], iteration_bounds = array<i64: 1>, scalar_prefetch = 0 : i64, scratch_operands = 0 : i64, tpu.core_type = #tpu.core_type<tc>, window_params = [{pipeline_mode = #tpu.pipeline_mode<synchronous>, transform_indices = @transform_0, window_bounds = array<i64: 16, 8>}, {pipeline_mode = #tpu.pipeline_mode<synchronous>, transform_indices = @transform_1, window_bounds = array<i64: 16, 8>}, {pipeline_mode = #tpu.pipeline_mode<synchronous>, transform_indices = @transform_2, window_bounds = array<i64: 8, 16>}, {pipeline_mode = #tpu.pipeline_mode<synchronous>, transform_indices = @transform_3, window_bounds = array<i64: 8, 32>}, {pipeline_mode = #tpu.pipeline_mode<synchronous>, transform_indices = @transform_4, window_bounds = array<i64: 16, 64>}, {pipeline_mode = #tpu.pipeline_mode<synchronous>, transform_indices = @transform_5, window_bounds = array<i64: 2, 32, 64>}, {pipeline_mode = #tpu.pipeline_mode<synchronous>, transform_indices = @transform_6, window_bounds = array<i64: 64, 64>}, {pipeline_mode = #tpu.pipeline_mode<synchronous>, transform_indices = @transform_7, window_bounds = array<i64: 1, 64>}, {pipeline_mode = #tpu.pipeline_mode<synchronous>, transform_indices = @transform_8, window_bounds = array<i64: 64, 32>}, {pipeline_mode = #tpu.pipeline_mode<synchronous>, transform_indices = @transform_9, window_bounds = array<i64: 1, 32>}, {pipeline_mode = #tpu.pipeline_mode<synchronous>, transform_indices = @transform_10, window_bounds = array<i64: 6, 32, 32>}, {pipeline_mode = #tpu.pipeline_mode<synchronous>, transform_indices = @transform_11, window_bounds = array<i64: 6, 32, 32>}, {pipeline_mode = #tpu.pipeline_mode<synchronous>, transform_indices = @transform_12, window_bounds = array<i64: 6, 1, 32>}, {pipeline_mode = #tpu.pipeline_mode<synchronous>, transform_indices = @transform_13, window_bounds = array<i64: 6, 1, 32>}, {pipeline_mode = #tpu.pipeline_mode<synchronous>, transform_indices = @transform_14, window_bounds = array<i64: 32, 64>}, {pipeline_mode = #tpu.pipeline_mode<synchronous>, transform_indices = @transform_15, window_bounds = array<i64: 8, 64>}, {pipeline_mode = #tpu.pipeline_mode<synchronous>, transform_indices = @transform_16, window_bounds = array<i64: 64, 64>}, {pipeline_mode = #tpu.pipeline_mode<synchronous>, transform_indices = @transform_17, window_bounds = array<i64: 1, 64>}, {pipeline_mode = #tpu.pipeline_mode<synchronous>, transform_indices = @transform_18, window_bounds = array<i64: 64, 2>}, {pipeline_mode = #tpu.pipeline_mode<synchronous>, transform_indices = @transform_19, window_bounds = array<i64: 1, 2>}, {pipeline_mode = #tpu.pipeline_mode<synchronous>, transform_indices = @transform_20, window_bounds = array<i64: 8, 2>}]} {
    %c0 = arith.constant 0 : index
    %c0_0 = arith.constant 0 : index
    %0 = vector.load %arg1[%c0, %c0_0] : memref<16x8xf32, #tpu.memory_space<vmem>>, vector<16x8xf32>
    %c0_1 = arith.constant 0 : index
    %c0_2 = arith.constant 0 : index
    %1 = vector.load %arg2[%c0_1, %c0_2] : memref<16x8xf32, #tpu.memory_space<vmem>>, vector<16x8xf32>
    %c0_3 = arith.constant 0 : index
    %c0_4 = arith.constant 0 : index
    %2 = vector.load %arg3[%c0_3, %c0_4] : memref<8x16xf32, #tpu.memory_space<vmem>>, vector<8x16xf32>
    %c0_5 = arith.constant 0 : index
    %c0_6 = arith.constant 0 : index
    %3 = vector.load %arg4[%c0_5, %c0_6] : memref<8x32xf32, #tpu.memory_space<vmem>>, vector<8x32xf32>
    %c0_7 = arith.constant 0 : index
    %c0_8 = arith.constant 0 : index
    %4 = vector.load %arg5[%c0_7, %c0_8] : memref<16x64xf32, #tpu.memory_space<vmem>>, vector<16x64xf32>
    %c0_9 = arith.constant 0 : index
    %c0_10 = arith.constant 0 : index
    %c0_11 = arith.constant 0 : index
    %5 = vector.load %arg6[%c0_9, %c0_10, %c0_11] : memref<2x32x64xf32, #tpu.memory_space<vmem>>, vector<1x32x64xf32>
    %6 = vector.shape_cast %5 : vector<1x32x64xf32> to vector<32x64xf32>
    %c1 = arith.constant 1 : index
    %c0_12 = arith.constant 0 : index
    %c0_13 = arith.constant 0 : index
    %7 = vector.load %arg6[%c1, %c0_12, %c0_13] : memref<2x32x64xf32, #tpu.memory_space<vmem>>, vector<1x32x64xf32>
    %8 = vector.shape_cast %7 : vector<1x32x64xf32> to vector<32x64xf32>
    %c0_14 = arith.constant 0 : index
    %c0_15 = arith.constant 0 : index
    %9 = vector.load %arg7[%c0_14, %c0_15] : memref<64x64xf32, #tpu.memory_space<vmem>>, vector<64x64xf32>
    %c0_16 = arith.constant 0 : index
    %c0_17 = arith.constant 0 : index
    %10 = vector.load %arg8[%c0_16, %c0_17] : memref<1x64xf32, #tpu.memory_space<vmem>>, vector<1x64xf32>
    %c0_18 = arith.constant 0 : index
    %c0_19 = arith.constant 0 : index
    %11 = vector.load %arg9[%c0_18, %c0_19] : memref<64x32xf32, #tpu.memory_space<vmem>>, vector<64x32xf32>
    %c0_20 = arith.constant 0 : index
    %c0_21 = arith.constant 0 : index
    %12 = vector.load %arg10[%c0_20, %c0_21] : memref<1x32xf32, #tpu.memory_space<vmem>>, vector<1x32xf32>
    %cst = arith.constant 0.000000e+00 : f32
    %13 = vector.broadcast %cst : f32 to vector<8x32xf32>
    %cst_22 = arith.constant dense<0.000000e+00> : vector<16x32xf32>
    %14 = tpu.matmul %0, %13, %cst_22 {dimension_numbers = #tpu.dot_dimension_numbers<[1], [0], [0], [1], [0, 0, 1, 1], [], []>} : vector<16x8xf32>, vector<8x32xf32>, vector<16x32xf32> -> vector<16x32xf32>
    %cst_23 = arith.constant dense<0.000000e+00> : vector<16x32xf32>
    %15 = tpu.matmul %1, %13, %cst_23 {dimension_numbers = #tpu.dot_dimension_numbers<[1], [0], [0], [1], [0, 0, 1, 1], [], []>} : vector<16x8xf32>, vector<8x32xf32>, vector<16x32xf32> -> vector<16x32xf32>
    %cst_24 = arith.constant dense<0.000000e+00> : vector<16x64xf32>
    %16 = tpu.matmul %14, %6, %cst_24 {dimension_numbers = #tpu.dot_dimension_numbers<[1], [0], [0], [1], [0, 0, 1, 1], [], []>} : vector<16x32xf32>, vector<32x64xf32>, vector<16x64xf32> -> vector<16x64xf32>
    %cst_25 = arith.constant dense<0.000000e+00> : vector<16x64xf32>
    %17 = tpu.matmul %15, %8, %cst_25 {dimension_numbers = #tpu.dot_dimension_numbers<[1], [0], [0], [1], [0, 0, 1, 1], [], []>} : vector<16x32xf32>, vector<32x64xf32>, vector<16x64xf32> -> vector<16x64xf32>
    %18 = arith.addf %16, %17 : vector<16x64xf32>
    %19 = arith.addf %18, %4 : vector<16x64xf32>
    %cst_26 = arith.constant 0.000000e+00 : f32
    %20 = vector.broadcast %cst_26 : f32 to vector<16x64xf32>
    %21 = arith.maximumf %19, %20 : vector<16x64xf32>
    %cst_27 = arith.constant dense<0.000000e+00> : vector<16x64xf32>
    %22 = tpu.matmul %21, %9, %cst_27 {dimension_numbers = #tpu.dot_dimension_numbers<[1], [0], [0], [1], [0, 0, 1, 1], [], []>} : vector<16x64xf32>, vector<64x64xf32>, vector<16x64xf32> -> vector<16x64xf32>
    %23 = vector.broadcast %10 : vector<1x64xf32> to vector<16x64xf32>
    %24 = arith.addf %22, %23 : vector<16x64xf32>
    %cst_28 = arith.constant 0.000000e+00 : f32
    %25 = vector.broadcast %cst_28 : f32 to vector<16x64xf32>
    %26 = arith.maximumf %24, %25 : vector<16x64xf32>
    %cst_29 = arith.constant dense<0.000000e+00> : vector<16x32xf32>
    %27 = tpu.matmul %26, %11, %cst_29 {dimension_numbers = #tpu.dot_dimension_numbers<[1], [0], [0], [1], [0, 0, 1, 1], [], []>} : vector<16x64xf32>, vector<64x32xf32>, vector<16x32xf32> -> vector<16x32xf32>
    %28 = vector.broadcast %12 : vector<1x32xf32> to vector<16x32xf32>
    %29 = arith.addf %27, %28 : vector<16x32xf32>
    %cst_30 = arith.constant dense<0.000000e+00> : vector<8x32xf32>
    %30 = tpu.matmul %2, %29, %cst_30 {dimension_numbers = #tpu.dot_dimension_numbers<[1], [0], [0], [1], [0, 0, 1, 1], [], []>} : vector<8x16xf32>, vector<16x32xf32>, vector<8x32xf32> -> vector<8x32xf32>
    %c0_31 = arith.constant 0 : index
    %c0_32 = arith.constant 0 : index
    %c0_33 = arith.constant 0 : index
    %31 = vector.load %arg11[%c0_31, %c0_32, %c0_33] : memref<6x32x32xf32, #tpu.memory_space<vmem>>, vector<1x32x32xf32>
    %32 = vector.shape_cast %31 : vector<1x32x32xf32> to vector<32x32xf32>
    %cst_34 = arith.constant dense<0.000000e+00> : vector<8x32xf32>
    %33 = tpu.matmul %30, %32, %cst_34 {dimension_numbers = #tpu.dot_dimension_numbers<[1], [0], [0], [1], [0, 0, 1, 1], [], []>} : vector<8x32xf32>, vector<32x32xf32>, vector<8x32xf32> -> vector<8x32xf32>
    %c0_35 = arith.constant 0 : index
    %c0_36 = arith.constant 0 : index
    %c0_37 = arith.constant 0 : index
    %34 = vector.load %arg13[%c0_35, %c0_36, %c0_37] : memref<6x1x32xf32, #tpu.memory_space<vmem>>, vector<1x1x32xf32>
    %35 = vector.shape_cast %34 : vector<1x1x32xf32> to vector<1x32xf32>
    %36 = vector.broadcast %35 : vector<1x32xf32> to vector<8x32xf32>
    %37 = arith.addf %33, %36 : vector<8x32xf32>
    %c1_38 = arith.constant 1 : index
    %c0_39 = arith.constant 0 : index
    %c0_40 = arith.constant 0 : index
    %38 = vector.load %arg11[%c1_38, %c0_39, %c0_40] : memref<6x32x32xf32, #tpu.memory_space<vmem>>, vector<1x32x32xf32>
    %39 = vector.shape_cast %38 : vector<1x32x32xf32> to vector<32x32xf32>
    %cst_41 = arith.constant dense<0.000000e+00> : vector<8x32xf32>
    %40 = tpu.matmul %30, %39, %cst_41 {dimension_numbers = #tpu.dot_dimension_numbers<[1], [0], [0], [1], [0, 0, 1, 1], [], []>} : vector<8x32xf32>, vector<32x32xf32>, vector<8x32xf32> -> vector<8x32xf32>
    %c1_42 = arith.constant 1 : index
    %c0_43 = arith.constant 0 : index
    %c0_44 = arith.constant 0 : index
    %41 = vector.load %arg13[%c1_42, %c0_43, %c0_44] : memref<6x1x32xf32, #tpu.memory_space<vmem>>, vector<1x1x32xf32>
    %42 = vector.shape_cast %41 : vector<1x1x32xf32> to vector<1x32xf32>
    %43 = vector.broadcast %42 : vector<1x32xf32> to vector<8x32xf32>
    %44 = arith.addf %40, %43 : vector<8x32xf32>
    %c2 = arith.constant 2 : index
    %c0_45 = arith.constant 0 : index
    %c0_46 = arith.constant 0 : index
    %45 = vector.load %arg11[%c2, %c0_45, %c0_46] : memref<6x32x32xf32, #tpu.memory_space<vmem>>, vector<1x32x32xf32>
    %46 = vector.shape_cast %45 : vector<1x32x32xf32> to vector<32x32xf32>
    %cst_47 = arith.constant dense<0.000000e+00> : vector<8x32xf32>
    %47 = tpu.matmul %30, %46, %cst_47 {dimension_numbers = #tpu.dot_dimension_numbers<[1], [0], [0], [1], [0, 0, 1, 1], [], []>} : vector<8x32xf32>, vector<32x32xf32>, vector<8x32xf32> -> vector<8x32xf32>
    %c2_48 = arith.constant 2 : index
    %c0_49 = arith.constant 0 : index
    %c0_50 = arith.constant 0 : index
    %48 = vector.load %arg13[%c2_48, %c0_49, %c0_50] : memref<6x1x32xf32, #tpu.memory_space<vmem>>, vector<1x1x32xf32>
    %49 = vector.shape_cast %48 : vector<1x1x32xf32> to vector<1x32xf32>
    %50 = vector.broadcast %49 : vector<1x32xf32> to vector<8x32xf32>
    %51 = arith.addf %47, %50 : vector<8x32xf32>
    %c0_51 = arith.constant 0 : index
    %c0_52 = arith.constant 0 : index
    %c0_53 = arith.constant 0 : index
    %52 = vector.load %arg12[%c0_51, %c0_52, %c0_53] : memref<6x32x32xf32, #tpu.memory_space<vmem>>, vector<1x32x32xf32>
    %53 = vector.shape_cast %52 : vector<1x32x32xf32> to vector<32x32xf32>
    %cst_54 = arith.constant dense<0.000000e+00> : vector<8x32xf32>
    %54 = tpu.matmul %13, %53, %cst_54 {dimension_numbers = #tpu.dot_dimension_numbers<[1], [0], [0], [1], [0, 0, 1, 1], [], []>} : vector<8x32xf32>, vector<32x32xf32>, vector<8x32xf32> -> vector<8x32xf32>
    %c0_55 = arith.constant 0 : index
    %c0_56 = arith.constant 0 : index
    %c0_57 = arith.constant 0 : index
    %55 = vector.load %arg14[%c0_55, %c0_56, %c0_57] : memref<6x1x32xf32, #tpu.memory_space<vmem>>, vector<1x1x32xf32>
    %56 = vector.shape_cast %55 : vector<1x1x32xf32> to vector<1x32xf32>
    %57 = vector.broadcast %56 : vector<1x32xf32> to vector<8x32xf32>
    %58 = arith.addf %54, %57 : vector<8x32xf32>
    %c1_58 = arith.constant 1 : index
    %c0_59 = arith.constant 0 : index
    %c0_60 = arith.constant 0 : index
    %59 = vector.load %arg12[%c1_58, %c0_59, %c0_60] : memref<6x32x32xf32, #tpu.memory_space<vmem>>, vector<1x32x32xf32>
    %60 = vector.shape_cast %59 : vector<1x32x32xf32> to vector<32x32xf32>
    %cst_61 = arith.constant dense<0.000000e+00> : vector<8x32xf32>
    %61 = tpu.matmul %13, %60, %cst_61 {dimension_numbers = #tpu.dot_dimension_numbers<[1], [0], [0], [1], [0, 0, 1, 1], [], []>} : vector<8x32xf32>, vector<32x32xf32>, vector<8x32xf32> -> vector<8x32xf32>
    %c1_62 = arith.constant 1 : index
    %c0_63 = arith.constant 0 : index
    %c0_64 = arith.constant 0 : index
    %62 = vector.load %arg14[%c1_62, %c0_63, %c0_64] : memref<6x1x32xf32, #tpu.memory_space<vmem>>, vector<1x1x32xf32>
    %63 = vector.shape_cast %62 : vector<1x1x32xf32> to vector<1x32xf32>
    %64 = vector.broadcast %63 : vector<1x32xf32> to vector<8x32xf32>
    %65 = arith.addf %61, %64 : vector<8x32xf32>
    %c2_65 = arith.constant 2 : index
    %c0_66 = arith.constant 0 : index
    %c0_67 = arith.constant 0 : index
    %66 = vector.load %arg12[%c2_65, %c0_66, %c0_67] : memref<6x32x32xf32, #tpu.memory_space<vmem>>, vector<1x32x32xf32>
    %67 = vector.shape_cast %66 : vector<1x32x32xf32> to vector<32x32xf32>
    %cst_68 = arith.constant dense<0.000000e+00> : vector<8x32xf32>
    %68 = tpu.matmul %13, %67, %cst_68 {dimension_numbers = #tpu.dot_dimension_numbers<[1], [0], [0], [1], [0, 0, 1, 1], [], []>} : vector<8x32xf32>, vector<32x32xf32>, vector<8x32xf32> -> vector<8x32xf32>
    %c2_69 = arith.constant 2 : index
    %c0_70 = arith.constant 0 : index
    %c0_71 = arith.constant 0 : index
    %69 = vector.load %arg14[%c2_69, %c0_70, %c0_71] : memref<6x1x32xf32, #tpu.memory_space<vmem>>, vector<1x1x32xf32>
    %70 = vector.shape_cast %69 : vector<1x1x32xf32> to vector<1x32xf32>
    %71 = vector.broadcast %70 : vector<1x32xf32> to vector<8x32xf32>
    %72 = arith.addf %68, %71 : vector<8x32xf32>
    %73 = arith.addf %37, %58 : vector<8x32xf32>
    %74 = arith.negf %73 : vector<8x32xf32>
    %75 = math.exp %74 : vector<8x32xf32>
    %cst_72 = arith.constant 1.000000e+00 : f32
    %76 = vector.broadcast %cst_72 : f32 to vector<8x32xf32>
    %77 = arith.addf %76, %75 : vector<8x32xf32>
    %78 = arith.divf %76, %77 : vector<8x32xf32>
    %79 = arith.addf %44, %65 : vector<8x32xf32>
    %80 = arith.negf %79 : vector<8x32xf32>
    %81 = math.exp %80 : vector<8x32xf32>
    %cst_73 = arith.constant 1.000000e+00 : f32
    %82 = vector.broadcast %cst_73 : f32 to vector<8x32xf32>
    %83 = arith.addf %82, %81 : vector<8x32xf32>
    %84 = arith.divf %82, %83 : vector<8x32xf32>
    %85 = arith.mulf %78, %72 : vector<8x32xf32>
    %86 = arith.addf %51, %85 : vector<8x32xf32>
    %87 = math.tanh %86 : vector<8x32xf32>
    %cst_74 = arith.constant 1.000000e+00 : f32
    %88 = vector.broadcast %cst_74 : f32 to vector<8x32xf32>
    %89 = arith.subf %88, %84 : vector<8x32xf32>
    %90 = arith.mulf %89, %87 : vector<8x32xf32>
    %91 = arith.mulf %84, %13 : vector<8x32xf32>
    %92 = arith.addf %90, %91 : vector<8x32xf32>
    %c3 = arith.constant 3 : index
    %c0_75 = arith.constant 0 : index
    %c0_76 = arith.constant 0 : index
    %93 = vector.load %arg11[%c3, %c0_75, %c0_76] : memref<6x32x32xf32, #tpu.memory_space<vmem>>, vector<1x32x32xf32>
    %94 = vector.shape_cast %93 : vector<1x32x32xf32> to vector<32x32xf32>
    %cst_77 = arith.constant dense<0.000000e+00> : vector<8x32xf32>
    %95 = tpu.matmul %30, %94, %cst_77 {dimension_numbers = #tpu.dot_dimension_numbers<[1], [0], [0], [1], [0, 0, 1, 1], [], []>} : vector<8x32xf32>, vector<32x32xf32>, vector<8x32xf32> -> vector<8x32xf32>
    %c3_78 = arith.constant 3 : index
    %c0_79 = arith.constant 0 : index
    %c0_80 = arith.constant 0 : index
    %96 = vector.load %arg13[%c3_78, %c0_79, %c0_80] : memref<6x1x32xf32, #tpu.memory_space<vmem>>, vector<1x1x32xf32>
    %97 = vector.shape_cast %96 : vector<1x1x32xf32> to vector<1x32xf32>
    %98 = vector.broadcast %97 : vector<1x32xf32> to vector<8x32xf32>
    %99 = arith.addf %95, %98 : vector<8x32xf32>
    %c4 = arith.constant 4 : index
    %c0_81 = arith.constant 0 : index
    %c0_82 = arith.constant 0 : index
    %100 = vector.load %arg11[%c4, %c0_81, %c0_82] : memref<6x32x32xf32, #tpu.memory_space<vmem>>, vector<1x32x32xf32>
    %101 = vector.shape_cast %100 : vector<1x32x32xf32> to vector<32x32xf32>
    %cst_83 = arith.constant dense<0.000000e+00> : vector<8x32xf32>
    %102 = tpu.matmul %30, %101, %cst_83 {dimension_numbers = #tpu.dot_dimension_numbers<[1], [0], [0], [1], [0, 0, 1, 1], [], []>} : vector<8x32xf32>, vector<32x32xf32>, vector<8x32xf32> -> vector<8x32xf32>
    %c4_84 = arith.constant 4 : index
    %c0_85 = arith.constant 0 : index
    %c0_86 = arith.constant 0 : index
    %103 = vector.load %arg13[%c4_84, %c0_85, %c0_86] : memref<6x1x32xf32, #tpu.memory_space<vmem>>, vector<1x1x32xf32>
    %104 = vector.shape_cast %103 : vector<1x1x32xf32> to vector<1x32xf32>
    %105 = vector.broadcast %104 : vector<1x32xf32> to vector<8x32xf32>
    %106 = arith.addf %102, %105 : vector<8x32xf32>
    %c5 = arith.constant 5 : index
    %c0_87 = arith.constant 0 : index
    %c0_88 = arith.constant 0 : index
    %107 = vector.load %arg11[%c5, %c0_87, %c0_88] : memref<6x32x32xf32, #tpu.memory_space<vmem>>, vector<1x32x32xf32>
    %108 = vector.shape_cast %107 : vector<1x32x32xf32> to vector<32x32xf32>
    %cst_89 = arith.constant dense<0.000000e+00> : vector<8x32xf32>
    %109 = tpu.matmul %30, %108, %cst_89 {dimension_numbers = #tpu.dot_dimension_numbers<[1], [0], [0], [1], [0, 0, 1, 1], [], []>} : vector<8x32xf32>, vector<32x32xf32>, vector<8x32xf32> -> vector<8x32xf32>
    %c5_90 = arith.constant 5 : index
    %c0_91 = arith.constant 0 : index
    %c0_92 = arith.constant 0 : index
    %110 = vector.load %arg13[%c5_90, %c0_91, %c0_92] : memref<6x1x32xf32, #tpu.memory_space<vmem>>, vector<1x1x32xf32>
    %111 = vector.shape_cast %110 : vector<1x1x32xf32> to vector<1x32xf32>
    %112 = vector.broadcast %111 : vector<1x32xf32> to vector<8x32xf32>
    %113 = arith.addf %109, %112 : vector<8x32xf32>
    %c3_93 = arith.constant 3 : index
    %c0_94 = arith.constant 0 : index
    %c0_95 = arith.constant 0 : index
    %114 = vector.load %arg12[%c3_93, %c0_94, %c0_95] : memref<6x32x32xf32, #tpu.memory_space<vmem>>, vector<1x32x32xf32>
    %115 = vector.shape_cast %114 : vector<1x32x32xf32> to vector<32x32xf32>
    %cst_96 = arith.constant dense<0.000000e+00> : vector<8x32xf32>
    %116 = tpu.matmul %13, %115, %cst_96 {dimension_numbers = #tpu.dot_dimension_numbers<[1], [0], [0], [1], [0, 0, 1, 1], [], []>} : vector<8x32xf32>, vector<32x32xf32>, vector<8x32xf32> -> vector<8x32xf32>
    %c3_97 = arith.constant 3 : index
    %c0_98 = arith.constant 0 : index
    %c0_99 = arith.constant 0 : index
    %117 = vector.load %arg14[%c3_97, %c0_98, %c0_99] : memref<6x1x32xf32, #tpu.memory_space<vmem>>, vector<1x1x32xf32>
    %118 = vector.shape_cast %117 : vector<1x1x32xf32> to vector<1x32xf32>
    %119 = vector.broadcast %118 : vector<1x32xf32> to vector<8x32xf32>
    %120 = arith.addf %116, %119 : vector<8x32xf32>
    %c4_100 = arith.constant 4 : index
    %c0_101 = arith.constant 0 : index
    %c0_102 = arith.constant 0 : index
    %121 = vector.load %arg12[%c4_100, %c0_101, %c0_102] : memref<6x32x32xf32, #tpu.memory_space<vmem>>, vector<1x32x32xf32>
    %122 = vector.shape_cast %121 : vector<1x32x32xf32> to vector<32x32xf32>
    %cst_103 = arith.constant dense<0.000000e+00> : vector<8x32xf32>
    %123 = tpu.matmul %13, %122, %cst_103 {dimension_numbers = #tpu.dot_dimension_numbers<[1], [0], [0], [1], [0, 0, 1, 1], [], []>} : vector<8x32xf32>, vector<32x32xf32>, vector<8x32xf32> -> vector<8x32xf32>
    %c4_104 = arith.constant 4 : index
    %c0_105 = arith.constant 0 : index
    %c0_106 = arith.constant 0 : index
    %124 = vector.load %arg14[%c4_104, %c0_105, %c0_106] : memref<6x1x32xf32, #tpu.memory_space<vmem>>, vector<1x1x32xf32>
    %125 = vector.shape_cast %124 : vector<1x1x32xf32> to vector<1x32xf32>
    %126 = vector.broadcast %125 : vector<1x32xf32> to vector<8x32xf32>
    %127 = arith.addf %123, %126 : vector<8x32xf32>
    %c5_107 = arith.constant 5 : index
    %c0_108 = arith.constant 0 : index
    %c0_109 = arith.constant 0 : index
    %128 = vector.load %arg12[%c5_107, %c0_108, %c0_109] : memref<6x32x32xf32, #tpu.memory_space<vmem>>, vector<1x32x32xf32>
    %129 = vector.shape_cast %128 : vector<1x32x32xf32> to vector<32x32xf32>
    %cst_110 = arith.constant dense<0.000000e+00> : vector<8x32xf32>
    %130 = tpu.matmul %13, %129, %cst_110 {dimension_numbers = #tpu.dot_dimension_numbers<[1], [0], [0], [1], [0, 0, 1, 1], [], []>} : vector<8x32xf32>, vector<32x32xf32>, vector<8x32xf32> -> vector<8x32xf32>
    %c5_111 = arith.constant 5 : index
    %c0_112 = arith.constant 0 : index
    %c0_113 = arith.constant 0 : index
    %131 = vector.load %arg14[%c5_111, %c0_112, %c0_113] : memref<6x1x32xf32, #tpu.memory_space<vmem>>, vector<1x1x32xf32>
    %132 = vector.shape_cast %131 : vector<1x1x32xf32> to vector<1x32xf32>
    %133 = vector.broadcast %132 : vector<1x32xf32> to vector<8x32xf32>
    %134 = arith.addf %130, %133 : vector<8x32xf32>
    %135 = arith.addf %99, %120 : vector<8x32xf32>
    %136 = arith.negf %135 : vector<8x32xf32>
    %137 = math.exp %136 : vector<8x32xf32>
    %cst_114 = arith.constant 1.000000e+00 : f32
    %138 = vector.broadcast %cst_114 : f32 to vector<8x32xf32>
    %139 = arith.addf %138, %137 : vector<8x32xf32>
    %140 = arith.divf %138, %139 : vector<8x32xf32>
    %141 = arith.addf %106, %127 : vector<8x32xf32>
    %142 = arith.negf %141 : vector<8x32xf32>
    %143 = math.exp %142 : vector<8x32xf32>
    %cst_115 = arith.constant 1.000000e+00 : f32
    %144 = vector.broadcast %cst_115 : f32 to vector<8x32xf32>
    %145 = arith.addf %144, %143 : vector<8x32xf32>
    %146 = arith.divf %144, %145 : vector<8x32xf32>
    %147 = arith.mulf %140, %134 : vector<8x32xf32>
    %148 = arith.addf %113, %147 : vector<8x32xf32>
    %149 = math.tanh %148 : vector<8x32xf32>
    %cst_116 = arith.constant 1.000000e+00 : f32
    %150 = vector.broadcast %cst_116 : f32 to vector<8x32xf32>
    %151 = arith.subf %150, %146 : vector<8x32xf32>
    %152 = arith.mulf %151, %149 : vector<8x32xf32>
    %153 = arith.mulf %146, %13 : vector<8x32xf32>
    %154 = arith.addf %152, %153 : vector<8x32xf32>
    %155 = arith.mulf %3, %92 : vector<8x32xf32>
    %cst_117 = arith.constant 1.000000e+00 : f32
    %156 = vector.broadcast %cst_117 : f32 to vector<8x32xf32>
    %157 = arith.subf %156, %3 : vector<8x32xf32>
    %158 = arith.mulf %157, %154 : vector<8x32xf32>
    %159 = arith.addf %155, %158 : vector<8x32xf32>
    %cst_118 = arith.constant dense<0.000000e+00> : vector<16x32xf32>
    %160 = tpu.matmul %0, %159, %cst_118 {dimension_numbers = #tpu.dot_dimension_numbers<[1], [0], [0], [1], [0, 0, 1, 1], [], []>} : vector<16x8xf32>, vector<8x32xf32>, vector<16x32xf32> -> vector<16x32xf32>
    %cst_119 = arith.constant dense<0.000000e+00> : vector<16x32xf32>
    %161 = tpu.matmul %1, %159, %cst_119 {dimension_numbers = #tpu.dot_dimension_numbers<[1], [0], [0], [1], [0, 0, 1, 1], [], []>} : vector<16x8xf32>, vector<8x32xf32>, vector<16x32xf32> -> vector<16x32xf32>
    %cst_120 = arith.constant dense<0.000000e+00> : vector<16x64xf32>
    %162 = tpu.matmul %160, %6, %cst_120 {dimension_numbers = #tpu.dot_dimension_numbers<[1], [0], [0], [1], [0, 0, 1, 1], [], []>} : vector<16x32xf32>, vector<32x64xf32>, vector<16x64xf32> -> vector<16x64xf32>
    %cst_121 = arith.constant dense<0.000000e+00> : vector<16x64xf32>
    %163 = tpu.matmul %161, %8, %cst_121 {dimension_numbers = #tpu.dot_dimension_numbers<[1], [0], [0], [1], [0, 0, 1, 1], [], []>} : vector<16x32xf32>, vector<32x64xf32>, vector<16x64xf32> -> vector<16x64xf32>
    %164 = arith.addf %162, %163 : vector<16x64xf32>
    %165 = arith.addf %164, %4 : vector<16x64xf32>
    %cst_122 = arith.constant 0.000000e+00 : f32
    %166 = vector.broadcast %cst_122 : f32 to vector<16x64xf32>
    %167 = arith.maximumf %165, %166 : vector<16x64xf32>
    %cst_123 = arith.constant dense<0.000000e+00> : vector<16x64xf32>
    %168 = tpu.matmul %167, %9, %cst_123 {dimension_numbers = #tpu.dot_dimension_numbers<[1], [0], [0], [1], [0, 0, 1, 1], [], []>} : vector<16x64xf32>, vector<64x64xf32>, vector<16x64xf32> -> vector<16x64xf32>
    %169 = vector.broadcast %10 : vector<1x64xf32> to vector<16x64xf32>
    %170 = arith.addf %168, %169 : vector<16x64xf32>
    %cst_124 = arith.constant 0.000000e+00 : f32
    %171 = vector.broadcast %cst_124 : f32 to vector<16x64xf32>
    %172 = arith.maximumf %170, %171 : vector<16x64xf32>
    %cst_125 = arith.constant dense<0.000000e+00> : vector<16x32xf32>
    %173 = tpu.matmul %172, %11, %cst_125 {dimension_numbers = #tpu.dot_dimension_numbers<[1], [0], [0], [1], [0, 0, 1, 1], [], []>} : vector<16x64xf32>, vector<64x32xf32>, vector<16x32xf32> -> vector<16x32xf32>
    %174 = vector.broadcast %12 : vector<1x32xf32> to vector<16x32xf32>
    %175 = arith.addf %173, %174 : vector<16x32xf32>
    %cst_126 = arith.constant dense<0.000000e+00> : vector<8x32xf32>
    %176 = tpu.matmul %2, %175, %cst_126 {dimension_numbers = #tpu.dot_dimension_numbers<[1], [0], [0], [1], [0, 0, 1, 1], [], []>} : vector<8x16xf32>, vector<16x32xf32>, vector<8x32xf32> -> vector<8x32xf32>
    %c0_127 = arith.constant 0 : index
    %c0_128 = arith.constant 0 : index
    %c0_129 = arith.constant 0 : index
    %177 = vector.load %arg11[%c0_127, %c0_128, %c0_129] : memref<6x32x32xf32, #tpu.memory_space<vmem>>, vector<1x32x32xf32>
    %178 = vector.shape_cast %177 : vector<1x32x32xf32> to vector<32x32xf32>
    %cst_130 = arith.constant dense<0.000000e+00> : vector<8x32xf32>
    %179 = tpu.matmul %176, %178, %cst_130 {dimension_numbers = #tpu.dot_dimension_numbers<[1], [0], [0], [1], [0, 0, 1, 1], [], []>} : vector<8x32xf32>, vector<32x32xf32>, vector<8x32xf32> -> vector<8x32xf32>
    %c0_131 = arith.constant 0 : index
    %c0_132 = arith.constant 0 : index
    %c0_133 = arith.constant 0 : index
    %180 = vector.load %arg13[%c0_131, %c0_132, %c0_133] : memref<6x1x32xf32, #tpu.memory_space<vmem>>, vector<1x1x32xf32>
    %181 = vector.shape_cast %180 : vector<1x1x32xf32> to vector<1x32xf32>
    %182 = vector.broadcast %181 : vector<1x32xf32> to vector<8x32xf32>
    %183 = arith.addf %179, %182 : vector<8x32xf32>
    %c1_134 = arith.constant 1 : index
    %c0_135 = arith.constant 0 : index
    %c0_136 = arith.constant 0 : index
    %184 = vector.load %arg11[%c1_134, %c0_135, %c0_136] : memref<6x32x32xf32, #tpu.memory_space<vmem>>, vector<1x32x32xf32>
    %185 = vector.shape_cast %184 : vector<1x32x32xf32> to vector<32x32xf32>
    %cst_137 = arith.constant dense<0.000000e+00> : vector<8x32xf32>
    %186 = tpu.matmul %176, %185, %cst_137 {dimension_numbers = #tpu.dot_dimension_numbers<[1], [0], [0], [1], [0, 0, 1, 1], [], []>} : vector<8x32xf32>, vector<32x32xf32>, vector<8x32xf32> -> vector<8x32xf32>
    %c1_138 = arith.constant 1 : index
    %c0_139 = arith.constant 0 : index
    %c0_140 = arith.constant 0 : index
    %187 = vector.load %arg13[%c1_138, %c0_139, %c0_140] : memref<6x1x32xf32, #tpu.memory_space<vmem>>, vector<1x1x32xf32>
    %188 = vector.shape_cast %187 : vector<1x1x32xf32> to vector<1x32xf32>
    %189 = vector.broadcast %188 : vector<1x32xf32> to vector<8x32xf32>
    %190 = arith.addf %186, %189 : vector<8x32xf32>
    %c2_141 = arith.constant 2 : index
    %c0_142 = arith.constant 0 : index
    %c0_143 = arith.constant 0 : index
    %191 = vector.load %arg11[%c2_141, %c0_142, %c0_143] : memref<6x32x32xf32, #tpu.memory_space<vmem>>, vector<1x32x32xf32>
    %192 = vector.shape_cast %191 : vector<1x32x32xf32> to vector<32x32xf32>
    %cst_144 = arith.constant dense<0.000000e+00> : vector<8x32xf32>
    %193 = tpu.matmul %176, %192, %cst_144 {dimension_numbers = #tpu.dot_dimension_numbers<[1], [0], [0], [1], [0, 0, 1, 1], [], []>} : vector<8x32xf32>, vector<32x32xf32>, vector<8x32xf32> -> vector<8x32xf32>
    %c2_145 = arith.constant 2 : index
    %c0_146 = arith.constant 0 : index
    %c0_147 = arith.constant 0 : index
    %194 = vector.load %arg13[%c2_145, %c0_146, %c0_147] : memref<6x1x32xf32, #tpu.memory_space<vmem>>, vector<1x1x32xf32>
    %195 = vector.shape_cast %194 : vector<1x1x32xf32> to vector<1x32xf32>
    %196 = vector.broadcast %195 : vector<1x32xf32> to vector<8x32xf32>
    %197 = arith.addf %193, %196 : vector<8x32xf32>
    %c0_148 = arith.constant 0 : index
    %c0_149 = arith.constant 0 : index
    %c0_150 = arith.constant 0 : index
    %198 = vector.load %arg12[%c0_148, %c0_149, %c0_150] : memref<6x32x32xf32, #tpu.memory_space<vmem>>, vector<1x32x32xf32>
    %199 = vector.shape_cast %198 : vector<1x32x32xf32> to vector<32x32xf32>
    %cst_151 = arith.constant dense<0.000000e+00> : vector<8x32xf32>
    %200 = tpu.matmul %159, %199, %cst_151 {dimension_numbers = #tpu.dot_dimension_numbers<[1], [0], [0], [1], [0, 0, 1, 1], [], []>} : vector<8x32xf32>, vector<32x32xf32>, vector<8x32xf32> -> vector<8x32xf32>
    %c0_152 = arith.constant 0 : index
    %c0_153 = arith.constant 0 : index
    %c0_154 = arith.constant 0 : index
    %201 = vector.load %arg14[%c0_152, %c0_153, %c0_154] : memref<6x1x32xf32, #tpu.memory_space<vmem>>, vector<1x1x32xf32>
    %202 = vector.shape_cast %201 : vector<1x1x32xf32> to vector<1x32xf32>
    %203 = vector.broadcast %202 : vector<1x32xf32> to vector<8x32xf32>
    %204 = arith.addf %200, %203 : vector<8x32xf32>
    %c1_155 = arith.constant 1 : index
    %c0_156 = arith.constant 0 : index
    %c0_157 = arith.constant 0 : index
    %205 = vector.load %arg12[%c1_155, %c0_156, %c0_157] : memref<6x32x32xf32, #tpu.memory_space<vmem>>, vector<1x32x32xf32>
    %206 = vector.shape_cast %205 : vector<1x32x32xf32> to vector<32x32xf32>
    %cst_158 = arith.constant dense<0.000000e+00> : vector<8x32xf32>
    %207 = tpu.matmul %159, %206, %cst_158 {dimension_numbers = #tpu.dot_dimension_numbers<[1], [0], [0], [1], [0, 0, 1, 1], [], []>} : vector<8x32xf32>, vector<32x32xf32>, vector<8x32xf32> -> vector<8x32xf32>
    %c1_159 = arith.constant 1 : index
    %c0_160 = arith.constant 0 : index
    %c0_161 = arith.constant 0 : index
    %208 = vector.load %arg14[%c1_159, %c0_160, %c0_161] : memref<6x1x32xf32, #tpu.memory_space<vmem>>, vector<1x1x32xf32>
    %209 = vector.shape_cast %208 : vector<1x1x32xf32> to vector<1x32xf32>
    %210 = vector.broadcast %209 : vector<1x32xf32> to vector<8x32xf32>
    %211 = arith.addf %207, %210 : vector<8x32xf32>
    %c2_162 = arith.constant 2 : index
    %c0_163 = arith.constant 0 : index
    %c0_164 = arith.constant 0 : index
    %212 = vector.load %arg12[%c2_162, %c0_163, %c0_164] : memref<6x32x32xf32, #tpu.memory_space<vmem>>, vector<1x32x32xf32>
    %213 = vector.shape_cast %212 : vector<1x32x32xf32> to vector<32x32xf32>
    %cst_165 = arith.constant dense<0.000000e+00> : vector<8x32xf32>
    %214 = tpu.matmul %159, %213, %cst_165 {dimension_numbers = #tpu.dot_dimension_numbers<[1], [0], [0], [1], [0, 0, 1, 1], [], []>} : vector<8x32xf32>, vector<32x32xf32>, vector<8x32xf32> -> vector<8x32xf32>
    %c2_166 = arith.constant 2 : index
    %c0_167 = arith.constant 0 : index
    %c0_168 = arith.constant 0 : index
    %215 = vector.load %arg14[%c2_166, %c0_167, %c0_168] : memref<6x1x32xf32, #tpu.memory_space<vmem>>, vector<1x1x32xf32>
    %216 = vector.shape_cast %215 : vector<1x1x32xf32> to vector<1x32xf32>
    %217 = vector.broadcast %216 : vector<1x32xf32> to vector<8x32xf32>
    %218 = arith.addf %214, %217 : vector<8x32xf32>
    %219 = arith.addf %183, %204 : vector<8x32xf32>
    %220 = arith.negf %219 : vector<8x32xf32>
    %221 = math.exp %220 : vector<8x32xf32>
    %cst_169 = arith.constant 1.000000e+00 : f32
    %222 = vector.broadcast %cst_169 : f32 to vector<8x32xf32>
    %223 = arith.addf %222, %221 : vector<8x32xf32>
    %224 = arith.divf %222, %223 : vector<8x32xf32>
    %225 = arith.addf %190, %211 : vector<8x32xf32>
    %226 = arith.negf %225 : vector<8x32xf32>
    %227 = math.exp %226 : vector<8x32xf32>
    %cst_170 = arith.constant 1.000000e+00 : f32
    %228 = vector.broadcast %cst_170 : f32 to vector<8x32xf32>
    %229 = arith.addf %228, %227 : vector<8x32xf32>
    %230 = arith.divf %228, %229 : vector<8x32xf32>
    %231 = arith.mulf %224, %218 : vector<8x32xf32>
    %232 = arith.addf %197, %231 : vector<8x32xf32>
    %233 = math.tanh %232 : vector<8x32xf32>
    %cst_171 = arith.constant 1.000000e+00 : f32
    %234 = vector.broadcast %cst_171 : f32 to vector<8x32xf32>
    %235 = arith.subf %234, %230 : vector<8x32xf32>
    %236 = arith.mulf %235, %233 : vector<8x32xf32>
    %237 = arith.mulf %230, %159 : vector<8x32xf32>
    %238 = arith.addf %236, %237 : vector<8x32xf32>
    %c3_172 = arith.constant 3 : index
    %c0_173 = arith.constant 0 : index
    %c0_174 = arith.constant 0 : index
    %239 = vector.load %arg11[%c3_172, %c0_173, %c0_174] : memref<6x32x32xf32, #tpu.memory_space<vmem>>, vector<1x32x32xf32>
    %240 = vector.shape_cast %239 : vector<1x32x32xf32> to vector<32x32xf32>
    %cst_175 = arith.constant dense<0.000000e+00> : vector<8x32xf32>
    %241 = tpu.matmul %176, %240, %cst_175 {dimension_numbers = #tpu.dot_dimension_numbers<[1], [0], [0], [1], [0, 0, 1, 1], [], []>} : vector<8x32xf32>, vector<32x32xf32>, vector<8x32xf32> -> vector<8x32xf32>
    %c3_176 = arith.constant 3 : index
    %c0_177 = arith.constant 0 : index
    %c0_178 = arith.constant 0 : index
    %242 = vector.load %arg13[%c3_176, %c0_177, %c0_178] : memref<6x1x32xf32, #tpu.memory_space<vmem>>, vector<1x1x32xf32>
    %243 = vector.shape_cast %242 : vector<1x1x32xf32> to vector<1x32xf32>
    %244 = vector.broadcast %243 : vector<1x32xf32> to vector<8x32xf32>
    %245 = arith.addf %241, %244 : vector<8x32xf32>
    %c4_179 = arith.constant 4 : index
    %c0_180 = arith.constant 0 : index
    %c0_181 = arith.constant 0 : index
    %246 = vector.load %arg11[%c4_179, %c0_180, %c0_181] : memref<6x32x32xf32, #tpu.memory_space<vmem>>, vector<1x32x32xf32>
    %247 = vector.shape_cast %246 : vector<1x32x32xf32> to vector<32x32xf32>
    %cst_182 = arith.constant dense<0.000000e+00> : vector<8x32xf32>
    %248 = tpu.matmul %176, %247, %cst_182 {dimension_numbers = #tpu.dot_dimension_numbers<[1], [0], [0], [1], [0, 0, 1, 1], [], []>} : vector<8x32xf32>, vector<32x32xf32>, vector<8x32xf32> -> vector<8x32xf32>
    %c4_183 = arith.constant 4 : index
    %c0_184 = arith.constant 0 : index
    %c0_185 = arith.constant 0 : index
    %249 = vector.load %arg13[%c4_183, %c0_184, %c0_185] : memref<6x1x32xf32, #tpu.memory_space<vmem>>, vector<1x1x32xf32>
    %250 = vector.shape_cast %249 : vector<1x1x32xf32> to vector<1x32xf32>
    %251 = vector.broadcast %250 : vector<1x32xf32> to vector<8x32xf32>
    %252 = arith.addf %248, %251 : vector<8x32xf32>
    %c5_186 = arith.constant 5 : index
    %c0_187 = arith.constant 0 : index
    %c0_188 = arith.constant 0 : index
    %253 = vector.load %arg11[%c5_186, %c0_187, %c0_188] : memref<6x32x32xf32, #tpu.memory_space<vmem>>, vector<1x32x32xf32>
    %254 = vector.shape_cast %253 : vector<1x32x32xf32> to vector<32x32xf32>
    %cst_189 = arith.constant dense<0.000000e+00> : vector<8x32xf32>
    %255 = tpu.matmul %176, %254, %cst_189 {dimension_numbers = #tpu.dot_dimension_numbers<[1], [0], [0], [1], [0, 0, 1, 1], [], []>} : vector<8x32xf32>, vector<32x32xf32>, vector<8x32xf32> -> vector<8x32xf32>
    %c5_190 = arith.constant 5 : index
    %c0_191 = arith.constant 0 : index
    %c0_192 = arith.constant 0 : index
    %256 = vector.load %arg13[%c5_190, %c0_191, %c0_192] : memref<6x1x32xf32, #tpu.memory_space<vmem>>, vector<1x1x32xf32>
    %257 = vector.shape_cast %256 : vector<1x1x32xf32> to vector<1x32xf32>
    %258 = vector.broadcast %257 : vector<1x32xf32> to vector<8x32xf32>
    %259 = arith.addf %255, %258 : vector<8x32xf32>
    %c3_193 = arith.constant 3 : index
    %c0_194 = arith.constant 0 : index
    %c0_195 = arith.constant 0 : index
    %260 = vector.load %arg12[%c3_193, %c0_194, %c0_195] : memref<6x32x32xf32, #tpu.memory_space<vmem>>, vector<1x32x32xf32>
    %261 = vector.shape_cast %260 : vector<1x32x32xf32> to vector<32x32xf32>
    %cst_196 = arith.constant dense<0.000000e+00> : vector<8x32xf32>
    %262 = tpu.matmul %159, %261, %cst_196 {dimension_numbers = #tpu.dot_dimension_numbers<[1], [0], [0], [1], [0, 0, 1, 1], [], []>} : vector<8x32xf32>, vector<32x32xf32>, vector<8x32xf32> -> vector<8x32xf32>
    %c3_197 = arith.constant 3 : index
    %c0_198 = arith.constant 0 : index
    %c0_199 = arith.constant 0 : index
    %263 = vector.load %arg14[%c3_197, %c0_198, %c0_199] : memref<6x1x32xf32, #tpu.memory_space<vmem>>, vector<1x1x32xf32>
    %264 = vector.shape_cast %263 : vector<1x1x32xf32> to vector<1x32xf32>
    %265 = vector.broadcast %264 : vector<1x32xf32> to vector<8x32xf32>
    %266 = arith.addf %262, %265 : vector<8x32xf32>
    %c4_200 = arith.constant 4 : index
    %c0_201 = arith.constant 0 : index
    %c0_202 = arith.constant 0 : index
    %267 = vector.load %arg12[%c4_200, %c0_201, %c0_202] : memref<6x32x32xf32, #tpu.memory_space<vmem>>, vector<1x32x32xf32>
    %268 = vector.shape_cast %267 : vector<1x32x32xf32> to vector<32x32xf32>
    %cst_203 = arith.constant dense<0.000000e+00> : vector<8x32xf32>
    %269 = tpu.matmul %159, %268, %cst_203 {dimension_numbers = #tpu.dot_dimension_numbers<[1], [0], [0], [1], [0, 0, 1, 1], [], []>} : vector<8x32xf32>, vector<32x32xf32>, vector<8x32xf32> -> vector<8x32xf32>
    %c4_204 = arith.constant 4 : index
    %c0_205 = arith.constant 0 : index
    %c0_206 = arith.constant 0 : index
    %270 = vector.load %arg14[%c4_204, %c0_205, %c0_206] : memref<6x1x32xf32, #tpu.memory_space<vmem>>, vector<1x1x32xf32>
    %271 = vector.shape_cast %270 : vector<1x1x32xf32> to vector<1x32xf32>
    %272 = vector.broadcast %271 : vector<1x32xf32> to vector<8x32xf32>
    %273 = arith.addf %269, %272 : vector<8x32xf32>
    %c5_207 = arith.constant 5 : index
    %c0_208 = arith.constant 0 : index
    %c0_209 = arith.constant 0 : index
    %274 = vector.load %arg12[%c5_207, %c0_208, %c0_209] : memref<6x32x32xf32, #tpu.memory_space<vmem>>, vector<1x32x32xf32>
    %275 = vector.shape_cast %274 : vector<1x32x32xf32> to vector<32x32xf32>
    %cst_210 = arith.constant dense<0.000000e+00> : vector<8x32xf32>
    %276 = tpu.matmul %159, %275, %cst_210 {dimension_numbers = #tpu.dot_dimension_numbers<[1], [0], [0], [1], [0, 0, 1, 1], [], []>} : vector<8x32xf32>, vector<32x32xf32>, vector<8x32xf32> -> vector<8x32xf32>
    %c5_211 = arith.constant 5 : index
    %c0_212 = arith.constant 0 : index
    %c0_213 = arith.constant 0 : index
    %277 = vector.load %arg14[%c5_211, %c0_212, %c0_213] : memref<6x1x32xf32, #tpu.memory_space<vmem>>, vector<1x1x32xf32>
    %278 = vector.shape_cast %277 : vector<1x1x32xf32> to vector<1x32xf32>
    %279 = vector.broadcast %278 : vector<1x32xf32> to vector<8x32xf32>
    %280 = arith.addf %276, %279 : vector<8x32xf32>
    %281 = arith.addf %245, %266 : vector<8x32xf32>
    %282 = arith.negf %281 : vector<8x32xf32>
    %283 = math.exp %282 : vector<8x32xf32>
    %cst_214 = arith.constant 1.000000e+00 : f32
    %284 = vector.broadcast %cst_214 : f32 to vector<8x32xf32>
    %285 = arith.addf %284, %283 : vector<8x32xf32>
    %286 = arith.divf %284, %285 : vector<8x32xf32>
    %287 = arith.addf %252, %273 : vector<8x32xf32>
    %288 = arith.negf %287 : vector<8x32xf32>
    %289 = math.exp %288 : vector<8x32xf32>
    %cst_215 = arith.constant 1.000000e+00 : f32
    %290 = vector.broadcast %cst_215 : f32 to vector<8x32xf32>
    %291 = arith.addf %290, %289 : vector<8x32xf32>
    %292 = arith.divf %290, %291 : vector<8x32xf32>
    %293 = arith.mulf %286, %280 : vector<8x32xf32>
    %294 = arith.addf %259, %293 : vector<8x32xf32>
    %295 = math.tanh %294 : vector<8x32xf32>
    %cst_216 = arith.constant 1.000000e+00 : f32
    %296 = vector.broadcast %cst_216 : f32 to vector<8x32xf32>
    %297 = arith.subf %296, %292 : vector<8x32xf32>
    %298 = arith.mulf %297, %295 : vector<8x32xf32>
    %299 = arith.mulf %292, %159 : vector<8x32xf32>
    %300 = arith.addf %298, %299 : vector<8x32xf32>
    %301 = arith.mulf %3, %238 : vector<8x32xf32>
    %cst_217 = arith.constant 1.000000e+00 : f32
    %302 = vector.broadcast %cst_217 : f32 to vector<8x32xf32>
    %303 = arith.subf %302, %3 : vector<8x32xf32>
    %304 = arith.mulf %303, %300 : vector<8x32xf32>
    %305 = arith.addf %301, %304 : vector<8x32xf32>
    %cst_218 = arith.constant dense<0.000000e+00> : vector<16x32xf32>
    %306 = tpu.matmul %0, %305, %cst_218 {dimension_numbers = #tpu.dot_dimension_numbers<[1], [0], [0], [1], [0, 0, 1, 1], [], []>} : vector<16x8xf32>, vector<8x32xf32>, vector<16x32xf32> -> vector<16x32xf32>
    %cst_219 = arith.constant dense<0.000000e+00> : vector<16x32xf32>
    %307 = tpu.matmul %1, %305, %cst_219 {dimension_numbers = #tpu.dot_dimension_numbers<[1], [0], [0], [1], [0, 0, 1, 1], [], []>} : vector<16x8xf32>, vector<8x32xf32>, vector<16x32xf32> -> vector<16x32xf32>
    %cst_220 = arith.constant dense<0.000000e+00> : vector<16x64xf32>
    %308 = tpu.matmul %306, %6, %cst_220 {dimension_numbers = #tpu.dot_dimension_numbers<[1], [0], [0], [1], [0, 0, 1, 1], [], []>} : vector<16x32xf32>, vector<32x64xf32>, vector<16x64xf32> -> vector<16x64xf32>
    %cst_221 = arith.constant dense<0.000000e+00> : vector<16x64xf32>
    %309 = tpu.matmul %307, %8, %cst_221 {dimension_numbers = #tpu.dot_dimension_numbers<[1], [0], [0], [1], [0, 0, 1, 1], [], []>} : vector<16x32xf32>, vector<32x64xf32>, vector<16x64xf32> -> vector<16x64xf32>
    %310 = arith.addf %308, %309 : vector<16x64xf32>
    %311 = arith.addf %310, %4 : vector<16x64xf32>
    %cst_222 = arith.constant 0.000000e+00 : f32
    %312 = vector.broadcast %cst_222 : f32 to vector<16x64xf32>
    %313 = arith.maximumf %311, %312 : vector<16x64xf32>
    %cst_223 = arith.constant dense<0.000000e+00> : vector<16x64xf32>
    %314 = tpu.matmul %313, %9, %cst_223 {dimension_numbers = #tpu.dot_dimension_numbers<[1], [0], [0], [1], [0, 0, 1, 1], [], []>} : vector<16x64xf32>, vector<64x64xf32>, vector<16x64xf32> -> vector<16x64xf32>
    %315 = vector.broadcast %10 : vector<1x64xf32> to vector<16x64xf32>
    %316 = arith.addf %314, %315 : vector<16x64xf32>
    %cst_224 = arith.constant 0.000000e+00 : f32
    %317 = vector.broadcast %cst_224 : f32 to vector<16x64xf32>
    %318 = arith.maximumf %316, %317 : vector<16x64xf32>
    %cst_225 = arith.constant dense<0.000000e+00> : vector<16x32xf32>
    %319 = tpu.matmul %318, %11, %cst_225 {dimension_numbers = #tpu.dot_dimension_numbers<[1], [0], [0], [1], [0, 0, 1, 1], [], []>} : vector<16x64xf32>, vector<64x32xf32>, vector<16x32xf32> -> vector<16x32xf32>
    %320 = vector.broadcast %12 : vector<1x32xf32> to vector<16x32xf32>
    %321 = arith.addf %319, %320 : vector<16x32xf32>
    %cst_226 = arith.constant dense<0.000000e+00> : vector<8x32xf32>
    %322 = tpu.matmul %2, %321, %cst_226 {dimension_numbers = #tpu.dot_dimension_numbers<[1], [0], [0], [1], [0, 0, 1, 1], [], []>} : vector<8x16xf32>, vector<16x32xf32>, vector<8x32xf32> -> vector<8x32xf32>
    %c0_227 = arith.constant 0 : index
    %c0_228 = arith.constant 0 : index
    %c0_229 = arith.constant 0 : index
    %323 = vector.load %arg11[%c0_227, %c0_228, %c0_229] : memref<6x32x32xf32, #tpu.memory_space<vmem>>, vector<1x32x32xf32>
    %324 = vector.shape_cast %323 : vector<1x32x32xf32> to vector<32x32xf32>
    %cst_230 = arith.constant dense<0.000000e+00> : vector<8x32xf32>
    %325 = tpu.matmul %322, %324, %cst_230 {dimension_numbers = #tpu.dot_dimension_numbers<[1], [0], [0], [1], [0, 0, 1, 1], [], []>} : vector<8x32xf32>, vector<32x32xf32>, vector<8x32xf32> -> vector<8x32xf32>
    %c0_231 = arith.constant 0 : index
    %c0_232 = arith.constant 0 : index
    %c0_233 = arith.constant 0 : index
    %326 = vector.load %arg13[%c0_231, %c0_232, %c0_233] : memref<6x1x32xf32, #tpu.memory_space<vmem>>, vector<1x1x32xf32>
    %327 = vector.shape_cast %326 : vector<1x1x32xf32> to vector<1x32xf32>
    %328 = vector.broadcast %327 : vector<1x32xf32> to vector<8x32xf32>
    %329 = arith.addf %325, %328 : vector<8x32xf32>
    %c1_234 = arith.constant 1 : index
    %c0_235 = arith.constant 0 : index
    %c0_236 = arith.constant 0 : index
    %330 = vector.load %arg11[%c1_234, %c0_235, %c0_236] : memref<6x32x32xf32, #tpu.memory_space<vmem>>, vector<1x32x32xf32>
    %331 = vector.shape_cast %330 : vector<1x32x32xf32> to vector<32x32xf32>
    %cst_237 = arith.constant dense<0.000000e+00> : vector<8x32xf32>
    %332 = tpu.matmul %322, %331, %cst_237 {dimension_numbers = #tpu.dot_dimension_numbers<[1], [0], [0], [1], [0, 0, 1, 1], [], []>} : vector<8x32xf32>, vector<32x32xf32>, vector<8x32xf32> -> vector<8x32xf32>
    %c1_238 = arith.constant 1 : index
    %c0_239 = arith.constant 0 : index
    %c0_240 = arith.constant 0 : index
    %333 = vector.load %arg13[%c1_238, %c0_239, %c0_240] : memref<6x1x32xf32, #tpu.memory_space<vmem>>, vector<1x1x32xf32>
    %334 = vector.shape_cast %333 : vector<1x1x32xf32> to vector<1x32xf32>
    %335 = vector.broadcast %334 : vector<1x32xf32> to vector<8x32xf32>
    %336 = arith.addf %332, %335 : vector<8x32xf32>
    %c2_241 = arith.constant 2 : index
    %c0_242 = arith.constant 0 : index
    %c0_243 = arith.constant 0 : index
    %337 = vector.load %arg11[%c2_241, %c0_242, %c0_243] : memref<6x32x32xf32, #tpu.memory_space<vmem>>, vector<1x32x32xf32>
    %338 = vector.shape_cast %337 : vector<1x32x32xf32> to vector<32x32xf32>
    %cst_244 = arith.constant dense<0.000000e+00> : vector<8x32xf32>
    %339 = tpu.matmul %322, %338, %cst_244 {dimension_numbers = #tpu.dot_dimension_numbers<[1], [0], [0], [1], [0, 0, 1, 1], [], []>} : vector<8x32xf32>, vector<32x32xf32>, vector<8x32xf32> -> vector<8x32xf32>
    %c2_245 = arith.constant 2 : index
    %c0_246 = arith.constant 0 : index
    %c0_247 = arith.constant 0 : index
    %340 = vector.load %arg13[%c2_245, %c0_246, %c0_247] : memref<6x1x32xf32, #tpu.memory_space<vmem>>, vector<1x1x32xf32>
    %341 = vector.shape_cast %340 : vector<1x1x32xf32> to vector<1x32xf32>
    %342 = vector.broadcast %341 : vector<1x32xf32> to vector<8x32xf32>
    %343 = arith.addf %339, %342 : vector<8x32xf32>
    %c0_248 = arith.constant 0 : index
    %c0_249 = arith.constant 0 : index
    %c0_250 = arith.constant 0 : index
    %344 = vector.load %arg12[%c0_248, %c0_249, %c0_250] : memref<6x32x32xf32, #tpu.memory_space<vmem>>, vector<1x32x32xf32>
    %345 = vector.shape_cast %344 : vector<1x32x32xf32> to vector<32x32xf32>
    %cst_251 = arith.constant dense<0.000000e+00> : vector<8x32xf32>
    %346 = tpu.matmul %305, %345, %cst_251 {dimension_numbers = #tpu.dot_dimension_numbers<[1], [0], [0], [1], [0, 0, 1, 1], [], []>} : vector<8x32xf32>, vector<32x32xf32>, vector<8x32xf32> -> vector<8x32xf32>
    %c0_252 = arith.constant 0 : index
    %c0_253 = arith.constant 0 : index
    %c0_254 = arith.constant 0 : index
    %347 = vector.load %arg14[%c0_252, %c0_253, %c0_254] : memref<6x1x32xf32, #tpu.memory_space<vmem>>, vector<1x1x32xf32>
    %348 = vector.shape_cast %347 : vector<1x1x32xf32> to vector<1x32xf32>
    %349 = vector.broadcast %348 : vector<1x32xf32> to vector<8x32xf32>
    %350 = arith.addf %346, %349 : vector<8x32xf32>
    %c1_255 = arith.constant 1 : index
    %c0_256 = arith.constant 0 : index
    %c0_257 = arith.constant 0 : index
    %351 = vector.load %arg12[%c1_255, %c0_256, %c0_257] : memref<6x32x32xf32, #tpu.memory_space<vmem>>, vector<1x32x32xf32>
    %352 = vector.shape_cast %351 : vector<1x32x32xf32> to vector<32x32xf32>
    %cst_258 = arith.constant dense<0.000000e+00> : vector<8x32xf32>
    %353 = tpu.matmul %305, %352, %cst_258 {dimension_numbers = #tpu.dot_dimension_numbers<[1], [0], [0], [1], [0, 0, 1, 1], [], []>} : vector<8x32xf32>, vector<32x32xf32>, vector<8x32xf32> -> vector<8x32xf32>
    %c1_259 = arith.constant 1 : index
    %c0_260 = arith.constant 0 : index
    %c0_261 = arith.constant 0 : index
    %354 = vector.load %arg14[%c1_259, %c0_260, %c0_261] : memref<6x1x32xf32, #tpu.memory_space<vmem>>, vector<1x1x32xf32>
    %355 = vector.shape_cast %354 : vector<1x1x32xf32> to vector<1x32xf32>
    %356 = vector.broadcast %355 : vector<1x32xf32> to vector<8x32xf32>
    %357 = arith.addf %353, %356 : vector<8x32xf32>
    %c2_262 = arith.constant 2 : index
    %c0_263 = arith.constant 0 : index
    %c0_264 = arith.constant 0 : index
    %358 = vector.load %arg12[%c2_262, %c0_263, %c0_264] : memref<6x32x32xf32, #tpu.memory_space<vmem>>, vector<1x32x32xf32>
    %359 = vector.shape_cast %358 : vector<1x32x32xf32> to vector<32x32xf32>
    %cst_265 = arith.constant dense<0.000000e+00> : vector<8x32xf32>
    %360 = tpu.matmul %305, %359, %cst_265 {dimension_numbers = #tpu.dot_dimension_numbers<[1], [0], [0], [1], [0, 0, 1, 1], [], []>} : vector<8x32xf32>, vector<32x32xf32>, vector<8x32xf32> -> vector<8x32xf32>
    %c2_266 = arith.constant 2 : index
    %c0_267 = arith.constant 0 : index
    %c0_268 = arith.constant 0 : index
    %361 = vector.load %arg14[%c2_266, %c0_267, %c0_268] : memref<6x1x32xf32, #tpu.memory_space<vmem>>, vector<1x1x32xf32>
    %362 = vector.shape_cast %361 : vector<1x1x32xf32> to vector<1x32xf32>
    %363 = vector.broadcast %362 : vector<1x32xf32> to vector<8x32xf32>
    %364 = arith.addf %360, %363 : vector<8x32xf32>
    %365 = arith.addf %329, %350 : vector<8x32xf32>
    %366 = arith.negf %365 : vector<8x32xf32>
    %367 = math.exp %366 : vector<8x32xf32>
    %cst_269 = arith.constant 1.000000e+00 : f32
    %368 = vector.broadcast %cst_269 : f32 to vector<8x32xf32>
    %369 = arith.addf %368, %367 : vector<8x32xf32>
    %370 = arith.divf %368, %369 : vector<8x32xf32>
    %371 = arith.addf %336, %357 : vector<8x32xf32>
    %372 = arith.negf %371 : vector<8x32xf32>
    %373 = math.exp %372 : vector<8x32xf32>
    %cst_270 = arith.constant 1.000000e+00 : f32
    %374 = vector.broadcast %cst_270 : f32 to vector<8x32xf32>
    %375 = arith.addf %374, %373 : vector<8x32xf32>
    %376 = arith.divf %374, %375 : vector<8x32xf32>
    %377 = arith.mulf %370, %364 : vector<8x32xf32>
    %378 = arith.addf %343, %377 : vector<8x32xf32>
    %379 = math.tanh %378 : vector<8x32xf32>
    %cst_271 = arith.constant 1.000000e+00 : f32
    %380 = vector.broadcast %cst_271 : f32 to vector<8x32xf32>
    %381 = arith.subf %380, %376 : vector<8x32xf32>
    %382 = arith.mulf %381, %379 : vector<8x32xf32>
    %383 = arith.mulf %376, %305 : vector<8x32xf32>
    %384 = arith.addf %382, %383 : vector<8x32xf32>
    %c3_272 = arith.constant 3 : index
    %c0_273 = arith.constant 0 : index
    %c0_274 = arith.constant 0 : index
    %385 = vector.load %arg11[%c3_272, %c0_273, %c0_274] : memref<6x32x32xf32, #tpu.memory_space<vmem>>, vector<1x32x32xf32>
    %386 = vector.shape_cast %385 : vector<1x32x32xf32> to vector<32x32xf32>
    %cst_275 = arith.constant dense<0.000000e+00> : vector<8x32xf32>
    %387 = tpu.matmul %322, %386, %cst_275 {dimension_numbers = #tpu.dot_dimension_numbers<[1], [0], [0], [1], [0, 0, 1, 1], [], []>} : vector<8x32xf32>, vector<32x32xf32>, vector<8x32xf32> -> vector<8x32xf32>
    %c3_276 = arith.constant 3 : index
    %c0_277 = arith.constant 0 : index
    %c0_278 = arith.constant 0 : index
    %388 = vector.load %arg13[%c3_276, %c0_277, %c0_278] : memref<6x1x32xf32, #tpu.memory_space<vmem>>, vector<1x1x32xf32>
    %389 = vector.shape_cast %388 : vector<1x1x32xf32> to vector<1x32xf32>
    %390 = vector.broadcast %389 : vector<1x32xf32> to vector<8x32xf32>
    %391 = arith.addf %387, %390 : vector<8x32xf32>
    %c4_279 = arith.constant 4 : index
    %c0_280 = arith.constant 0 : index
    %c0_281 = arith.constant 0 : index
    %392 = vector.load %arg11[%c4_279, %c0_280, %c0_281] : memref<6x32x32xf32, #tpu.memory_space<vmem>>, vector<1x32x32xf32>
    %393 = vector.shape_cast %392 : vector<1x32x32xf32> to vector<32x32xf32>
    %cst_282 = arith.constant dense<0.000000e+00> : vector<8x32xf32>
    %394 = tpu.matmul %322, %393, %cst_282 {dimension_numbers = #tpu.dot_dimension_numbers<[1], [0], [0], [1], [0, 0, 1, 1], [], []>} : vector<8x32xf32>, vector<32x32xf32>, vector<8x32xf32> -> vector<8x32xf32>
    %c4_283 = arith.constant 4 : index
    %c0_284 = arith.constant 0 : index
    %c0_285 = arith.constant 0 : index
    %395 = vector.load %arg13[%c4_283, %c0_284, %c0_285] : memref<6x1x32xf32, #tpu.memory_space<vmem>>, vector<1x1x32xf32>
    %396 = vector.shape_cast %395 : vector<1x1x32xf32> to vector<1x32xf32>
    %397 = vector.broadcast %396 : vector<1x32xf32> to vector<8x32xf32>
    %398 = arith.addf %394, %397 : vector<8x32xf32>
    %c5_286 = arith.constant 5 : index
    %c0_287 = arith.constant 0 : index
    %c0_288 = arith.constant 0 : index
    %399 = vector.load %arg11[%c5_286, %c0_287, %c0_288] : memref<6x32x32xf32, #tpu.memory_space<vmem>>, vector<1x32x32xf32>
    %400 = vector.shape_cast %399 : vector<1x32x32xf32> to vector<32x32xf32>
    %cst_289 = arith.constant dense<0.000000e+00> : vector<8x32xf32>
    %401 = tpu.matmul %322, %400, %cst_289 {dimension_numbers = #tpu.dot_dimension_numbers<[1], [0], [0], [1], [0, 0, 1, 1], [], []>} : vector<8x32xf32>, vector<32x32xf32>, vector<8x32xf32> -> vector<8x32xf32>
    %c5_290 = arith.constant 5 : index
    %c0_291 = arith.constant 0 : index
    %c0_292 = arith.constant 0 : index
    %402 = vector.load %arg13[%c5_290, %c0_291, %c0_292] : memref<6x1x32xf32, #tpu.memory_space<vmem>>, vector<1x1x32xf32>
    %403 = vector.shape_cast %402 : vector<1x1x32xf32> to vector<1x32xf32>
    %404 = vector.broadcast %403 : vector<1x32xf32> to vector<8x32xf32>
    %405 = arith.addf %401, %404 : vector<8x32xf32>
    %c3_293 = arith.constant 3 : index
    %c0_294 = arith.constant 0 : index
    %c0_295 = arith.constant 0 : index
    %406 = vector.load %arg12[%c3_293, %c0_294, %c0_295] : memref<6x32x32xf32, #tpu.memory_space<vmem>>, vector<1x32x32xf32>
    %407 = vector.shape_cast %406 : vector<1x32x32xf32> to vector<32x32xf32>
    %cst_296 = arith.constant dense<0.000000e+00> : vector<8x32xf32>
    %408 = tpu.matmul %305, %407, %cst_296 {dimension_numbers = #tpu.dot_dimension_numbers<[1], [0], [0], [1], [0, 0, 1, 1], [], []>} : vector<8x32xf32>, vector<32x32xf32>, vector<8x32xf32> -> vector<8x32xf32>
    %c3_297 = arith.constant 3 : index
    %c0_298 = arith.constant 0 : index
    %c0_299 = arith.constant 0 : index
    %409 = vector.load %arg14[%c3_297, %c0_298, %c0_299] : memref<6x1x32xf32, #tpu.memory_space<vmem>>, vector<1x1x32xf32>
    %410 = vector.shape_cast %409 : vector<1x1x32xf32> to vector<1x32xf32>
    %411 = vector.broadcast %410 : vector<1x32xf32> to vector<8x32xf32>
    %412 = arith.addf %408, %411 : vector<8x32xf32>
    %c4_300 = arith.constant 4 : index
    %c0_301 = arith.constant 0 : index
    %c0_302 = arith.constant 0 : index
    %413 = vector.load %arg12[%c4_300, %c0_301, %c0_302] : memref<6x32x32xf32, #tpu.memory_space<vmem>>, vector<1x32x32xf32>
    %414 = vector.shape_cast %413 : vector<1x32x32xf32> to vector<32x32xf32>
    %cst_303 = arith.constant dense<0.000000e+00> : vector<8x32xf32>
    %415 = tpu.matmul %305, %414, %cst_303 {dimension_numbers = #tpu.dot_dimension_numbers<[1], [0], [0], [1], [0, 0, 1, 1], [], []>} : vector<8x32xf32>, vector<32x32xf32>, vector<8x32xf32> -> vector<8x32xf32>
    %c4_304 = arith.constant 4 : index
    %c0_305 = arith.constant 0 : index
    %c0_306 = arith.constant 0 : index
    %416 = vector.load %arg14[%c4_304, %c0_305, %c0_306] : memref<6x1x32xf32, #tpu.memory_space<vmem>>, vector<1x1x32xf32>
    %417 = vector.shape_cast %416 : vector<1x1x32xf32> to vector<1x32xf32>
    %418 = vector.broadcast %417 : vector<1x32xf32> to vector<8x32xf32>
    %419 = arith.addf %415, %418 : vector<8x32xf32>
    %c5_307 = arith.constant 5 : index
    %c0_308 = arith.constant 0 : index
    %c0_309 = arith.constant 0 : index
    %420 = vector.load %arg12[%c5_307, %c0_308, %c0_309] : memref<6x32x32xf32, #tpu.memory_space<vmem>>, vector<1x32x32xf32>
    %421 = vector.shape_cast %420 : vector<1x32x32xf32> to vector<32x32xf32>
    %cst_310 = arith.constant dense<0.000000e+00> : vector<8x32xf32>
    %422 = tpu.matmul %305, %421, %cst_310 {dimension_numbers = #tpu.dot_dimension_numbers<[1], [0], [0], [1], [0, 0, 1, 1], [], []>} : vector<8x32xf32>, vector<32x32xf32>, vector<8x32xf32> -> vector<8x32xf32>
    %c5_311 = arith.constant 5 : index
    %c0_312 = arith.constant 0 : index
    %c0_313 = arith.constant 0 : index
    %423 = vector.load %arg14[%c5_311, %c0_312, %c0_313] : memref<6x1x32xf32, #tpu.memory_space<vmem>>, vector<1x1x32xf32>
    %424 = vector.shape_cast %423 : vector<1x1x32xf32> to vector<1x32xf32>
    %425 = vector.broadcast %424 : vector<1x32xf32> to vector<8x32xf32>
    %426 = arith.addf %422, %425 : vector<8x32xf32>
    %427 = arith.addf %391, %412 : vector<8x32xf32>
    %428 = arith.negf %427 : vector<8x32xf32>
    %429 = math.exp %428 : vector<8x32xf32>
    %cst_314 = arith.constant 1.000000e+00 : f32
    %430 = vector.broadcast %cst_314 : f32 to vector<8x32xf32>
    %431 = arith.addf %430, %429 : vector<8x32xf32>
    %432 = arith.divf %430, %431 : vector<8x32xf32>
    %433 = arith.addf %398, %419 : vector<8x32xf32>
    %434 = arith.negf %433 : vector<8x32xf32>
    %435 = math.exp %434 : vector<8x32xf32>
    %cst_315 = arith.constant 1.000000e+00 : f32
    %436 = vector.broadcast %cst_315 : f32 to vector<8x32xf32>
    %437 = arith.addf %436, %435 : vector<8x32xf32>
    %438 = arith.divf %436, %437 : vector<8x32xf32>
    %439 = arith.mulf %432, %426 : vector<8x32xf32>
    %440 = arith.addf %405, %439 : vector<8x32xf32>
    %441 = math.tanh %440 : vector<8x32xf32>
    %cst_316 = arith.constant 1.000000e+00 : f32
    %442 = vector.broadcast %cst_316 : f32 to vector<8x32xf32>
    %443 = arith.subf %442, %438 : vector<8x32xf32>
    %444 = arith.mulf %443, %441 : vector<8x32xf32>
    %445 = arith.mulf %438, %305 : vector<8x32xf32>
    %446 = arith.addf %444, %445 : vector<8x32xf32>
    %447 = arith.mulf %3, %384 : vector<8x32xf32>
    %cst_317 = arith.constant 1.000000e+00 : f32
    %448 = vector.broadcast %cst_317 : f32 to vector<8x32xf32>
    %449 = arith.subf %448, %3 : vector<8x32xf32>
    %450 = arith.mulf %449, %446 : vector<8x32xf32>
    %451 = arith.addf %447, %450 : vector<8x32xf32>
    %c0_318 = arith.constant 0 : index
    %c0_319 = arith.constant 0 : index
    %452 = vector.load %arg15[%c0_318, %c0_319] : memref<32x64xf32, #tpu.memory_space<vmem>>, vector<32x64xf32>
    %cst_320 = arith.constant dense<0.000000e+00> : vector<8x64xf32>
    %453 = tpu.matmul %451, %452, %cst_320 {dimension_numbers = #tpu.dot_dimension_numbers<[1], [0], [0], [1], [0, 0, 1, 1], [], []>} : vector<8x32xf32>, vector<32x64xf32>, vector<8x64xf32> -> vector<8x64xf32>
    %c0_321 = arith.constant 0 : index
    %c0_322 = arith.constant 0 : index
    %454 = vector.load %arg16[%c0_321, %c0_322] : memref<8x64xf32, #tpu.memory_space<vmem>>, vector<8x64xf32>
    %455 = arith.addf %453, %454 : vector<8x64xf32>
    %cst_323 = arith.constant 0.000000e+00 : f32
    %456 = vector.broadcast %cst_323 : f32 to vector<8x64xf32>
    %457 = arith.maximumf %455, %456 : vector<8x64xf32>
    %c0_324 = arith.constant 0 : index
    %c0_325 = arith.constant 0 : index
    %458 = vector.load %arg17[%c0_324, %c0_325] : memref<64x64xf32, #tpu.memory_space<vmem>>, vector<64x64xf32>
    %cst_326 = arith.constant dense<0.000000e+00> : vector<8x64xf32>
    %459 = tpu.matmul %457, %458, %cst_326 {dimension_numbers = #tpu.dot_dimension_numbers<[1], [0], [0], [1], [0, 0, 1, 1], [], []>} : vector<8x64xf32>, vector<64x64xf32>, vector<8x64xf32> -> vector<8x64xf32>
    %c0_327 = arith.constant 0 : index
    %c0_328 = arith.constant 0 : index
    %460 = vector.load %arg18[%c0_327, %c0_328] : memref<1x64xf32, #tpu.memory_space<vmem>>, vector<1x64xf32>
    %461 = vector.broadcast %460 : vector<1x64xf32> to vector<8x64xf32>
    %462 = arith.addf %459, %461 : vector<8x64xf32>
    %cst_329 = arith.constant 0.000000e+00 : f32
    %463 = vector.broadcast %cst_329 : f32 to vector<8x64xf32>
    %464 = arith.maximumf %462, %463 : vector<8x64xf32>
    %c0_330 = arith.constant 0 : index
    %c0_331 = arith.constant 0 : index
    %465 = vector.load %arg19[%c0_330, %c0_331] : memref<64x2xf32, #tpu.memory_space<vmem>>, vector<64x2xf32>
    %cst_332 = arith.constant dense<0.000000e+00> : vector<8x2xf32>
    %466 = tpu.matmul %464, %465, %cst_332 {dimension_numbers = #tpu.dot_dimension_numbers<[1], [0], [0], [1], [0, 0, 1, 1], [], []>} : vector<8x64xf32>, vector<64x2xf32>, vector<8x2xf32> -> vector<8x2xf32>
    %c0_333 = arith.constant 0 : index
    %c0_334 = arith.constant 0 : index
    %467 = vector.load %arg20[%c0_333, %c0_334] : memref<1x2xf32, #tpu.memory_space<vmem>>, vector<1x2xf32>
    %468 = vector.broadcast %467 : vector<1x2xf32> to vector<8x2xf32>
    %469 = arith.addf %466, %468 : vector<8x2xf32>
    %470 = vector.extract_strided_slice %469 {offsets = [0, 0], sizes = [8, 1], strides = [1, 1]} : vector<8x2xf32> to vector<8x1xf32>
    %471 = vector.extract_strided_slice %469 {offsets = [0, 1], sizes = [8, 1], strides = [1, 1]} : vector<8x2xf32> to vector<8x1xf32>
    %472 = arith.maximumf %470, %471 : vector<8x1xf32>
    %473 = arith.subf %470, %472 : vector<8x1xf32>
    %474 = math.exp %473 : vector<8x1xf32>
    %475 = arith.subf %471, %472 : vector<8x1xf32>
    %476 = math.exp %475 : vector<8x1xf32>
    %477 = arith.addf %474, %476 : vector<8x1xf32>
    %478 = math.log %477 : vector<8x1xf32>
    %479 = arith.addf %472, %478 : vector<8x1xf32>
    %480 = vector.broadcast %479 : vector<8x1xf32> to vector<8x2xf32>
    %481 = arith.subf %469, %480 : vector<8x2xf32>
    %c0_335 = arith.constant 0 : index
    %c0_336 = arith.constant 0 : index
    %482 = vector.load %arg21[%c0_335, %c0_336] : memref<8x2xf32, #tpu.memory_space<vmem>>, vector<8x2xf32>
    tpu.vector_store %arg21[%c0_335, %c0_336], %481 {strides = array<i32>} : memref<8x2xf32, #tpu.memory_space<vmem>>, vector<8x2xf32>,
    return
  }
  func.func @transform_0(%arg0: i32) -> (i32, i32) {
    %c0_i32 = arith.constant 0 : i32
    %c0_i32_0 = arith.constant 0 : i32
    %c0_i32_1 = arith.constant 0 : i32
    return %c0_i32, %c0_i32_0 : i32, i32
  }
  func.func @transform_1(%arg0: i32) -> (i32, i32) {
    %c0_i32 = arith.constant 0 : i32
    %c0_i32_0 = arith.constant 0 : i32
    %c0_i32_1 = arith.constant 0 : i32
    return %c0_i32, %c0_i32_0 : i32, i32
  }
  func.func @transform_2(%arg0: i32) -> (i32, i32) {
    %c0_i32 = arith.constant 0 : i32
    %c0_i32_0 = arith.constant 0 : i32
    %c0_i32_1 = arith.constant 0 : i32
    return %c0_i32, %c0_i32_0 : i32, i32
  }
  func.func @transform_3(%arg0: i32) -> (i32, i32) {
    %c0_i32 = arith.constant 0 : i32
    %c0_i32_0 = arith.constant 0 : i32
    %c0_i32_1 = arith.constant 0 : i32
    return %c0_i32, %c0_i32_0 : i32, i32
  }
  func.func @transform_4(%arg0: i32) -> (i32, i32) {
    %c0_i32 = arith.constant 0 : i32
    %c0_i32_0 = arith.constant 0 : i32
    %c0_i32_1 = arith.constant 0 : i32
    return %c0_i32, %c0_i32_0 : i32, i32
  }
  func.func @transform_5(%arg0: i32) -> (i32, i32, i32) {
    %c0_i32 = arith.constant 0 : i32
    %c0_i32_0 = arith.constant 0 : i32
    %c0_i32_1 = arith.constant 0 : i32
    %c0_i32_2 = arith.constant 0 : i32
    return %c0_i32, %c0_i32_0, %c0_i32_1 : i32, i32, i32
  }
  func.func @transform_6(%arg0: i32) -> (i32, i32) {
    %c0_i32 = arith.constant 0 : i32
    %c0_i32_0 = arith.constant 0 : i32
    %c0_i32_1 = arith.constant 0 : i32
    return %c0_i32, %c0_i32_0 : i32, i32
  }
  func.func @transform_7(%arg0: i32) -> (i32, i32) {
    %c0_i32 = arith.constant 0 : i32
    %c0_i32_0 = arith.constant 0 : i32
    %c0_i32_1 = arith.constant 0 : i32
    return %c0_i32, %c0_i32_0 : i32, i32
  }
  func.func @transform_8(%arg0: i32) -> (i32, i32) {
    %c0_i32 = arith.constant 0 : i32
    %c0_i32_0 = arith.constant 0 : i32
    %c0_i32_1 = arith.constant 0 : i32
    return %c0_i32, %c0_i32_0 : i32, i32
  }
  func.func @transform_9(%arg0: i32) -> (i32, i32) {
    %c0_i32 = arith.constant 0 : i32
    %c0_i32_0 = arith.constant 0 : i32
    %c0_i32_1 = arith.constant 0 : i32
    return %c0_i32, %c0_i32_0 : i32, i32
  }
  func.func @transform_10(%arg0: i32) -> (i32, i32, i32) {
    %c0_i32 = arith.constant 0 : i32
    %c0_i32_0 = arith.constant 0 : i32
    %c0_i32_1 = arith.constant 0 : i32
    %c0_i32_2 = arith.constant 0 : i32
    return %c0_i32, %c0_i32_0, %c0_i32_1 : i32, i32, i32
  }
  func.func @transform_11(%arg0: i32) -> (i32, i32, i32) {
    %c0_i32 = arith.constant 0 : i32
    %c0_i32_0 = arith.constant 0 : i32
    %c0_i32_1 = arith.constant 0 : i32
    %c0_i32_2 = arith.constant 0 : i32
    return %c0_i32, %c0_i32_0, %c0_i32_1 : i32, i32, i32
  }
  func.func @transform_12(%arg0: i32) -> (i32, i32, i32) {
    %c0_i32 = arith.constant 0 : i32
    %c0_i32_0 = arith.constant 0 : i32
    %c0_i32_1 = arith.constant 0 : i32
    %c0_i32_2 = arith.constant 0 : i32
    return %c0_i32, %c0_i32_0, %c0_i32_1 : i32, i32, i32
  }
  func.func @transform_13(%arg0: i32) -> (i32, i32, i32) {
    %c0_i32 = arith.constant 0 : i32
    %c0_i32_0 = arith.constant 0 : i32
    %c0_i32_1 = arith.constant 0 : i32
    %c0_i32_2 = arith.constant 0 : i32
    return %c0_i32, %c0_i32_0, %c0_i32_1 : i32, i32, i32
  }
  func.func @transform_14(%arg0: i32) -> (i32, i32) {
    %c0_i32 = arith.constant 0 : i32
    %c0_i32_0 = arith.constant 0 : i32
    %c0_i32_1 = arith.constant 0 : i32
    return %c0_i32, %c0_i32_0 : i32, i32
  }
  func.func @transform_15(%arg0: i32) -> (i32, i32) {
    %c0_i32 = arith.constant 0 : i32
    %c0_i32_0 = arith.constant 0 : i32
    %c0_i32_1 = arith.constant 0 : i32
    return %c0_i32, %c0_i32_0 : i32, i32
  }
  func.func @transform_16(%arg0: i32) -> (i32, i32) {
    %c0_i32 = arith.constant 0 : i32
    %c0_i32_0 = arith.constant 0 : i32
    %c0_i32_1 = arith.constant 0 : i32
    return %c0_i32, %c0_i32_0 : i32, i32
  }
  func.func @transform_17(%arg0: i32) -> (i32, i32) {
    %c0_i32 = arith.constant 0 : i32
    %c0_i32_0 = arith.constant 0 : i32
    %c0_i32_1 = arith.constant 0 : i32
    return %c0_i32, %c0_i32_0 : i32, i32
  }
  func.func @transform_18(%arg0: i32) -> (i32, i32) {
    %c0_i32 = arith.constant 0 : i32
    %c0_i32_0 = arith.constant 0 : i32
    %c0_i32_1 = arith.constant 0 : i32
    return %c0_i32, %c0_i32_0 : i32, i32
  }
  func.func @transform_19(%arg0: i32) -> (i32, i32) {
    %c0_i32 = arith.constant 0 : i32
    %c0_i32_0 = arith.constant 0 : i32
    %c0_i32_1 = arith.constant 0 : i32
    return %c0_i32, %c0_i32_0 : i32, i32
  }
  func.func @transform_20(%arg0: i32) -> (i32, i32) {
    %c0_i32 = arith.constant 0 : i32
    %c0_i32_0 = arith.constant 0 : i32
    %c0_i32_1 = arith.constant 0 : i32
    return %c0_i32, %c0_i32_0 : i32, i32
  }
}

</mosaic_0001>

<llo_original>
// kernel: neg.12
$region0: #{neg.12}
  #allocation0 [shape = 's32[1]{0}', space=sflag, size = 0x4, scoped, tag = 'scoped memory for neg.12']
  %s0 = inlined_call_operand.vmem [shape: f32[16], index: 0, kind: input, shape index: {}]
  %s1 = inlined_call_operand.vmem [shape: f32[16], index: 1, kind: output, shape index: {}]
  %v2 = vld [vmem:[%s0] sm:$0x1]
  %3 = xla_tuple %v2
  %4 = xla_tuple %3
  %v5 = vxor.u32 %v2, 2147483648
  %6 = xla_tuple %v5
  %7 = vst [vmem:[%s1] sm:$0x1] %v5

// kernel: gnn_forward.1
$region0: #{gnn_forward.1}
  #allocation0 [shape = 'u32[]', space=smem, size = 0x4, offset = 0x4, fixed_abs, tag = 'smem constant byte address 0x4 - core index']
  #allocation1 [shape = 'u32[144,128]{1,0:T(1,128)}', space=vmem, size = 0x12000, scoped, tag = 'internal scratch']
  %s0 = inlined_call_operand.vmem [shape: f32[16,8], index: 0, kind: input, shape index: {}]
  %s1 = inlined_call_operand.vmem [shape: f32[16,8], index: 1, kind: input, shape index: {}]
  %s2 = inlined_call_operand.vmem [shape: f32[8,16], index: 2, kind: input, shape index: {}]
  %s3 = inlined_call_operand.vmem [shape: f32[8,32], index: 3, kind: input, shape index: {}]
  %s4 = inlined_call_operand.vmem [shape: f32[16,64], index: 4, kind: input, shape index: {}]
  %s5 = inlined_call_operand.vmem [shape: f32[2,32,64], index: 5, kind: input, shape index: {}]
  %s6 = inlined_call_operand.vmem [shape: f32[64,64], index: 6, kind: input, shape index: {}]
  %s7 = inlined_call_operand.vmem [shape: f32[1,64], index: 7, kind: input, shape index: {}, may-alias: {7,17}]
  %s8 = inlined_call_operand.vmem [shape: f32[64,32], index: 8, kind: input, shape index: {}]
  %s9 = inlined_call_operand.vmem [shape: f32[1,32], index: 9, kind: input, shape index: {}]
  %s10 = inlined_call_operand.vmem [shape: f32[6,32,32], index: 10, kind: input, shape index: {}]
  %s11 = inlined_call_operand.vmem [shape: f32[6,32,32], index: 11, kind: input, shape index: {}]
  %s12 = inlined_call_operand.vmem [shape: f32[6,1,32], index: 12, kind: input, shape index: {}]
  %s13 = inlined_call_operand.vmem [shape: f32[6,1,32], index: 13, kind: input, shape index: {}]
  %s14 = inlined_call_operand.vmem [shape: f32[32,64], index: 14, kind: input, shape index: {}]
  %s15 = inlined_call_operand.vmem [shape: f32[8,64], index: 15, kind: input, shape index: {}]
  %s16 = inlined_call_operand.vmem [shape: f32[64,64], index: 16, kind: input, shape index: {}]
  %s17 = inlined_call_operand.vmem [shape: f32[1,64], index: 17, kind: input, shape index: {}, may-alias: {7,17}]
  %s18 = inlined_call_operand.vmem [shape: f32[64,2], index: 18, kind: input, shape index: {}]
  %s19 = inlined_call_operand.vmem [shape: f32[1,2], index: 19, kind: input, shape index: {}]
  %s20 = inlined_call_operand.vmem [shape: f32[8,2], index: 20, kind: output, shape index: {}]
  %s21 = sld [smem:[#allocation0]]
  $region90: #{gnn_forward.1} parent=0
    _
  %s23 = ssub.s32 1, %s21
  %s24 = scalar_select 0, %s23, %s21
  // Predicated region
  $region2: #{gnn_forward.1} parent=0 // pred_check
    _
  $region3: #{gnn_forward.1} parent=0 // pred_check_branch
    %26 = sbr.rel (0) target = $region5
  $region4: #{gnn_forward.1} parent=0 // pred_region
    _
  $region5: #{gnn_forward.1} parent=0 // pred_fallthru
    _
  // Predicated region
  $region6: #{gnn_forward.1} parent=0 // pred_check
    _
  $region7: #{gnn_forward.1} parent=0 // pred_check_branch
    %28 = sbr.rel (0) target = $region9
  $region8: #{gnn_forward.1} parent=0 // pred_region
    _
  $region9: #{gnn_forward.1} parent=0 // pred_fallthru
    _
  // Predicated region
  $region10: #{gnn_forward.1} parent=0 // pred_check
    _
  $region11: #{gnn_forward.1} parent=0 // pred_check_branch
    %30 = sbr.rel (0) target = $region13
  $region12: #{gnn_forward.1} parent=0 // pred_region
    _
  $region13: #{gnn_forward.1} parent=0 // pred_fallthru
    _
  // Predicated region
  $region14: #{gnn_forward.1} parent=0 // pred_check
    _
  $region15: #{gnn_forward.1} parent=0 // pred_check_branch
    %32 = sbr.rel (0) target = $region17
  $region16: #{gnn_forward.1} parent=0 // pred_region
    _
  $region17: #{gnn_forward.1} parent=0 // pred_fallthru
    _
  // Predicated region
  $region18: #{gnn_forward.1} parent=0 // pred_check
    _
  $region19: #{gnn_forward.1} parent=0 // pred_check_branch
    %34 = sbr.rel (0) target = $region21
  $region20: #{gnn_forward.1} parent=0 // pred_region
    _
  $region21: #{gnn_forward.1} parent=0 // pred_fallthru
    _
  // Predicated region
  $region22: #{gnn_forward.1} parent=0 // pred_check
    _
  $region23: #{gnn_forward.1} parent=0 // pred_check_branch
    %36 = sbr.rel (0) target = $region25
  $region24: #{gnn_forward.1} parent=0 // pred_region
    _
  $region25: #{gnn_forward.1} parent=0 // pred_fallthru
    _
  // Predicated region
  $region26: #{gnn_forward.1} parent=0 // pred_check
    _
  $region27: #{gnn_forward.1} parent=0 // pred_check_branch
    %38 = sbr.rel (0) target = $region29
  $region28: #{gnn_forward.1} parent=0 // pred_region
    _
  $region29: #{gnn_forward.1} parent=0 // pred_fallthru
    _
  // Predicated region
  $region30: #{gnn_forward.1} parent=0 // pred_check
    _
  $region31: #{gnn_forward.1} parent=0 // pred_check_branch
    %40 = sbr.rel (0) target = $region33
  $region32: #{gnn_forward.1} parent=0 // pred_region
    _
  $region33: #{gnn_forward.1} parent=0 // pred_fallthru
    _
  // Predicated region
  $region34: #{gnn_forward.1} parent=0 // pred_check
    _
  $region35: #{gnn_forward.1} parent=0 // pred_check_branch
    %42 = sbr.rel (0) target = $region37
  $region36: #{gnn_forward.1} parent=0 // pred_region
    _
  $region37: #{gnn_forward.1} parent=0 // pred_fallthru
    _
  // Predicated region
  $region38: #{gnn_forward.1} parent=0 // pred_check
    _
  $region39: #{gnn_forward.1} parent=0 // pred_check_branch
    %44 = sbr.rel (0) target = $region41
  $region40: #{gnn_forward.1} parent=0 // pred_region
    _
  $region41: #{gnn_forward.1} parent=0 // pred_fallthru
    _
  // Predicated region
  $region42: #{gnn_forward.1} parent=0 // pred_check
    _
  $region43: #{gnn_forward.1} parent=0 // pred_check_branch
    %46 = sbr.rel (0) target = $region45
  $region44: #{gnn_forward.1} parent=0 // pred_region
    _
  $region45: #{gnn_forward.1} parent=0 // pred_fallthru
    _
  // Predicated region
  $region46: #{gnn_forward.1} parent=0 // pred_check
    _
  $region47: #{gnn_forward.1} parent=0 // pred_check_branch
    %48 = sbr.rel (0) target = $region49
  $region48: #{gnn_forward.1} parent=0 // pred_region
    _
  $region49: #{gnn_forward.1} parent=0 // pred_fallthru
    _
  // Predicated region
  $region50: #{gnn_forward.1} parent=0 // pred_check
    _
  $region51: #{gnn_forward.1} parent=0 // pred_check_branch
    %50 = sbr.rel (0) target = $region53
  $region52: #{gnn_forward.1} parent=0 // pred_region
    _
  $region53: #{gnn_forward.1} parent=0 // pred_fallthru
    _
  // Predicated region
  $region54: #{gnn_forward.1} parent=0 // pred_check
    _
  $region55: #{gnn_forward.1} parent=0 // pred_check_branch
    %52 = sbr.rel (0) target = $region57
  $region56: #{gnn_forward.1} parent=0 // pred_region
    _
  $region57: #{gnn_forward.1} parent=0 // pred_fallthru
    _
  // Predicated region
  $region58: #{gnn_forward.1} parent=0 // pred_check
    _
  $region59: #{gnn_forward.1} parent=0 // pred_check_branch
    %54 = sbr.rel (0) target = $region61
  $region60: #{gnn_forward.1} parent=0 // pred_region
    _
  $region61: #{gnn_forward.1} parent=0 // pred_fallthru
    _
  // Predicated region
  $region62: #{gnn_forward.1} parent=0 // pred_check
    _
  $region63: #{gnn_forward.1} parent=0 // pred_check_branch
    %56 = sbr.rel (0) target = $region65
  $region64: #{gnn_forward.1} parent=0 // pred_region
    _
  $region65: #{gnn_forward.1} parent=0 // pred_fallthru
    _
  // Predicated region
  $region66: #{gnn_forward.1} parent=0 // pred_check
    _
  $region67: #{gnn_forward.1} parent=0 // pred_check_branch
    %58 = sbr.rel (0) target = $region69
  $region68: #{gnn_forward.1} parent=0 // pred_region
    _
  $region69: #{gnn_forward.1} parent=0 // pred_fallthru
    _
  // Predicated region
  $region70: #{gnn_forward.1} parent=0 // pred_check
    _
  $region71: #{gnn_forward.1} parent=0 // pred_check_branch
    %60 = sbr.rel (0) target = $region73
  $region72: #{gnn_forward.1} parent=0 // pred_region
    _
  $region73: #{gnn_forward.1} parent=0 // pred_fallthru
    _
  // Predicated region
  $region74: #{gnn_forward.1} parent=0 // pred_check
    _
  $region75: #{gnn_forward.1} parent=0 // pred_check_branch
    %62 = sbr.rel (0) target = $region77
  $region76: #{gnn_forward.1} parent=0 // pred_region
    _
  $region77: #{gnn_forward.1} parent=0 // pred_fallthru
    _
  // Predicated region
  $region78: #{gnn_forward.1} parent=0 // pred_check
    _
  $region79: #{gnn_forward.1} parent=0 // pred_check_branch
    %64 = sbr.rel (0) target = $region81
  $region80: #{gnn_forward.1} parent=0 // pred_region
    _
  $region81: #{gnn_forward.1} parent=0 // pred_fallthru
    _
  %v65 = vld [vmem:[%s0] sm:$0xff]
  %v66 = vld [vmem:[%s0 + $0x8] sm:$0xff]
  %v67 = vld [vmem:[%s1] sm:$0xff]
  %v68 = vld [vmem:[%s1 + $0x8] sm:$0xff]
  %v69 = vld [vmem:[%s2] sm:$0xff]
  %v70 = vld [vmem:[%s3] sm:$0xff]
  %v71 = vld [vmem:[%s4] sm:$0xff]
  %v72 = vld [vmem:[%s4 + $0x8] sm:$0xff]
  %v73 = vld [vmem:[%s5] sm:$0xff]
  %v74 = vld [vmem:[%s5 + $0x8] sm:$0xff]
  %v75 = vld [vmem:[%s5 + $0x10] sm:$0xff]
  %v76 = vld [vmem:[%s5 + $0x18] sm:$0xff]
  %s77 = scalar_lea.vmem %s5, 32
  %v78 = vld [vmem:[%s77] sm:$0xff]
  %v79 = vld [vmem:[%s77 + $0x8] sm:$0xff]
  %v80 = vld [vmem:[%s77 + $0x10] sm:$0xff]
  %v81 = vld [vmem:[%s77 + $0x18] sm:$0xff]
  %v82 = vld [vmem:[%s6] sm:$0xff]
  %v83 = vld [vmem:[%s6 + $0x8] sm:$0xff]
  %v84 = vld [vmem:[%s6 + $0x10] sm:$0xff]
  %v85 = vld [vmem:[%s6 + $0x18] sm:$0xff]
  %v86 = vld [vmem:[%s6 + $0x20] sm:$0xff]
  %v87 = vld [vmem:[%s6 + $0x28] sm:$0xff]
  %v88 = vld [vmem:[%s6 + $0x30] sm:$0xff]
  %v89 = vld [vmem:[%s6 + $0x38] sm:$0xff]
  %v90 = vld [vmem:[%s7] sm:$0x1]
  %v91 = vld [vmem:[%s8] sm:$0xff]
  %v92 = vld [vmem:[%s8 + $0x8] sm:$0xff]
  %v93 = vld [vmem:[%s8 + $0x10] sm:$0xff]
  %v94 = vld [vmem:[%s8 + $0x18] sm:$0xff]
  %v95 = vld [vmem:[%s8 + $0x20] sm:$0xff]
  %v96 = vld [vmem:[%s8 + $0x28] sm:$0xff]
  %v97 = vld [vmem:[%s8 + $0x30] sm:$0xff]
  %v98 = vld [vmem:[%s8 + $0x38] sm:$0xff]
  %v99 = vld [vmem:[%s9] sm:$0x1]
  %vm100 = vcmask 64512
  %v102 = vsel %vm100, %v65, 0
  %v105 = vsel %vm100, %v66, 0
  %107 = vmatprep.subr.mxu0 0.0
  %108 = vmatpush1.msra.mxu0 0.0
  %109 = vmatprep.subr.mxu0 0.0
  %110 = vmatpush1.msra.mxu0 0.0
  %111 = vmatprep.subr.mxu0 0.0
  %112 = vmatpush1.msra.mxu0 0.0
  %113 = vmatprep.subr.mxu0 0.0
  %114 = vmatpush1.msra.mxu0 0.0
  %115 = vmatprep.subr.mxu0 0.0
  %116 = vmatpush1.msra.mxu0 0.0
  %117 = vmatprep.subr.mxu0 0.0
  %118 = vmatpush1.msra.mxu0 0.0
  %119 = vmatprep.subr.mxu0 0.0
  %120 = vmatpush1.msra.mxu0 0.0
  %121 = vmatprep.subr.mxu0 0.0
  %122 = vmatpush1.msra.mxu0 0.0
  %123 = vmatprep.subr.mxu0 0.0
  %124 = vmatpush1.msra.mxu0 0.0
  %125 = vmatprep.subr.mxu0 0.0
  %126 = vmatpush1.msra.mxu0 0.0
  %127 = vmatprep.subr.mxu0 0.0
  %128 = vmatpush1.msra.mxu0 0.0
  %129 = vmatprep.subr.mxu0 0.0
  %130 = vmatpush1.msra.mxu0 0.0
  %131 = vmatprep.subr.mxu0 0.0
  %132 = vmatpush1.msra.mxu0 0.0
  %133 = vmatprep.subr.mxu0 0.0
  %134 = vmatpush1.msra.mxu0 0.0
  %135 = vmatprep.subr.mxu0 0.0
  %136 = vmatpush1.msra.mxu0 0.0
  %137 = vmatprep.subr.mxu0 0.0
  %138 = vmatpush1.msra.mxu0 0.0
  %139 = vmatprep.subr.mxu0 0.0
  %140 = vmatpush1.msra.mxu0 0.0
  %141 = vmatprep.subr.mxu0 0.0
  %142 = vmatpush1.msra.mxu0 0.0
  %143 = vmatprep.subr.mxu0 0.0
  %144 = vmatpush1.msra.mxu0 0.0
  %145 = vmatprep.subr.mxu0 0.0
  %146 = vmatpush1.msra.mxu0 0.0
  %147 = vmatprep.subr.mxu0 0.0
  %148 = vmatpush1.msra.mxu0 0.0
  %149 = vmatprep.subr.mxu0 0.0
  %150 = vmatpush1.msra.mxu0 0.0
  %151 = vmatprep.subr.mxu0 0.0
  %152 = vmatpush1.msra.mxu0 0.0
  %153 = vmatprep.subr.mxu0 0.0
  %154 = vmatpush1.msra.mxu0 0.0
  %155 = vmatprep.subr.mxu0 0.0
  %156 = vmatpush1.msra.mxu0 0.0
  %157 = vmatprep.subr.mxu0 0.0
  %158 = vmatpush1.msra.mxu0 0.0
  %159 = vmatprep.subr.mxu0 0.0
  %160 = vmatpush1.msra.mxu0 0.0
  %161 = vmatprep.subr.mxu0 0.0
  %162 = vmatpush1.msra.mxu0 0.0
  %163 = vmatprep.subr.mxu0 0.0
  %164 = vmatpush1.msra.mxu0 0.0
  %165 = vmatprep.subr.mxu0 0.0
  %166 = vmatpush1.msra.mxu0 0.0
  %167 = vmatprep.subr.mxu0 0.0
  %168 = vmatpush1.msra.mxu0 0.0
  %169 = vmatprep.subr.mxu0 0.0
  %170 = vmatpush1.msra.mxu0 0.0
  %171 = vmatprep.mubr.f32.mxu0 0.0
  %172 = vmatmul.mubr.f32.gmra.mrb[0].mxu0 %v102
  %v173 = vpop.f32.mrb[0].mxu0
  %v174 = vadd.f32 0.0, %v173
  %v175 = vpop.f32.mrb[0].mxu0
  %176 = vmatprep.mubr.f32.mxu0 0.0
  %177 = vmatmul.mubr.f32.gmra.mrb[0].mxu0 %v105
  %v178 = vpop.f32.mrb[0].mxu0
  %v179 = vadd.f32 0.0, %v178
  %v180 = vpop.f32.mrb[0].mxu0
  %181 = vdwg.mxu0
  %v183 = vsel %vm100, %v67, 0
  %v186 = vsel %vm100, %v68, 0
  %188 = vmatprep.subr.mxu0 0.0
  %189 = vmatpush1.msra.mxu0 0.0
  %190 = vmatprep.subr.mxu0 0.0
  %191 = vmatpush1.msra.mxu0 0.0
  %192 = vmatprep.subr.mxu0 0.0
  %193 = vmatpush1.msra.mxu0 0.0
  %194 = vmatprep.subr.mxu0 0.0
  %195 = vmatpush1.msra.mxu0 0.0
  %196 = vmatprep.subr.mxu0 0.0
  %197 = vmatpush1.msra.mxu0 0.0
  %198 = vmatprep.subr.mxu0 0.0
  %199 = vmatpush1.msra.mxu0 0.0
  %200 = vmatprep.subr.mxu0 0.0
  %201 = vmatpush1.msra.mxu0 0.0
  %202 = vmatprep.subr.mxu0 0.0
  %203 = vmatpush1.msra.mxu0 0.0
  %204 = vmatprep.subr.mxu0 0.0
  %205 = vmatpush1.msra.mxu0 0.0
  %206 = vmatprep.subr.mxu0 0.0
  %207 = vmatpush1.msra.mxu0 0.0
  %208 = vmatprep.subr.mxu0 0.0
  %209 = vmatpush1.msra.mxu0 0.0
  %210 = vmatprep.subr.mxu0 0.0
  %211 = vmatpush1.msra.mxu0 0.0
  %212 = vmatprep.subr.mxu0 0.0
  %213 = vmatpush1.msra.mxu0 0.0
  %214 = vmatprep.subr.mxu0 0.0
  %215 = vmatpush1.msra.mxu0 0.0
  %216 = vmatprep.subr.mxu0 0.0
  %217 = vmatpush1.msra.mxu0 0.0
  %218 = vmatprep.subr.mxu0 0.0
  %219 = vmatpush1.msra.mxu0 0.0
  %220 = vmatprep.subr.mxu0 0.0
  %221 = vmatpush1.msra.mxu0 0.0
  %222 = vmatprep.subr.mxu0 0.0
  %223 = vmatpush1.msra.mxu0 0.0
  %224 = vmatprep.subr.mxu0 0.0
  %225 = vmatpush1.msra.mxu0 0.0
  %226 = vmatprep.subr.mxu0 0.0
  %227 = vmatpush1.msra.mxu0 0.0
  %228 = vmatprep.subr.mxu0 0.0
  %229 = vmatpush1.msra.mxu0 0.0
  %230 = vmatprep.subr.mxu0 0.0
  %231 = vmatpush1.msra.mxu0 0.0
  %232 = vmatprep.subr.mxu0 0.0
  %233 = vmatpush1.msra.mxu0 0.0
  %234 = vmatprep.subr.mxu0 0.0
  %235 = vmatpush1.msra.mxu0 0.0
  %236 = vmatprep.subr.mxu0 0.0
  %237 = vmatpush1.msra.mxu0 0.0
  %238 = vmatprep.subr.mxu0 0.0
  %239 = vmatpush1.msra.mxu0 0.0
  %240 = vmatprep.subr.mxu0 0.0
  %241 = vmatpush1.msra.mxu0 0.0
  %242 = vmatprep.subr.mxu0 0.0
  %243 = vmatpush1.msra.mxu0 0.0
  %244 = vmatprep.subr.mxu0 0.0
  %245 = vmatpush1.msra.mxu0 0.0
  %246 = vmatprep.subr.mxu0 0.0
  %247 = vmatpush1.msra.mxu0 0.0
  %248 = vmatprep.subr.mxu0 0.0
  %249 = vmatpush1.msra.mxu0 0.0
  %250 = vmatprep.subr.mxu0 0.0
  %251 = vmatpush1.msra.mxu0 0.0
  %252 = vmatprep.mubr.f32.mxu0 0.0
  %253 = vmatmul.mubr.f32.gmra.mrb[0].mxu0 %v183
  %v254 = vpop.f32.mrb[0].mxu0
  %v255 = vadd.f32 0.0, %v254
  %v256 = vpop.f32.mrb[0].mxu0
  %257 = vmatprep.mubr.f32.mxu0 0.0
  %258 = vmatmul.mubr.f32.gmra.mrb[0].mxu0 %v186
  %v259 = vpop.f32.mrb[0].mxu0
  %v260 = vadd.f32 0.0, %v259
  %v261 = vpop.f32.mrb[0].mxu0
  %262 = vdwg.mxu0
  %vm263 = vcmask 261120
  %v265 = vsel %vm263, %v255, 0
  %v268 = vsel %vm263, %v260, 0
  %270 = vmatprep.subr.mxu0 0.0
  %271 = vmatpush1.msra.mxu0 %v78
  %272 = vmatprep.subr.mxu0 0.0
  %273 = vmatpush1.msra.mxu0 %v79
  %274 = vmatprep.subr.mxu0 0.0
  %275 = vmatpush1.msra.mxu0 %v80
  %276 = vmatprep.subr.mxu0 0.0
  %277 = vmatpush1.msra.mxu0 %v81
  %278 = vmatprep.subr.mxu0 0.0
  %279 = vmatpush1.msra.mxu0 0.0
  %280 = vmatprep.subr.mxu0 0.0
  %281 = vmatpush1.msra.mxu0 0.0
  %282 = vmatprep.subr.mxu0 0.0
  %283 = vmatpush1.msra.mxu0 0.0
  %284 = vmatprep.subr.mxu0 0.0
  %285 = vmatpush1.msra.mxu0 0.0
  %286 = vmatprep.subr.mxu0 0.0
  %287 = vmatpush1.msra.mxu0 0.0
  %288 = vmatprep.subr.mxu0 0.0
  %289 = vmatpush1.msra.mxu0 0.0
  %290 = vmatprep.subr.mxu0 0.0
  %291 = vmatpush1.msra.mxu0 0.0
  %292 = vmatprep.subr.mxu0 0.0
  %293 = vmatpush1.msra.mxu0 0.0
  %294 = vmatprep.subr.mxu0 0.0
  %295 = vmatpush1.msra.mxu0 0.0
  %296 = vmatprep.subr.mxu0 0.0
  %297 = vmatpush1.msra.mxu0 0.0
  %298 = vmatprep.subr.mxu0 0.0
  %299 = vmatpush1.msra.mxu0 0.0
  %300 = vmatprep.subr.mxu0 0.0
  %301 = vmatpush1.msra.mxu0 0.0
  %302 = vmatprep.subr.mxu0 0.0
  %303 = vmatpush1.msra.mxu0 0.0
  %304 = vmatprep.subr.mxu0 0.0
  %305 = vmatpush1.msra.mxu0 0.0
  %306 = vmatprep.subr.mxu0 0.0
  %307 = vmatpush1.msra.mxu0 0.0
  %308 = vmatprep.subr.mxu0 0.0
  %309 = vmatpush1.msra.mxu0 0.0
  %310 = vmatprep.subr.mxu0 0.0
  %311 = vmatpush1.msra.mxu0 0.0
  %312 = vmatprep.subr.mxu0 0.0
  %313 = vmatpush1.msra.mxu0 0.0
  %314 = vmatprep.subr.mxu0 0.0
  %315 = vmatpush1.msra.mxu0 0.0
  %316 = vmatprep.subr.mxu0 0.0
  %317 = vmatpush1.msra.mxu0 0.0
  %318 = vmatprep.subr.mxu0 0.0
  %319 = vmatpush1.msra.mxu0 0.0
  %320 = vmatprep.subr.mxu0 0.0
  %321 = vmatpush1.msra.mxu0 0.0
  %322 = vmatprep.subr.mxu0 0.0
  %323 = vmatpush1.msra.mxu0 0.0
  %324 = vmatprep.subr.mxu0 0.0
  %325 = vmatpush1.msra.mxu0 0.0
  %326 = vmatprep.subr.mxu0 0.0
  %327 = vmatpush1.msra.mxu0 0.0
  %328 = vmatprep.subr.mxu0 0.0
  %329 = vmatpush1.msra.mxu0 0.0
  %330 = vmatprep.subr.mxu0 0.0
  %331 = vmatpush1.msra.mxu0 0.0
  %332 = vmatprep.subr.mxu0 0.0
  %333 = vmatpush1.msra.mxu0 0.0
  %334 = vmatprep.mubr.f32.mxu0 0.0
  %335 = vmatmul.mubr.f32.gmra.mrb[0].mxu0 %v265
  %v336 = vpop.f32.mrb[0].mxu0
  %v337 = vadd.f32 0.0, %v336
  %v338 = vpop.f32.mrb[0].mxu0
  %339 = vmatprep.mubr.f32.mxu0 0.0
  %340 = vmatmul.mubr.f32.gmra.mrb[0].mxu0 %v268
  %v341 = vpop.f32.mrb[0].mxu0
  %v342 = vadd.f32 0.0, %v341
  %v343 = vpop.f32.mrb[0].mxu0
  %344 = vdwg.mxu0
  %v346 = vsel %vm263, %v174, 0
  %v349 = vsel %vm263, %v179, 0
  %351 = vmatprep.subr.mxu0 0.0
  %352 = vmatpush1.msra.mxu0 %v73
  %353 = vmatprep.subr.mxu0 0.0
  %354 = vmatpush1.msra.mxu0 %v74
  %355 = vmatprep.subr.mxu0 0.0
  %356 = vmatpush1.msra.mxu0 %v75
  %357 = vmatprep.subr.mxu0 0.0
  %358 = vmatpush1.msra.mxu0 %v76
  %359 = vmatprep.subr.mxu0 0.0
  %360 = vmatpush1.msra.mxu0 0.0
  %361 = vmatprep.subr.mxu0 0.0
  %362 = vmatpush1.msra.mxu0 0.0
  %363 = vmatprep.subr.mxu0 0.0
  %364 = vmatpush1.msra.mxu0 0.0
  %365 = vmatprep.subr.mxu0 0.0
  %366 = vmatpush1.msra.mxu0 0.0
  %367 = vmatprep.subr.mxu0 0.0
  %368 = vmatpush1.msra.mxu0 0.0
  %369 = vmatprep.subr.mxu0 0.0
  %370 = vmatpush1.msra.mxu0 0.0
  %371 = vmatprep.subr.mxu0 0.0
  %372 = vmatpush1.msra.mxu0 0.0
  %373 = vmatprep.subr.mxu0 0.0
  %374 = vmatpush1.msra.mxu0 0.0
  %375 = vmatprep.subr.mxu0 0.0
  %376 = vmatpush1.msra.mxu0 0.0
  %377 = vmatprep.subr.mxu0 0.0
  %378 = vmatpush1.msra.mxu0 0.0
  %379 = vmatprep.subr.mxu0 0.0
  %380 = vmatpush1.msra.mxu0 0.0
  %381 = vmatprep.subr.mxu0 0.0
  %382 = vmatpush1.msra.mxu0 0.0
  %383 = vmatprep.subr.mxu0 0.0
  %384 = vmatpush1.msra.mxu0 0.0
  %385 = vmatprep.subr.mxu0 0.0
  %386 = vmatpush1.msra.mxu0 0.0
  %387 = vmatprep.subr.mxu0 0.0
  %388 = vmatpush1.msra.mxu0 0.0
  %389 = vmatprep.subr.mxu0 0.0
  %390 = vmatpush1.msra.mxu0 0.0
  %391 = vmatprep.subr.mxu0 0.0
  %392 = vmatpush1.msra.mxu0 0.0
  %393 = vmatprep.subr.mxu0 0.0
  %394 = vmatpush1.msra.mxu0 0.0
  %395 = vmatprep.subr.mxu0 0.0
  %396 = vmatpush1.msra.mxu0 0.0
  %397 = vmatprep.subr.mxu0 0.0
  %398 = vmatpush1.msra.mxu0 0.0
  %399 = vmatprep.subr.mxu0 0.0
  %400 = vmatpush1.msra.mxu0 0.0
  %401 = vmatprep.subr.mxu0 0.0
  %402 = vmatpush1.msra.mxu0 0.0
  %403 = vmatprep.subr.mxu0 0.0
  %404 = vmatpush1.msra.mxu0 0.0
  %405 = vmatprep.subr.mxu0 0.0
  %406 = vmatpush1.msra.mxu0 0.0
  %407 = vmatprep.subr.mxu0 0.0
  %408 = vmatpush1.msra.mxu0 0.0
  %409 = vmatprep.subr.mxu0 0.0
  %410 = vmatpush1.msra.mxu0 0.0
  %411 = vmatprep.subr.mxu0 0.0
  %412 = vmatpush1.msra.mxu0 0.0
  %413 = vmatprep.subr.mxu0 0.0
  %414 = vmatpush1.msra.mxu0 0.0
  %415 = vmatprep.mubr.f32.mxu0 0.0
  %416 = vmatmul.mubr.f32.gmra.mrb[0].mxu0 %v346
  %v417 = vpop.f32.mrb[0].mxu0
  %v418 = vadd.f32 %v337, %v417
  %v419 = vpop.f32.mrb[0].mxu0
  %420 = vmatprep.mubr.f32.mxu0 0.0
  %421 = vmatmul.mubr.f32.gmra.mrb[0].mxu0 %v349
  %v422 = vpop.f32.mrb[0].mxu0
  %v423 = vadd.f32 %v342, %v422
  %v424 = vpop.f32.mrb[0].mxu0
  %425 = vdwg.mxu0
  %v426 = vadd.f32 %v418, %v71
  %v427 = vadd.f32 %v423, %v72
  %v428 = vmax.f32 %v426, 0.0
  %v429 = vmax.f32 %v427, 0.0
  %v431 = vlaneseq
  %v432 = vshrl.u32 %v431, 7
  %v433 = vsub.s32 0, %v432
  %v434 = vrot.slane %v90, %v433
  %vm436 = vcmask 523264
  %v438 = vsel %vm436, %v428, 0
  %v441 = vsel %vm436, %v429, 0
  %443 = vmatprep.subr.mxu0 0.0
  %444 = vmatpush1.msra.mxu0 %v82
  %445 = vmatprep.subr.mxu0 0.0
  %446 = vmatpush1.msra.mxu0 %v83
  %447 = vmatprep.subr.mxu0 0.0
  %448 = vmatpush1.msra.mxu0 %v84
  %449 = vmatprep.subr.mxu0 0.0
  %450 = vmatpush1.msra.mxu0 %v85
  %451 = vmatprep.subr.mxu0 0.0
  %452 = vmatpush1.msra.mxu0 %v86
  %453 = vmatprep.subr.mxu0 0.0
  %454 = vmatpush1.msra.mxu0 %v87
  %455 = vmatprep.subr.mxu0 0.0
  %456 = vmatpush1.msra.mxu0 %v88
  %457 = vmatprep.subr.mxu0 0.0
  %458 = vmatpush1.msra.mxu0 %v89
  %459 = vmatprep.subr.mxu0 0.0
  %460 = vmatpush1.msra.mxu0 0.0
  %461 = vmatprep.subr.mxu0 0.0
  %462 = vmatpush1.msra.mxu0 0.0
  %463 = vmatprep.subr.mxu0 0.0
  %464 = vmatpush1.msra.mxu0 0.0
  %465 = vmatprep.subr.mxu0 0.0
  %466 = vmatpush1.msra.mxu0 0.0
  %467 = vmatprep.subr.mxu0 0.0
  %468 = vmatpush1.msra.mxu0 0.0
  %469 = vmatprep.subr.mxu0 0.0
  %470 = vmatpush1.msra.mxu0 0.0
  %471 = vmatprep.subr.mxu0 0.0
  %472 = vmatpush1.msra.mxu0 0.0
  %473 = vmatprep.subr.mxu0 0.0
  %474 = vmatpush1.msra.mxu0 0.0
  %475 = vmatprep.subr.mxu0 0.0
  %476 = vmatpush1.msra.mxu0 0.0
  %477 = vmatprep.subr.mxu0 0.0
  %478 = vmatpush1.msra.mxu0 0.0
  %479 = vmatprep.subr.mxu0 0.0
  %480 = vmatpush1.msra.mxu0 0.0
  %481 = vmatprep.subr.mxu0 0.0
  %482 = vmatpush1.msra.mxu0 0.0
  %483 = vmatprep.subr.mxu0 0.0
  %484 = vmatpush1.msra.mxu0 0.0
  %485 = vmatprep.subr.mxu0 0.0
  %486 = vmatpush1.msra.mxu0 0.0
  %487 = vmatprep.subr.mxu0 0.0
  %488 = vmatpush1.msra.mxu0 0.0
  %489 = vmatprep.subr.mxu0 0.0
  %490 = vmatpush1.msra.mxu0 0.0
  %491 = vmatprep.subr.mxu0 0.0
  %492 = vmatpush1.msra.mxu0 0.0
  %493 = vmatprep.subr.mxu0 0.0
  %494 = vmatpush1.msra.mxu0 0.0
  %495 = vmatprep.subr.mxu0 0.0
  %496 = vmatpush1.msra.mxu0 0.0
  %497 = vmatprep.subr.mxu0 0.0
  %498 = vmatpush1.msra.mxu0 0.0
  %499 = vmatprep.subr.mxu0 0.0
  %500 = vmatpush1.msra.mxu0 0.0
  %501 = vmatprep.subr.mxu0 0.0
  %502 = vmatpush1.msra.mxu0 0.0
  %503 = vmatprep.subr.mxu0 0.0
  %504 = vmatpush1.msra.mxu0 0.0
  %505 = vmatprep.subr.mxu0 0.0
  %506 = vmatpush1.msra.mxu0 0.0
  %507 = vmatprep.mubr.f32.mxu0 0.0
  %508 = vmatmul.mubr.f32.gmra.mrb[0].mxu0 %v438
  %v509 = vpop.f32.mrb[0].mxu0
  %v510 = vadd.f32 %v434, %v509
  %v511 = vpop.f32.mrb[0].mxu0
  %512 = vmatprep.mubr.f32.mxu0 0.0
  %513 = vmatmul.mubr.f32.gmra.mrb[0].mxu0 %v441
  %v514 = vpop.f32.mrb[0].mxu0
  %v515 = vadd.f32 %v434, %v514
  %v516 = vpop.f32.mrb[0].mxu0
  %517 = vdwg.mxu0
  %v518 = vmax.f32 %v510, 0.0
  %v519 = vmax.f32 %v515, 0.0
  %v521 = vlaneseq
  %v522 = vshrl.u32 %v521, 7
  %v523 = vsub.s32 0, %v522
  %v524 = vrot.slane %v99, %v523
  %v527 = vsel %vm436, %v518, 0
  %v530 = vsel %vm436, %v519, 0
  %532 = vmatprep.subr.mxu0 0.0
  %533 = vmatpush1.msra.mxu0 %v91
  %534 = vmatprep.subr.mxu0 0.0
  %535 = vmatpush1.msra.mxu0 %v92
  %536 = vmatprep.subr.mxu0 0.0
  %537 = vmatpush1.msra.mxu0 %v93
  %538 = vmatprep.subr.mxu0 0.0
  %539 = vmatpush1.msra.mxu0 %v94
  %540 = vmatprep.subr.mxu0 0.0
  %541 = vmatpush1.msra.mxu0 %v95
  %542 = vmatprep.subr.mxu0 0.0
  %543 = vmatpush1.msra.mxu0 %v96
  %544 = vmatprep.subr.mxu0 0.0
  %545 = vmatpush1.msra.mxu0 %v97
  %546 = vmatprep.subr.mxu0 0.0
  %547 = vmatpush1.msra.mxu0 %v98
  %548 = vmatprep.subr.mxu0 0.0
  %549 = vmatpush1.msra.mxu0 0.0
  %550 = vmatprep.subr.mxu0 0.0
  %551 = vmatpush1.msra.mxu0 0.0
  %552 = vmatprep.subr.mxu0 0.0
  %553 = vmatpush1.msra.mxu0 0.0
  %554 = vmatprep.subr.mxu0 0.0
  %555 = vmatpush1.msra.mxu0 0.0
  %556 = vmatprep.subr.mxu0 0.0
  %557 = vmatpush1.msra.mxu0 0.0
  %558 = vmatprep.subr.mxu0 0.0
  %559 = vmatpush1.msra.mxu0 0.0
  %560 = vmatprep.subr.mxu0 0.0
  %561 = vmatpush1.msra.mxu0 0.0
  %562 = vmatprep.subr.mxu0 0.0
  %563 = vmatpush1.msra.mxu0 0.0
  %564 = vmatprep.subr.mxu0 0.0
  %565 = vmatpush1.msra.mxu0 0.0
  %566 = vmatprep.subr.mxu0 0.0
  %567 = vmatpush1.msra.mxu0 0.0
  %568 = vmatprep.subr.mxu0 0.0
  %569 = vmatpush1.msra.mxu0 0.0
  %570 = vmatprep.subr.mxu0 0.0
  %571 = vmatpush1.msra.mxu0 0.0
  %572 = vmatprep.subr.mxu0 0.0
  %573 = vmatpush1.msra.mxu0 0.0
  %574 = vmatprep.subr.mxu0 0.0
  %575 = vmatpush1.msra.mxu0 0.0
  %576 = vmatprep.subr.mxu0 0.0
  %577 = vmatpush1.msra.mxu0 0.0
  %578 = vmatprep.subr.mxu0 0.0
  %579 = vmatpush1.msra.mxu0 0.0
  %580 = vmatprep.subr.mxu0 0.0
  %581 = vmatpush1.msra.mxu0 0.0
  %582 = vmatprep.subr.mxu0 0.0
  %583 = vmatpush1.msra.mxu0 0.0
  %584 = vmatprep.subr.mxu0 0.0
  %585 = vmatpush1.msra.mxu0 0.0
  %586 = vmatprep.subr.mxu0 0.0
  %587 = vmatpush1.msra.mxu0 0.0
  %588 = vmatprep.subr.mxu0 0.0
  %589 = vmatpush1.msra.mxu0 0.0
  %590 = vmatprep.subr.mxu0 0.0
  %591 = vmatpush1.msra.mxu0 0.0
  %592 = vmatprep.subr.mxu0 0.0
  %593 = vmatpush1.msra.mxu0 0.0
  %594 = vmatprep.subr.mxu0 0.0
  %595 = vmatpush1.msra.mxu0 0.0
  %596 = vmatprep.mubr.f32.mxu0 0.0
  %597 = vmatmul.mubr.f32.gmra.mrb[0].mxu0 %v527
  %v598 = vpop.f32.mrb[0].mxu0
  %v599 = vadd.f32 %v524, %v598
  %v600 = vpop.f32.mrb[0].mxu0
  %601 = vmatprep.mubr.f32.mxu0 0.0
  %602 = vmatmul.mubr.f32.gmra.mrb[0].mxu0 %v530
  %v603 = vpop.f32.mrb[0].mxu0
  %v604 = vadd.f32 %v524, %v603
  %v605 = vpop.f32.mrb[0].mxu0
  %606 = vdwg.mxu0
  %vm607 = vcmask 130048
  %v609 = vsel %vm607, %v69, 0
  %611 = vmatprep.subr.mxu0 0.0
  %612 = vmatpush1.msra.mxu0 %v599
  %613 = vmatprep.subr.mxu0 0.0
  %614 = vmatpush1.msra.mxu0 %v604
  %615 = vmatprep.subr.mxu0 0.0
  %616 = vmatpush1.msra.mxu0 0.0
  %617 = vmatprep.subr.mxu0 0.0
  %618 = vmatpush1.msra.mxu0 0.0
  %619 = vmatprep.subr.mxu0 0.0
  %620 = vmatpush1.msra.mxu0 0.0
  %621 = vmatprep.subr.mxu0 0.0
  %622 = vmatpush1.msra.mxu0 0.0
  %623 = vmatprep.subr.mxu0 0.0
  %624 = vmatpush1.msra.mxu0 0.0
  %625 = vmatprep.subr.mxu0 0.0
  %626 = vmatpush1.msra.mxu0 0.0
  %627 = vmatprep.subr.mxu0 0.0
  %628 = vmatpush1.msra.mxu0 0.0
  %629 = vmatprep.subr.mxu0 0.0
  %630 = vmatpush1.msra.mxu0 0.0
  %631 = vmatprep.subr.mxu0 0.0
  %632 = vmatpush1.msra.mxu0 0.0
  %633 = vmatprep.subr.mxu0 0.0
  %634 = vmatpush1.msra.mxu0 0.0
  %635 = vmatprep.subr.mxu0 0.0
  %636 = vmatpush1.msra.mxu0 0.0
  %637 = vmatprep.subr.mxu0 0.0
  %638 = vmatpush1.msra.mxu0 0.0
  %639 = vmatprep.subr.mxu0 0.0
  %640 = vmatpush1.msra.mxu0 0.0
  %641 = vmatprep.subr.mxu0 0.0
  %642 = vmatpush1.msra.mxu0 0.0
  %643 = vmatprep.subr.mxu0 0.0
  %644 = vmatpush1.msra.mxu0 0.0
  %645 = vmatprep.subr.mxu0 0.0
  %646 = vmatpush1.msra.mxu0 0.0
  %647 = vmatprep.subr.mxu0 0.0
  %648 = vmatpush1.msra.mxu0 0.0
  %649 = vmatprep.subr.mxu0 0.0
  %650 = vmatpush1.msra.mxu0 0.0
  %651 = vmatprep.subr.mxu0 0.0
  %652 = vmatpush1.msra.mxu0 0.0
  %653 = vmatprep.subr.mxu0 0.0
  %654 = vmatpush1.msra.mxu0 0.0
  %655 = vmatprep.subr.mxu0 0.0
  %656 = vmatpush1.msra.mxu0 0.0
  %657 = vmatprep.subr.mxu0 0.0
  %658 = vmatpush1.msra.mxu0 0.0
  %659 = vmatprep.subr.mxu0 0.0
  %660 = vmatpush1.msra.mxu0 0.0
  %661 = vmatprep.subr.mxu0 0.0
  %662 = vmatpush1.msra.mxu0 0.0
  %663 = vmatprep.subr.mxu0 0.0
  %664 = vmatpush1.msra.mxu0 0.0
  %665 = vmatprep.subr.mxu0 0.0
  %666 = vmatpush1.msra.mxu0 0.0
  %667 = vmatprep.subr.mxu0 0.0
  %668 = vmatpush1.msra.mxu0 0.0
  %669 = vmatprep.subr.mxu0 0.0
  %670 = vmatpush1.msra.mxu0 0.0
  %671 = vmatprep.subr.mxu0 0.0
  %672 = vmatpush1.msra.mxu0 0.0
  %673 = vmatprep.subr.mxu0 0.0
  %674 = vmatpush1.msra.mxu0 0.0
  %675 = vmatprep.mubr.f32.mxu0 0.0
  %676 = vmatmul.mubr.f32.gmra.mrb[0].mxu0 %v609
  %v677 = vpop.f32.mrb[0].mxu0
  %v678 = vadd.f32 0.0, %v677
  %v679 = vpop.f32.mrb[0].mxu0
  %680 = vdwg.mxu0
  %v681 = vld [vmem:[%s10] sm:$0xff]
  %v682 = vld [vmem:[%s10 + $0x8] sm:$0xff]
  %v683 = vld [vmem:[%s10 + $0x10] sm:$0xff]
  %v684 = vld [vmem:[%s10 + $0x18] sm:$0xff]
  %v685 = vld [vmem:[%s12] sm:$0x1]
  %v687 = vlaneseq
  %v688 = vshrl.u32 %v687, 7
  %v689 = vsub.s32 0, %v688
  %v690 = vrot.slane %v685, %v689
  %v693 = vsel %vm263, %v678, 0
  %695 = vmatprep.subr.mxu0 0.0
  %696 = vmatpush1.msra.mxu0 %v681
  %697 = vmatprep.subr.mxu0 0.0
  %698 = vmatpush1.msra.mxu0 %v682
  %699 = vmatprep.subr.mxu0 0.0
  %700 = vmatpush1.msra.mxu0 %v683
  %701 = vmatprep.subr.mxu0 0.0
  %702 = vmatpush1.msra.mxu0 %v684
  %703 = vmatprep.subr.mxu0 0.0
  %704 = vmatpush1.msra.mxu0 0.0
  %705 = vmatprep.subr.mxu0 0.0
  %706 = vmatpush1.msra.mxu0 0.0
  %707 = vmatprep.subr.mxu0 0.0
  %708 = vmatpush1.msra.mxu0 0.0
  %709 = vmatprep.subr.mxu0 0.0
  %710 = vmatpush1.msra.mxu0 0.0
  %711 = vmatprep.subr.mxu0 0.0
  %712 = vmatpush1.msra.mxu0 0.0
  %713 = vmatprep.subr.mxu0 0.0
  %714 = vmatpush1.msra.mxu0 0.0
  %715 = vmatprep.subr.mxu0 0.0
  %716 = vmatpush1.msra.mxu0 0.0
  %717 = vmatprep.subr.mxu0 0.0
  %718 = vmatpush1.msra.mxu0 0.0
  %719 = vmatprep.subr.mxu0 0.0
  %720 = vmatpush1.msra.mxu0 0.0
  %721 = vmatprep.subr.mxu0 0.0
  %722 = vmatpush1.msra.mxu0 0.0
  %723 = vmatprep.subr.mxu0 0.0
  %724 = vmatpush1.msra.mxu0 0.0
  %725 = vmatprep.subr.mxu0 0.0
  %726 = vmatpush1.msra.mxu0 0.0
  %727 = vmatprep.subr.mxu0 0.0
  %728 = vmatpush1.msra.mxu0 0.0
  %729 = vmatprep.subr.mxu0 0.0
  %730 = vmatpush1.msra.mxu0 0.0
  %731 = vmatprep.subr.mxu0 0.0
  %732 = vmatpush1.msra.mxu0 0.0
  %733 = vmatprep.subr.mxu0 0.0
  %734 = vmatpush1.msra.mxu0 0.0
  %735 = vmatprep.subr.mxu0 0.0
  %736 = vmatpush1.msra.mxu0 0.0
  %737 = vmatprep.subr.mxu0 0.0
  %738 = vmatpush1.msra.mxu0 0.0
  %739 = vmatprep.subr.mxu0 0.0
  %740 = vmatpush1.msra.mxu0 0.0
  %741 = vmatprep.subr.mxu0 0.0
  %742 = vmatpush1.msra.mxu0 0.0
  %743 = vmatprep.subr.mxu0 0.0
  %744 = vmatpush1.msra.mxu0 0.0
  %745 = vmatprep.subr.mxu0 0.0
  %746 = vmatpush1.msra.mxu0 0.0
  %747 = vmatprep.subr.mxu0 0.0
  %748 = vmatpush1.msra.mxu0 0.0
  %749 = vmatprep.subr.mxu0 0.0
  %750 = vmatpush1.msra.mxu0 0.0
  %751 = vmatprep.subr.mxu0 0.0
  %752 = vmatpush1.msra.mxu0 0.0
  %753 = vmatprep.subr.mxu0 0.0
  %754 = vmatpush1.msra.mxu0 0.0
  %755 = vmatprep.subr.mxu0 0.0
  %756 = vmatpush1.msra.mxu0 0.0
  %757 = vmatprep.subr.mxu0 0.0
  %758 = vmatpush1.msra.mxu0 0.0
  %759 = vmatprep.mubr.f32.mxu0 0.0
  %760 = vmatmul.mubr.f32.gmra.mrb[0].mxu0 %v693
  %v761 = vpop.f32.mrb[0].mxu0
  %v762 = vadd.f32 %v690, %v761
  %v763 = vpop.f32.mrb[0].mxu0
  %764 = vdwg.mxu0
  %s765 = scalar_lea.vmem %s10, 32
  %v766 = vld [vmem:[%s765] sm:$0xff]
  %v767 = vld [vmem:[%s765 + $0x8] sm:$0xff]
  %v768 = vld [vmem:[%s765 + $0x10] sm:$0xff]
  %v769 = vld [vmem:[%s765 + $0x18] sm:$0xff]
  %s770 = scalar_lea.vmem %s12, 1
  %v771 = vld [vmem:[%s770] sm:$0x1]
  %v773 = vlaneseq
  %v774 = vshrl.u32 %v773, 7
  %v775 = vsub.s32 0, %v774
  %v776 = vrot.slane %v771, %v775
  %778 = vmatprep.subr.mxu0 0.0
  %779 = vmatpush1.msra.mxu0 %v766
  %780 = vmatprep.subr.mxu0 0.0
  %781 = vmatpush1.msra.mxu0 %v767
  %782 = vmatprep.subr.mxu0 0.0
  %783 = vmatpush1.msra.mxu0 %v768
  %784 = vmatprep.subr.mxu0 0.0
  %785 = vmatpush1.msra.mxu0 %v769
  %786 = vmatprep.subr.mxu0 0.0
  %787 = vmatpush1.msra.mxu0 0.0
  %788 = vmatprep.subr.mxu0 0.0
  %789 = vmatpush1.msra.mxu0 0.0
  %790 = vmatprep.subr.mxu0 0.0
  %791 = vmatpush1.msra.mxu0 0.0
  %792 = vmatprep.subr.mxu0 0.0
  %793 = vmatpush1.msra.mxu0 0.0
  %794 = vmatprep.subr.mxu0 0.0
  %795 = vmatpush1.msra.mxu0 0.0
  %796 = vmatprep.subr.mxu0 0.0
  %797 = vmatpush1.msra.mxu0 0.0
  %798 = vmatprep.subr.mxu0 0.0
  %799 = vmatpush1.msra.mxu0 0.0
  %800 = vmatprep.subr.mxu0 0.0
  %801 = vmatpush1.msra.mxu0 0.0
  %802 = vmatprep.subr.mxu0 0.0
  %803 = vmatpush1.msra.mxu0 0.0
  %804 = vmatprep.subr.mxu0 0.0
  %805 = vmatpush1.msra.mxu0 0.0
  %806 = vmatprep.subr.mxu0 0.0
  %807 = vmatpush1.msra.mxu0 0.0
  %808 = vmatprep.subr.mxu0 0.0
  %809 = vmatpush1.msra.mxu0 0.0
  %810 = vmatprep.subr.mxu0 0.0
  %811 = vmatpush1.msra.mxu0 0.0
  %812 = vmatprep.subr.mxu0 0.0
  %813 = vmatpush1.msra.mxu0 0.0
  %814 = vmatprep.subr.mxu0 0.0
  %815 = vmatpush1.msra.mxu0 0.0
  %816 = vmatprep.subr.mxu0 0.0
  %817 = vmatpush1.msra.mxu0 0.0
  %818 = vmatprep.subr.mxu0 0.0
  %819 = vmatpush1.msra.mxu0 0.0
  %820 = vmatprep.subr.mxu0 0.0
  %821 = vmatpush1.msra.mxu0 0.0
  %822 = vmatprep.subr.mxu0 0.0
  %823 = vmatpush1.msra.mxu0 0.0
  %824 = vmatprep.subr.mxu0 0.0
  %825 = vmatpush1.msra.mxu0 0.0
  %826 = vmatprep.subr.mxu0 0.0
  %827 = vmatpush1.msra.mxu0 0.0
  %828 = vmatprep.subr.mxu0 0.0
  %829 = vmatpush1.msra.mxu0 0.0
  %830 = vmatprep.subr.mxu0 0.0
  %831 = vmatpush1.msra.mxu0 0.0
  %832 = vmatprep.subr.mxu0 0.0
  %833 = vmatpush1.msra.mxu0 0.0
  %834 = vmatprep.subr.mxu0 0.0
  %835 = vmatpush1.msra.mxu0 0.0
  %836 = vmatprep.subr.mxu0 0.0
  %837 = vmatpush1.msra.mxu0 0.0
  %838 = vmatprep.subr.mxu0 0.0
  %839 = vmatpush1.msra.mxu0 0.0
  %840 = vmatprep.subr.mxu0 0.0
  %841 = vmatpush1.msra.mxu0 0.0
  %842 = vmatprep.mubr.f32.mxu0 0.0
  %843 = vmatmul.mubr.f32.gmra.mrb[0].mxu0 %v693
  %v844 = vpop.f32.mrb[0].mxu0
  %v845 = vadd.f32 %v776, %v844
  %v846 = vpop.f32.mrb[0].mxu0
  %847 = vdwg.mxu0
  %s848 = scalar_lea.vmem %s10, 64
  %v849 = vld [vmem:[%s848] sm:$0xff]
  %v850 = vld [vmem:[%s848 + $0x8] sm:$0xff]
  %v851 = vld [vmem:[%s848 + $0x10] sm:$0xff]
  %v852 = vld [vmem:[%s848 + $0x18] sm:$0xff]
  %s853 = scalar_lea.vmem %s12, 2
  %v854 = vld [vmem:[%s853] sm:$0x1]
  %v856 = vlaneseq
  %v857 = vshrl.u32 %v856, 7
  %v858 = vsub.s32 0, %v857
  %v859 = vrot.slane %v854, %v858
  %861 = vmatprep.subr.mxu0 0.0
  %862 = vmatpush1.msra.mxu0 %v849
  %863 = vmatprep.subr.mxu0 0.0
  %864 = vmatpush1.msra.mxu0 %v850
  %865 = vmatprep.subr.mxu0 0.0
  %866 = vmatpush1.msra.mxu0 %v851
  %867 = vmatprep.subr.mxu0 0.0
  %868 = vmatpush1.msra.mxu0 %v852
  %869 = vmatprep.subr.mxu0 0.0
  %870 = vmatpush1.msra.mxu0 0.0
  %871 = vmatprep.subr.mxu0 0.0
  %872 = vmatpush1.msra.mxu0 0.0
  %873 = vmatprep.subr.mxu0 0.0
  %874 = vmatpush1.msra.mxu0 0.0
  %875 = vmatprep.subr.mxu0 0.0
  %876 = vmatpush1.msra.mxu0 0.0
  %877 = vmatprep.subr.mxu0 0.0
  %878 = vmatpush1.msra.mxu0 0.0
  %879 = vmatprep.subr.mxu0 0.0
  %880 = vmatpush1.msra.mxu0 0.0
  %881 = vmatprep.subr.mxu0 0.0
  %882 = vmatpush1.msra.mxu0 0.0
  %883 = vmatprep.subr.mxu0 0.0
  %884 = vmatpush1.msra.mxu0 0.0
  %885 = vmatprep.subr.mxu0 0.0
  %886 = vmatpush1.msra.mxu0 0.0
  %887 = vmatprep.subr.mxu0 0.0
  %888 = vmatpush1.msra.mxu0 0.0
  %889 = vmatprep.subr.mxu0 0.0
  %890 = vmatpush1.msra.mxu0 0.0
  %891 = vmatprep.subr.mxu0 0.0
  %892 = vmatpush1.msra.mxu0 0.0
  %893 = vmatprep.subr.mxu0 0.0
  %894 = vmatpush1.msra.mxu0 0.0
  %895 = vmatprep.subr.mxu0 0.0
  %896 = vmatpush1.msra.mxu0 0.0
  %897 = vmatprep.subr.mxu0 0.0
  %898 = vmatpush1.msra.mxu0 0.0
  %899 = vmatprep.subr.mxu0 0.0
  %900 = vmatpush1.msra.mxu0 0.0
  %901 = vmatprep.subr.mxu0 0.0
  %902 = vmatpush1.msra.mxu0 0.0
  %903 = vmatprep.subr.mxu0 0.0
  %904 = vmatpush1.msra.mxu0 0.0
  %905 = vmatprep.subr.mxu0 0.0
  %906 = vmatpush1.msra.mxu0 0.0
  %907 = vmatprep.subr.mxu0 0.0
  %908 = vmatpush1.msra.mxu0 0.0
  %909 = vmatprep.subr.mxu0 0.0
  %910 = vmatpush1.msra.mxu0 0.0
  %911 = vmatprep.subr.mxu0 0.0
  %912 = vmatpush1.msra.mxu0 0.0
  %913 = vmatprep.subr.mxu0 0.0
  %914 = vmatpush1.msra.mxu0 0.0
  %915 = vmatprep.subr.mxu0 0.0
  %916 = vmatpush1.msra.mxu0 0.0
  %917 = vmatprep.subr.mxu0 0.0
  %918 = vmatpush1.msra.mxu0 0.0
  %919 = vmatprep.subr.mxu0 0.0
  %920 = vmatpush1.msra.mxu0 0.0
  %921 = vmatprep.subr.mxu0 0.0
  %922 = vmatpush1.msra.mxu0 0.0
  %923 = vmatprep.subr.mxu0 0.0
  %924 = vmatpush1.msra.mxu0 0.0
  %925 = vmatprep.mubr.f32.mxu0 0.0
  %926 = vmatmul.mubr.f32.gmra.mrb[0].mxu0 %v693
  %v927 = vpop.f32.mrb[0].mxu0
  %v928 = vadd.f32 %v859, %v927
  %v929 = vpop.f32.mrb[0].mxu0
  %930 = vdwg.mxu0
  %v931 = vld [vmem:[%s11] sm:$0xff]
  %v932 = vld [vmem:[%s11 + $0x8] sm:$0xff]
  %v933 = vld [vmem:[%s11 + $0x10] sm:$0xff]
  %v934 = vld [vmem:[%s11 + $0x18] sm:$0xff]
  %v935 = vld [vmem:[%s13] sm:$0x1]
  %v937 = vlaneseq
  %v938 = vshrl.u32 %v937, 7
  %v939 = vsub.s32 0, %v938
  %v940 = vrot.slane %v935, %v939
  %v943 = vsel %vm263, 0.0, 0
  %945 = vmatprep.subr.mxu0 0.0
  %946 = vmatpush1.msra.mxu0 %v931
  %947 = vmatprep.subr.mxu0 0.0
  %948 = vmatpush1.msra.mxu0 %v932
  %949 = vmatprep.subr.mxu0 0.0
  %950 = vmatpush1.msra.mxu0 %v933
  %951 = vmatprep.subr.mxu0 0.0
  %952 = vmatpush1.msra.mxu0 %v934
  %953 = vmatprep.subr.mxu0 0.0
  %954 = vmatpush1.msra.mxu0 0.0
  %955 = vmatprep.subr.mxu0 0.0
  %956 = vmatpush1.msra.mxu0 0.0
  %957 = vmatprep.subr.mxu0 0.0
  %958 = vmatpush1.msra.mxu0 0.0
  %959 = vmatprep.subr.mxu0 0.0
  %960 = vmatpush1.msra.mxu0 0.0
  %961 = vmatprep.subr.mxu0 0.0
  %962 = vmatpush1.msra.mxu0 0.0
  %963 = vmatprep.subr.mxu0 0.0
  %964 = vmatpush1.msra.mxu0 0.0
  %965 = vmatprep.subr.mxu0 0.0
  %966 = vmatpush1.msra.mxu0 0.0
  %967 = vmatprep.subr.mxu0 0.0
  %968 = vmatpush1.msra.mxu0 0.0
  %969 = vmatprep.subr.mxu0 0.0
  %970 = vmatpush1.msra.mxu0 0.0
  %971 = vmatprep.subr.mxu0 0.0
  %972 = vmatpush1.msra.mxu0 0.0
  %973 = vmatprep.subr.mxu0 0.0
  %974 = vmatpush1.msra.mxu0 0.0
  %975 = vmatprep.subr.mxu0 0.0
  %976 = vmatpush1.msra.mxu0 0.0
  %977 = vmatprep.subr.mxu0 0.0
  %978 = vmatpush1.msra.mxu0 0.0
  %979 = vmatprep.subr.mxu0 0.0
  %980 = vmatpush1.msra.mxu0 0.0
  %981 = vmatprep.subr.mxu0 0.0
  %982 = vmatpush1.msra.mxu0 0.0
  %983 = vmatprep.subr.mxu0 0.0
  %984 = vmatpush1.msra.mxu0 0.0
  %985 = vmatprep.subr.mxu0 0.0
  %986 = vmatpush1.msra.mxu0 0.0
  %987 = vmatprep.subr.mxu0 0.0
  %988 = vmatpush1.msra.mxu0 0.0
  %989 = vmatprep.subr.mxu0 0.0
  %990 = vmatpush1.msra.mxu0 0.0
  %991 = vmatprep.subr.mxu0 0.0
  %992 = vmatpush1.msra.mxu0 0.0
  %993 = vmatprep.subr.mxu0 0.0
  %994 = vmatpush1.msra.mxu0 0.0
  %995 = vmatprep.subr.mxu0 0.0
  %996 = vmatpush1.msra.mxu0 0.0
  %997 = vmatprep.subr.mxu0 0.0
  %998 = vmatpush1.msra.mxu0 0.0
  %999 = vmatprep.subr.mxu0 0.0
  %1000 = vmatpush1.msra.mxu0 0.0
  %1001 = vmatprep.subr.mxu0 0.0
  %1002 = vmatpush1.msra.mxu0 0.0
  %1003 = vmatprep.subr.mxu0 0.0
  %1004 = vmatpush1.msra.mxu0 0.0
  %1005 = vmatprep.subr.mxu0 0.0
  %1006 = vmatpush1.msra.mxu0 0.0
  %1007 = vmatprep.subr.mxu0 0.0
  %1008 = vmatpush1.msra.mxu0 0.0
  %1009 = vmatprep.mubr.f32.mxu0 0.0
  %1010 = vmatmul.mubr.f32.gmra.mrb[0].mxu0 %v943
  %v1011 = vpop.f32.mrb[0].mxu0
  %v1012 = vadd.f32 %v940, %v1011
  %v1013 = vpop.f32.mrb[0].mxu0
  %1014 = vdwg.mxu0
  %s1015 = scalar_lea.vmem %s11, 32
  %v1016 = vld [vmem:[%s1015] sm:$0xff]
  %v1017 = vld [vmem:[%s1015 + $0x8] sm:$0xff]
  %v1018 = vld [vmem:[%s1015 + $0x10] sm:$0xff]
  %v1019 = vld [vmem:[%s1015 + $0x18] sm:$0xff]
  %s1020 = scalar_lea.vmem %s13, 1
  %v1021 = vld [vmem:[%s1020] sm:$0x1]
  %v1023 = vlaneseq
  %v1024 = vshrl.u32 %v1023, 7
  %v1025 = vsub.s32 0, %v1024
  %v1026 = vrot.slane %v1021, %v1025
  %1028 = vmatprep.subr.mxu0 0.0
  %1029 = vmatpush1.msra.mxu0 %v1016
  %1030 = vmatprep.subr.mxu0 0.0
  %1031 = vmatpush1.msra.mxu0 %v1017
  %1032 = vmatprep.subr.mxu0 0.0
  %1033 = vmatpush1.msra.mxu0 %v1018
  %1034 = vmatprep.subr.mxu0 0.0
  %1035 = vmatpush1.msra.mxu0 %v1019
  %1036 = vmatprep.subr.mxu0 0.0
  %1037 = vmatpush1.msra.mxu0 0.0
  %1038 = vmatprep.subr.mxu0 0.0
  %1039 = vmatpush1.msra.mxu0 0.0
  %1040 = vmatprep.subr.mxu0 0.0
  %1041 = vmatpush1.msra.mxu0 0.0
  %1042 = vmatprep.subr.mxu0 0.0
  %1043 = vmatpush1.msra.mxu0 0.0
  %1044 = vmatprep.subr.mxu0 0.0
  %1045 = vmatpush1.msra.mxu0 0.0
  %1046 = vmatprep.subr.mxu0 0.0
  %1047 = vmatpush1.msra.mxu0 0.0
  %1048 = vmatprep.subr.mxu0 0.0
  %1049 = vmatpush1.msra.mxu0 0.0
  %1050 = vmatprep.subr.mxu0 0.0
  %1051 = vmatpush1.msra.mxu0 0.0
  %1052 = vmatprep.subr.mxu0 0.0
  %1053 = vmatpush1.msra.mxu0 0.0
  %1054 = vmatprep.subr.mxu0 0.0
  %1055 = vmatpush1.msra.mxu0 0.0
  %1056 = vmatprep.subr.mxu0 0.0
  %1057 = vmatpush1.msra.mxu0 0.0
  %1058 = vmatprep.subr.mxu0 0.0
  %1059 = vmatpush1.msra.mxu0 0.0
  %1060 = vmatprep.subr.mxu0 0.0
  %1061 = vmatpush1.msra.mxu0 0.0
  %1062 = vmatprep.subr.mxu0 0.0
  %1063 = vmatpush1.msra.mxu0 0.0
  %1064 = vmatprep.subr.mxu0 0.0
  %1065 = vmatpush1.msra.mxu0 0.0
  %1066 = vmatprep.subr.mxu0 0.0
  %1067 = vmatpush1.msra.mxu0 0.0
  %1068 = vmatprep.subr.mxu0 0.0
  %1069 = vmatpush1.msra.mxu0 0.0
  %1070 = vmatprep.subr.mxu0 0.0
  %1071 = vmatpush1.msra.mxu0 0.0
  %1072 = vmatprep.subr.mxu0 0.0
  %1073 = vmatpush1.msra.mxu0 0.0
  %1074 = vmatprep.subr.mxu0 0.0
  %1075 = vmatpush1.msra.mxu0 0.0
  %1076 = vmatprep.subr.mxu0 0.0
  %1077 = vmatpush1.msra.mxu0 0.0
  %1078 = vmatprep.subr.mxu0 0.0
  %1079 = vmatpush1.msra.mxu0 0.0
  %1080 = vmatprep.subr.mxu0 0.0
  %1081 = vmatpush1.msra.mxu0 0.0
  %1082 = vmatprep.subr.mxu0 0.0
  %1083 = vmatpush1.msra.mxu0 0.0
  %1084 = vmatprep.subr.mxu0 0.0
  %1085 = vmatpush1.msra.mxu0 0.0
  %1086 = vmatprep.subr.mxu0 0.0
  %1087 = vmatpush1.msra.mxu0 0.0
  %1088 = vmatprep.subr.mxu0 0.0
  %1089 = vmatpush1.msra.mxu0 0.0
  %1090 = vmatprep.subr.mxu0 0.0
  %1091 = vmatpush1.msra.mxu0 0.0
  %1092 = vmatprep.mubr.f32.mxu0 0.0
  %1093 = vmatmul.mubr.f32.gmra.mrb[0].mxu0 %v943
  %v1094 = vpop.f32.mrb[0].mxu0
  %v1095 = vadd.f32 %v1026, %v1094
  %v1096 = vpop.f32.mrb[0].mxu0
  %1097 = vdwg.mxu0
  %s1098 = scalar_lea.vmem %s11, 64
  %v1099 = vld [vmem:[%s1098] sm:$0xff]
  %v1100 = vld [vmem:[%s1098 + $0x8] sm:$0xff]
  %v1101 = vld [vmem:[%s1098 + $0x10] sm:$0xff]
  %v1102 = vld [vmem:[%s1098 + $0x18] sm:$0xff]
  %s1103 = scalar_lea.vmem %s13, 2
  %v1104 = vld [vmem:[%s1103] sm:$0x1]
  %v1106 = vlaneseq
  %v1107 = vshrl.u32 %v1106, 7
  %v1108 = vsub.s32 0, %v1107
  %v1109 = vrot.slane %v1104, %v1108
  %1111 = vmatprep.subr.mxu0 0.0
  %1112 = vmatpush1.msra.mxu0 %v1099
  %1113 = vmatprep.subr.mxu0 0.0
  %1114 = vmatpush1.msra.mxu0 %v1100
  %1115 = vmatprep.subr.mxu0 0.0
  %1116 = vmatpush1.msra.mxu0 %v1101
  %1117 = vmatprep.subr.mxu0 0.0
  %1118 = vmatpush1.msra.mxu0 %v1102
  %1119 = vmatprep.subr.mxu0 0.0
  %1120 = vmatpush1.msra.mxu0 0.0
  %1121 = vmatprep.subr.mxu0 0.0
  %1122 = vmatpush1.msra.mxu0 0.0
  %1123 = vmatprep.subr.mxu0 0.0
  %1124 = vmatpush1.msra.mxu0 0.0
  %1125 = vmatprep.subr.mxu0 0.0
  %1126 = vmatpush1.msra.mxu0 0.0
  %1127 = vmatprep.subr.mxu0 0.0
  %1128 = vmatpush1.msra.mxu0 0.0
  %1129 = vmatprep.subr.mxu0 0.0
  %1130 = vmatpush1.msra.mxu0 0.0
  %1131 = vmatprep.subr.mxu0 0.0
  %1132 = vmatpush1.msra.mxu0 0.0
  %1133 = vmatprep.subr.mxu0 0.0
  %1134 = vmatpush1.msra.mxu0 0.0
  %1135 = vmatprep.subr.mxu0 0.0
  %1136 = vmatpush1.msra.mxu0 0.0
  %1137 = vmatprep.subr.mxu0 0.0
  %1138 = vmatpush1.msra.mxu0 0.0
  %1139 = vmatprep.subr.mxu0 0.0
  %1140 = vmatpush1.msra.mxu0 0.0
  %1141 = vmatprep.subr.mxu0 0.0
  %1142 = vmatpush1.msra.mxu0 0.0
  %1143 = vmatprep.subr.mxu0 0.0
  %1144 = vmatpush1.msra.mxu0 0.0
  %1145 = vmatprep.subr.mxu0 0.0
  %1146 = vmatpush1.msra.mxu0 0.0
  %1147 = vmatprep.subr.mxu0 0.0
  %1148 = vmatpush1.msra.mxu0 0.0
  %1149 = vmatprep.subr.mxu0 0.0
  %1150 = vmatpush1.msra.mxu0 0.0
  %1151 = vmatprep.subr.mxu0 0.0
  %1152 = vmatpush1.msra.mxu0 0.0
  %1153 = vmatprep.subr.mxu0 0.0
  %1154 = vmatpush1.msra.mxu0 0.0
  %1155 = vmatprep.subr.mxu0 0.0
  %1156 = vmatpush1.msra.mxu0 0.0
  %1157 = vmatprep.subr.mxu0 0.0
  %1158 = vmatpush1.msra.mxu0 0.0
  %1159 = vmatprep.subr.mxu0 0.0
  %1160 = vmatpush1.msra.mxu0 0.0
  %1161 = vmatprep.subr.mxu0 0.0
  %1162 = vmatpush1.msra.mxu0 0.0
  %1163 = vmatprep.subr.mxu0 0.0
  %1164 = vmatpush1.msra.mxu0 0.0
  %1165 = vmatprep.subr.mxu0 0.0
  %1166 = vmatpush1.msra.mxu0 0.0
  %1167 = vmatprep.subr.mxu0 0.0
  %1168 = vmatpush1.msra.mxu0 0.0
  %1169 = vmatprep.subr.mxu0 0.0
  %1170 = vmatpush1.msra.mxu0 0.0
  %1171 = vmatprep.subr.mxu0 0.0
  %1172 = vmatpush1.msra.mxu0 0.0
  %1173 = vmatprep.subr.mxu0 0.0
  %1174 = vmatpush1.msra.mxu0 0.0
  %1175 = vmatprep.mubr.f32.mxu0 0.0
  %1176 = vmatmul.mubr.f32.gmra.mrb[0].mxu0 %v943
  %v1177 = vpop.f32.mrb[0].mxu0
  %v1178 = vadd.f32 %v1109, %v1177
  %v1179 = vpop.f32.mrb[0].mxu0
  %1180 = vdwg.mxu0
  %v1181 = vadd.f32 %v762, %v1012
  %v1182 = vxor.u32 %v1181, 2147483648
  %v1183 = vmul.f32 %v1182, 1.442695
  %v1184 = vpow.pop %v1183
  %v1185 = vadd.f32 %v1184, 1.0
  %v1186 = vrcp.pop %v1185
  %v1187 = vmul.f32 1.0, %v1186
  %v1188 = vadd.f32 %v845, %v1095
  %v1189 = vxor.u32 %v1188, 2147483648
  %v1190 = vmul.f32 %v1189, 1.442695
  %v1191 = vpow.pop %v1190
  %v1192 = vadd.f32 %v1191, 1.0
  %v1193 = vrcp.pop %v1192
  %v1194 = vmul.f32 1.0, %v1193
  %v1195 = vmul.f32 %v1187, %v1178
  %v1196 = vadd.f32 %v928, %v1195
  %v1197 = vtanh.pop %v1196
  %v1198 = vsub.f32 1.0, %v1194
  %v1199 = vmul.f32 %v1198, %v1197
  %v1200 = vmul.f32 %v1194, 0.0
  %v1201 = vadd.f32 %v1199, %v1200
  %s1202 = scalar_lea.vmem %s10, 96
  %v1203 = vld [vmem:[%s1202] sm:$0xff]
  %v1204 = vld [vmem:[%s1202 + $0x8] sm:$0xff]
  %v1205 = vld [vmem:[%s1202 + $0x10] sm:$0xff]
  %v1206 = vld [vmem:[%s1202 + $0x18] sm:$0xff]
  %s1207 = scalar_lea.vmem %s12, 3
  %v1208 = vld [vmem:[%s1207] sm:$0x1]
  %v1210 = vlaneseq
  %v1211 = vshrl.u32 %v1210, 7
  %v1212 = vsub.s32 0, %v1211
  %v1213 = vrot.slane %v1208, %v1212
  %1215 = vmatprep.subr.mxu0 0.0
  %1216 = vmatpush1.msra.mxu0 %v1203
  %1217 = vmatprep.subr.mxu0 0.0
  %1218 = vmatpush1.msra.mxu0 %v1204
  %1219 = vmatprep.subr.mxu0 0.0
  %1220 = vmatpush1.msra.mxu0 %v1205
  %1221 = vmatprep.subr.mxu0 0.0
  %1222 = vmatpush1.msra.mxu0 %v1206
  %1223 = vmatprep.subr.mxu0 0.0
  %1224 = vmatpush1.msra.mxu0 0.0
  %1225 = vmatprep.subr.mxu0 0.0
  %1226 = vmatpush1.msra.mxu0 0.0
  %1227 = vmatprep.subr.mxu0 0.0
  %1228 = vmatpush1.msra.mxu0 0.0
  %1229 = vmatprep.subr.mxu0 0.0
  %1230 = vmatpush1.msra.mxu0 0.0
  %1231 = vmatprep.subr.mxu0 0.0
  %1232 = vmatpush1.msra.mxu0 0.0
  %1233 = vmatprep.subr.mxu0 0.0
  %1234 = vmatpush1.msra.mxu0 0.0
  %1235 = vmatprep.subr.mxu0 0.0
  %1236 = vmatpush1.msra.mxu0 0.0
  %1237 = vmatprep.subr.mxu0 0.0
  %1238 = vmatpush1.msra.mxu0 0.0
  %1239 = vmatprep.subr.mxu0 0.0
  %1240 = vmatpush1.msra.mxu0 0.0
  %1241 = vmatprep.subr.mxu0 0.0
  %1242 = vmatpush1.msra.mxu0 0.0
  %1243 = vmatprep.subr.mxu0 0.0
  %1244 = vmatpush1.msra.mxu0 0.0
  %1245 = vmatprep.subr.mxu0 0.0
  %1246 = vmatpush1.msra.mxu0 0.0
  %1247 = vmatprep.subr.mxu0 0.0
  %1248 = vmatpush1.msra.mxu0 0.0
  %1249 = vmatprep.subr.mxu0 0.0
  %1250 = vmatpush1.msra.mxu0 0.0
  %1251 = vmatprep.subr.mxu0 0.0
  %1252 = vmatpush1.msra.mxu0 0.0
  %1253 = vmatprep.subr.mxu0 0.0
  %1254 = vmatpush1.msra.mxu0 0.0
  %1255 = vmatprep.subr.mxu0 0.0
  %1256 = vmatpush1.msra.mxu0 0.0
  %1257 = vmatprep.subr.mxu0 0.0
  %1258 = vmatpush1.msra.mxu0 0.0
  %1259 = vmatprep.subr.mxu0 0.0
  %1260 = vmatpush1.msra.mxu0 0.0
  %1261 = vmatprep.subr.mxu0 0.0
  %1262 = vmatpush1.msra.mxu0 0.0
  %1263 = vmatprep.subr.mxu0 0.0
  %1264 = vmatpush1.msra.mxu0 0.0
  %1265 = vmatprep.subr.mxu0 0.0
  %1266 = vmatpush1.msra.mxu0 0.0
  %1267 = vmatprep.subr.mxu0 0.0
  %1268 = vmatpush1.msra.mxu0 0.0
  %1269 = vmatprep.subr.mxu0 0.0
  %1270 = vmatpush1.msra.mxu0 0.0
  %1271 = vmatprep.subr.mxu0 0.0
  %1272 = vmatpush1.msra.mxu0 0.0
  %1273 = vmatprep.subr.mxu0 0.0
  %1274 = vmatpush1.msra.mxu0 0.0
  %1275 = vmatprep.subr.mxu0 0.0
  %1276 = vmatpush1.msra.mxu0 0.0
  %1277 = vmatprep.subr.mxu0 0.0
  %1278 = vmatpush1.msra.mxu0 0.0
  %1279 = vmatprep.mubr.f32.mxu0 0.0
  %1280 = vmatmul.mubr.f32.gmra.mrb[0].mxu0 %v693
  %v1281 = vpop.f32.mrb[0].mxu0
  %v1282 = vadd.f32 %v1213, %v1281
  %v1283 = vpop.f32.mrb[0].mxu0
  %1284 = vdwg.mxu0
  %s1285 = scalar_lea.vmem %s10, 128
  %v1286 = vld [vmem:[%s1285] sm:$0xff]
  %v1287 = vld [vmem:[%s1285 + $0x8] sm:$0xff]
  %v1288 = vld [vmem:[%s1285 + $0x10] sm:$0xff]
  %v1289 = vld [vmem:[%s1285 + $0x18] sm:$0xff]
  %s1290 = scalar_lea.vmem %s12, 4
  %v1291 = vld [vmem:[%s1290] sm:$0x1]
  %v1293 = vlaneseq
  %v1294 = vshrl.u32 %v1293, 7
  %v1295 = vsub.s32 0, %v1294
  %v1296 = vrot.slane %v1291, %v1295
  %1298 = vmatprep.subr.mxu0 0.0
  %1299 = vmatpush1.msra.mxu0 %v1286
  %1300 = vmatprep.subr.mxu0 0.0
  %1301 = vmatpush1.msra.mxu0 %v1287
  %1302 = vmatprep.subr.mxu0 0.0
  %1303 = vmatpush1.msra.mxu0 %v1288
  %1304 = vmatprep.subr.mxu0 0.0
  %1305 = vmatpush1.msra.mxu0 %v1289
  %1306 = vmatprep.subr.mxu0 0.0
  %1307 = vmatpush1.msra.mxu0 0.0
  %1308 = vmatprep.subr.mxu0 0.0
  %1309 = vmatpush1.msra.mxu0 0.0
  %1310 = vmatprep.subr.mxu0 0.0
  %1311 = vmatpush1.msra.mxu0 0.0
  %1312 = vmatprep.subr.mxu0 0.0
  %1313 = vmatpush1.msra.mxu0 0.0
  %1314 = vmatprep.subr.mxu0 0.0
  %1315 = vmatpush1.msra.mxu0 0.0
  %1316 = vmatprep.subr.mxu0 0.0
  %1317 = vmatpush1.msra.mxu0 0.0
  %1318 = vmatprep.subr.mxu0 0.0
  %1319 = vmatpush1.msra.mxu0 0.0
  %1320 = vmatprep.subr.mxu0 0.0
  %1321 = vmatpush1.msra.mxu0 0.0
  %1322 = vmatprep.subr.mxu0 0.0
  %1323 = vmatpush1.msra.mxu0 0.0
  %1324 = vmatprep.subr.mxu0 0.0
  %1325 = vmatpush1.msra.mxu0 0.0
  %1326 = vmatprep.subr.mxu0 0.0
  %1327 = vmatpush1.msra.mxu0 0.0
  %1328 = vmatprep.subr.mxu0 0.0
  %1329 = vmatpush1.msra.mxu0 0.0
  %1330 = vmatprep.subr.mxu0 0.0
  %1331 = vmatpush1.msra.mxu0 0.0
  %1332 = vmatprep.subr.mxu0 0.0
  %1333 = vmatpush1.msra.mxu0 0.0
  %1334 = vmatprep.subr.mxu0 0.0
  %1335 = vmatpush1.msra.mxu0 0.0
  %1336 = vmatprep.subr.mxu0 0.0
  %1337 = vmatpush1.msra.mxu0 0.0
  %1338 = vmatprep.subr.mxu0 0.0
  %1339 = vmatpush1.msra.mxu0 0.0
  %1340 = vmatprep.subr.mxu0 0.0
  %1341 = vmatpush1.msra.mxu0 0.0
  %1342 = vmatprep.subr.mxu0 0.0
  %1343 = vmatpush1.msra.mxu0 0.0
  %1344 = vmatprep.subr.mxu0 0.0
  %1345 = vmatpush1.msra.mxu0 0.0
  %1346 = vmatprep.subr.mxu0 0.0
  %1347 = vmatpush1.msra.mxu0 0.0
  %1348 = vmatprep.subr.mxu0 0.0
  %1349 = vmatpush1.msra.mxu0 0.0
  %1350 = vmatprep.subr.mxu0 0.0
  %1351 = vmatpush1.msra.mxu0 0.0
  %1352 = vmatprep.subr.mxu0 0.0
  %1353 = vmatpush1.msra.mxu0 0.0
  %1354 = vmatprep.subr.mxu0 0.0
  %1355 = vmatpush1.msra.mxu0 0.0
  %1356 = vmatprep.subr.mxu0 0.0
  %1357 = vmatpush1.msra.mxu0 0.0
  %1358 = vmatprep.subr.mxu0 0.0
  %1359 = vmatpush1.msra.mxu0 0.0
  %1360 = vmatprep.subr.mxu0 0.0
  %1361 = vmatpush1.msra.mxu0 0.0
  %1362 = vmatprep.mubr.f32.mxu0 0.0
  %1363 = vmatmul.mubr.f32.gmra.mrb[0].mxu0 %v693
  %v1364 = vpop.f32.mrb[0].mxu0
  %v1365 = vadd.f32 %v1296, %v1364
  %v1366 = vpop.f32.mrb[0].mxu0
  %1367 = vdwg.mxu0
  %s1368 = scalar_lea.vmem %s10, 160
  %v1369 = vld [vmem:[%s1368] sm:$0xff]
  %v1370 = vld [vmem:[%s1368 + $0x8] sm:$0xff]
  %v1371 = vld [vmem:[%s1368 + $0x10] sm:$0xff]
  %v1372 = vld [vmem:[%s1368 + $0x18] sm:$0xff]
  %s1373 = scalar_lea.vmem %s12, 5
  %v1374 = vld [vmem:[%s1373] sm:$0x1]
  %v1376 = vlaneseq
  %v1377 = vshrl.u32 %v1376, 7
  %v1378 = vsub.s32 0, %v1377
  %v1379 = vrot.slane %v1374, %v1378
  %1381 = vmatprep.subr.mxu0 0.0
  %1382 = vmatpush1.msra.mxu0 %v1369
  %1383 = vmatprep.subr.mxu0 0.0
  %1384 = vmatpush1.msra.mxu0 %v1370
  %1385 = vmatprep.subr.mxu0 0.0
  %1386 = vmatpush1.msra.mxu0 %v1371
  %1387 = vmatprep.subr.mxu0 0.0
  %1388 = vmatpush1.msra.mxu0 %v1372
  %1389 = vmatprep.subr.mxu0 0.0
  %1390 = vmatpush1.msra.mxu0 0.0
  %1391 = vmatprep.subr.mxu0 0.0
  %1392 = vmatpush1.msra.mxu0 0.0
  %1393 = vmatprep.subr.mxu0 0.0
  %1394 = vmatpush1.msra.mxu0 0.0
  %1395 = vmatprep.subr.mxu0 0.0
  %1396 = vmatpush1.msra.mxu0 0.0
  %1397 = vmatprep.subr.mxu0 0.0
  %1398 = vmatpush1.msra.mxu0 0.0
  %1399 = vmatprep.subr.mxu0 0.0
  %1400 = vmatpush1.msra.mxu0 0.0
  %1401 = vmatprep.subr.mxu0 0.0
  %1402 = vmatpush1.msra.mxu0 0.0
  %1403 = vmatprep.subr.mxu0 0.0
  %1404 = vmatpush1.msra.mxu0 0.0
  %1405 = vmatprep.subr.mxu0 0.0
  %1406 = vmatpush1.msra.mxu0 0.0
  %1407 = vmatprep.subr.mxu0 0.0
  %1408 = vmatpush1.msra.mxu0 0.0
  %1409 = vmatprep.subr.mxu0 0.0
  %1410 = vmatpush1.msra.mxu0 0.0
  %1411 = vmatprep.subr.mxu0 0.0
  %1412 = vmatpush1.msra.mxu0 0.0
  %1413 = vmatprep.subr.mxu0 0.0
  %1414 = vmatpush1.msra.mxu0 0.0
  %1415 = vmatprep.subr.mxu0 0.0
  %1416 = vmatpush1.msra.mxu0 0.0
  %1417 = vmatprep.subr.mxu0 0.0
  %1418 = vmatpush1.msra.mxu0 0.0
  %1419 = vmatprep.subr.mxu0 0.0
  %1420 = vmatpush1.msra.mxu0 0.0
  %1421 = vmatprep.subr.mxu0 0.0
  %1422 = vmatpush1.msra.mxu0 0.0
  %1423 = vmatprep.subr.mxu0 0.0
  %1424 = vmatpush1.msra.mxu0 0.0
  %1425 = vmatprep.subr.mxu0 0.0
  %1426 = vmatpush1.msra.mxu0 0.0
  %1427 = vmatprep.subr.mxu0 0.0
  %1428 = vmatpush1.msra.mxu0 0.0
  %1429 = vmatprep.subr.mxu0 0.0
  %1430 = vmatpush1.msra.mxu0 0.0
  %1431 = vmatprep.subr.mxu0 0.0
  %1432 = vmatpush1.msra.mxu0 0.0
  %1433 = vmatprep.subr.mxu0 0.0
  %1434 = vmatpush1.msra.mxu0 0.0
  %1435 = vmatprep.subr.mxu0 0.0
  %1436 = vmatpush1.msra.mxu0 0.0
  %1437 = vmatprep.subr.mxu0 0.0
  %1438 = vmatpush1.msra.mxu0 0.0
  %1439 = vmatprep.subr.mxu0 0.0
  %1440 = vmatpush1.msra.mxu0 0.0
  %1441 = vmatprep.subr.mxu0 0.0
  %1442 = vmatpush1.msra.mxu0 0.0
  %1443 = vmatprep.subr.mxu0 0.0
  %1444 = vmatpush1.msra.mxu0 0.0
  %1445 = vmatprep.mubr.f32.mxu0 0.0
  %1446 = vmatmul.mubr.f32.gmra.mrb[0].mxu0 %v693
  %v1447 = vpop.f32.mrb[0].mxu0
  %v1448 = vadd.f32 %v1379, %v1447
  %v1449 = vpop.f32.mrb[0].mxu0
  %1450 = vdwg.mxu0
  %s1451 = scalar_lea.vmem %s11, 96
  %v1452 = vld [vmem:[%s1451] sm:$0xff]
  %v1453 = vld [vmem:[%s1451 + $0x8] sm:$0xff]
  %v1454 = vld [vmem:[%s1451 + $0x10] sm:$0xff]
  %v1455 = vld [vmem:[%s1451 + $0x18] sm:$0xff]
  %s1456 = scalar_lea.vmem %s13, 3
  %v1457 = vld [vmem:[%s1456] sm:$0x1]
  %v1459 = vlaneseq
  %v1460 = vshrl.u32 %v1459, 7
  %v1461 = vsub.s32 0, %v1460
  %v1462 = vrot.slane %v1457, %v1461
  %1464 = vmatprep.subr.mxu0 0.0
  %1465 = vmatpush1.msra.mxu0 %v1452
  %1466 = vmatprep.subr.mxu0 0.0
  %1467 = vmatpush1.msra.mxu0 %v1453
  %1468 = vmatprep.subr.mxu0 0.0
  %1469 = vmatpush1.msra.mxu0 %v1454
  %1470 = vmatprep.subr.mxu0 0.0
  %1471 = vmatpush1.msra.mxu0 %v1455
  %1472 = vmatprep.subr.mxu0 0.0
  %1473 = vmatpush1.msra.mxu0 0.0
  %1474 = vmatprep.subr.mxu0 0.0
  %1475 = vmatpush1.msra.mxu0 0.0
  %1476 = vmatprep.subr.mxu0 0.0
  %1477 = vmatpush1.msra.mxu0 0.0
  %1478 = vmatprep.subr.mxu0 0.0
  %1479 = vmatpush1.msra.mxu0 0.0
  %1480 = vmatprep.subr.mxu0 0.0
  %1481 = vmatpush1.msra.mxu0 0.0
  %1482 = vmatprep.subr.mxu0 0.0
  %1483 = vmatpush1.msra.mxu0 0.0
  %1484 = vmatprep.subr.mxu0 0.0
  %1485 = vmatpush1.msra.mxu0 0.0
  %1486 = vmatprep.subr.mxu0 0.0
  %1487 = vmatpush1.msra.mxu0 0.0
  %1488 = vmatprep.subr.mxu0 0.0
  %1489 = vmatpush1.msra.mxu0 0.0
  %1490 = vmatprep.subr.mxu0 0.0
  %1491 = vmatpush1.msra.mxu0 0.0
  %1492 = vmatprep.subr.mxu0 0.0
  %1493 = vmatpush1.msra.mxu0 0.0
  %1494 = vmatprep.subr.mxu0 0.0
  %1495 = vmatpush1.msra.mxu0 0.0
  %1496 = vmatprep.subr.mxu0 0.0
  %1497 = vmatpush1.msra.mxu0 0.0
  %1498 = vmatprep.subr.mxu0 0.0
  %1499 = vmatpush1.msra.mxu0 0.0
  %1500 = vmatprep.subr.mxu0 0.0
  %1501 = vmatpush1.msra.mxu0 0.0
  %1502 = vmatprep.subr.mxu0 0.0
  %1503 = vmatpush1.msra.mxu0 0.0
  %1504 = vmatprep.subr.mxu0 0.0
  %1505 = vmatpush1.msra.mxu0 0.0
  %1506 = vmatprep.subr.mxu0 0.0
  %1507 = vmatpush1.msra.mxu0 0.0
  %1508 = vmatprep.subr.mxu0 0.0
  %1509 = vmatpush1.msra.mxu0 0.0
  %1510 = vmatprep.subr.mxu0 0.0
  %1511 = vmatpush1.msra.mxu0 0.0
  %1512 = vmatprep.subr.mxu0 0.0
  %1513 = vmatpush1.msra.mxu0 0.0
  %1514 = vmatprep.subr.mxu0 0.0
  %1515 = vmatpush1.msra.mxu0 0.0
  %1516 = vmatprep.subr.mxu0 0.0
  %1517 = vmatpush1.msra.mxu0 0.0
  %1518 = vmatprep.subr.mxu0 0.0
  %1519 = vmatpush1.msra.mxu0 0.0
  %1520 = vmatprep.subr.mxu0 0.0
  %1521 = vmatpush1.msra.mxu0 0.0
  %1522 = vmatprep.subr.mxu0 0.0
  %1523 = vmatpush1.msra.mxu0 0.0
  %1524 = vmatprep.subr.mxu0 0.0
  %1525 = vmatpush1.msra.mxu0 0.0
  %1526 = vmatprep.subr.mxu0 0.0
  %1527 = vmatpush1.msra.mxu0 0.0
  %1528 = vmatprep.mubr.f32.mxu0 0.0
  %1529 = vmatmul.mubr.f32.gmra.mrb[0].mxu0 %v943
  %v1530 = vpop.f32.mrb[0].mxu0
  %v1531 = vadd.f32 %v1462, %v1530
  %v1532 = vpop.f32.mrb[0].mxu0
  %1533 = vdwg.mxu0
  %s1534 = scalar_lea.vmem %s11, 128
  %v1535 = vld [vmem:[%s1534] sm:$0xff]
  %v1536 = vld [vmem:[%s1534 + $0x8] sm:$0xff]
  %v1537 = vld [vmem:[%s1534 + $0x10] sm:$0xff]
  %v1538 = vld [vmem:[%s1534 + $0x18] sm:$0xff]
  %s1539 = scalar_lea.vmem %s13, 4
  %v1540 = vld [vmem:[%s1539] sm:$0x1]
  %v1542 = vlaneseq
  %v1543 = vshrl.u32 %v1542, 7
  %v1544 = vsub.s32 0, %v1543
  %v1545 = vrot.slane %v1540, %v1544
  %1547 = vmatprep.subr.mxu0 0.0
  %1548 = vmatpush1.msra.mxu0 %v1535
  %1549 = vmatprep.subr.mxu0 0.0
  %1550 = vmatpush1.msra.mxu0 %v1536
  %1551 = vmatprep.subr.mxu0 0.0
  %1552 = vmatpush1.msra.mxu0 %v1537
  %1553 = vmatprep.subr.mxu0 0.0
  %1554 = vmatpush1.msra.mxu0 %v1538
  %1555 = vmatprep.subr.mxu0 0.0
  %1556 = vmatpush1.msra.mxu0 0.0
  %1557 = vmatprep.subr.mxu0 0.0
  %1558 = vmatpush1.msra.mxu0 0.0
  %1559 = vmatprep.subr.mxu0 0.0
  %1560 = vmatpush1.msra.mxu0 0.0
  %1561 = vmatprep.subr.mxu0 0.0
  %1562 = vmatpush1.msra.mxu0 0.0
  %1563 = vmatprep.subr.mxu0 0.0
  %1564 = vmatpush1.msra.mxu0 0.0
  %1565 = vmatprep.subr.mxu0 0.0
  %1566 = vmatpush1.msra.mxu0 0.0
  %1567 = vmatprep.subr.mxu0 0.0
  %1568 = vmatpush1.msra.mxu0 0.0
  %1569 = vmatprep.subr.mxu0 0.0
  %1570 = vmatpush1.msra.mxu0 0.0
  %1571 = vmatprep.subr.mxu0 0.0
  %1572 = vmatpush1.msra.mxu0 0.0
  %1573 = vmatprep.subr.mxu0 0.0
  %1574 = vmatpush1.msra.mxu0 0.0
  %1575 = vmatprep.subr.mxu0 0.0
  %1576 = vmatpush1.msra.mxu0 0.0
  %1577 = vmatprep.subr.mxu0 0.0
  %1578 = vmatpush1.msra.mxu0 0.0
  %1579 = vmatprep.subr.mxu0 0.0
  %1580 = vmatpush1.msra.mxu0 0.0
  %1581 = vmatprep.subr.mxu0 0.0
  %1582 = vmatpush1.msra.mxu0 0.0
  %1583 = vmatprep.subr.mxu0 0.0
  %1584 = vmatpush1.msra.mxu0 0.0
  %1585 = vmatprep.subr.mxu0 0.0
  %1586 = vmatpush1.msra.mxu0 0.0
  %1587 = vmatprep.subr.mxu0 0.0
  %1588 = vmatpush1.msra.mxu0 0.0
  %1589 = vmatprep.subr.mxu0 0.0
  %1590 = vmatpush1.msra.mxu0 0.0
  %1591 = vmatprep.subr.mxu0 0.0
  %1592 = vmatpush1.msra.mxu0 0.0
  %1593 = vmatprep.subr.mxu0 0.0
  %1594 = vmatpush1.msra.mxu0 0.0
  %1595 = vmatprep.subr.mxu0 0.0
  %1596 = vmatpush1.msra.mxu0 0.0
  %1597 = vmatprep.subr.mxu0 0.0
  %1598 = vmatpush1.msra.mxu0 0.0
  %1599 = vmatprep.subr.mxu0 0.0
  %1600 = vmatpush1.msra.mxu0 0.0
  %1601 = vmatprep.subr.mxu0 0.0
  %1602 = vmatpush1.msra.mxu0 0.0
  %1603 = vmatprep.subr.mxu0 0.0
  %1604 = vmatpush1.msra.mxu0 0.0
  %1605 = vmatprep.subr.mxu0 0.0
  %1606 = vmatpush1.msra.mxu0 0.0
  %1607 = vmatprep.subr.mxu0 0.0
  %1608 = vmatpush1.msra.mxu0 0.0
  %1609 = vmatprep.subr.mxu0 0.0
  %1610 = vmatpush1.msra.mxu0 0.0
  %1611 = vmatprep.mubr.f32.mxu0 0.0
  %1612 = vmatmul.mubr.f32.gmra.mrb[0].mxu0 %v943
  %v1613 = vpop.f32.mrb[0].mxu0
  %v1614 = vadd.f32 %v1545, %v1613
  %v1615 = vpop.f32.mrb[0].mxu0
  %1616 = vdwg.mxu0
  %s1617 = scalar_lea.vmem %s11, 160
  %v1618 = vld [vmem:[%s1617] sm:$0xff]
  %v1619 = vld [vmem:[%s1617 + $0x8] sm:$0xff]
  %v1620 = vld [vmem:[%s1617 + $0x10] sm:$0xff]
  %v1621 = vld [vmem:[%s1617 + $0x18] sm:$0xff]
  %s1622 = scalar_lea.vmem %s13, 5
  %v1623 = vld [vmem:[%s1622] sm:$0x1]
  %v1625 = vlaneseq
  %v1626 = vshrl.u32 %v1625, 7
  %v1627 = vsub.s32 0, %v1626
  %v1628 = vrot.slane %v1623, %v1627
  %1630 = vmatprep.subr.mxu0 0.0
  %1631 = vmatpush1.msra.mxu0 %v1618
  %1632 = vmatprep.subr.mxu0 0.0
  %1633 = vmatpush1.msra.mxu0 %v1619
  %1634 = vmatprep.subr.mxu0 0.0
  %1635 = vmatpush1.msra.mxu0 %v1620
  %1636 = vmatprep.subr.mxu0 0.0
  %1637 = vmatpush1.msra.mxu0 %v1621
  %1638 = vmatprep.subr.mxu0 0.0
  %1639 = vmatpush1.msra.mxu0 0.0
  %1640 = vmatprep.subr.mxu0 0.0
  %1641 = vmatpush1.msra.mxu0 0.0
  %1642 = vmatprep.subr.mxu0 0.0
  %1643 = vmatpush1.msra.mxu0 0.0
  %1644 = vmatprep.subr.mxu0 0.0
  %1645 = vmatpush1.msra.mxu0 0.0
  %1646 = vmatprep.subr.mxu0 0.0
  %1647 = vmatpush1.msra.mxu0 0.0
  %1648 = vmatprep.subr.mxu0 0.0
  %1649 = vmatpush1.msra.mxu0 0.0
  %1650 = vmatprep.subr.mxu0 0.0
  %1651 = vmatpush1.msra.mxu0 0.0
  %1652 = vmatprep.subr.mxu0 0.0
  %1653 = vmatpush1.msra.mxu0 0.0
  %1654 = vmatprep.subr.mxu0 0.0
  %1655 = vmatpush1.msra.mxu0 0.0
  %1656 = vmatprep.subr.mxu0 0.0
  %1657 = vmatpush1.msra.mxu0 0.0
  %1658 = vmatprep.subr.mxu0 0.0
  %1659 = vmatpush1.msra.mxu0 0.0
  %1660 = vmatprep.subr.mxu0 0.0
  %1661 = vmatpush1.msra.mxu0 0.0
  %1662 = vmatprep.subr.mxu0 0.0
  %1663 = vmatpush1.msra.mxu0 0.0
  %1664 = vmatprep.subr.mxu0 0.0
  %1665 = vmatpush1.msra.mxu0 0.0
  %1666 = vmatprep.subr.mxu0 0.0
  %1667 = vmatpush1.msra.mxu0 0.0
  %1668 = vmatprep.subr.mxu0 0.0
  %1669 = vmatpush1.msra.mxu0 0.0
  %1670 = vmatprep.subr.mxu0 0.0
  %1671 = vmatpush1.msra.mxu0 0.0
  %1672 = vmatprep.subr.mxu0 0.0
  %1673 = vmatpush1.msra.mxu0 0.0
  %1674 = vmatprep.subr.mxu0 0.0
  %1675 = vmatpush1.msra.mxu0 0.0
  %1676 = vmatprep.subr.mxu0 0.0
  %1677 = vmatpush1.msra.mxu0 0.0
  %1678 = vmatprep.subr.mxu0 0.0
  %1679 = vmatpush1.msra.mxu0 0.0
  %1680 = vmatprep.subr.mxu0 0.0
  %1681 = vmatpush1.msra.mxu0 0.0
  %1682 = vmatprep.subr.mxu0 0.0
  %1683 = vmatpush1.msra.mxu0 0.0
  %1684 = vmatprep.subr.mxu0 0.0
  %1685 = vmatpush1.msra.mxu0 0.0
  %1686 = vmatprep.subr.mxu0 0.0
  %1687 = vmatpush1.msra.mxu0 0.0
  %1688 = vmatprep.subr.mxu0 0.0
  %1689 = vmatpush1.msra.mxu0 0.0
  %1690 = vmatprep.subr.mxu0 0.0
  %1691 = vmatpush1.msra.mxu0 0.0
  %1692 = vmatprep.subr.mxu0 0.0
  %1693 = vmatpush1.msra.mxu0 0.0
  %1694 = vmatprep.mubr.f32.mxu0 0.0
  %1695 = vmatmul.mubr.f32.gmra.mrb[0].mxu0 %v943
  %v1696 = vpop.f32.mrb[0].mxu0
  %v1697 = vadd.f32 %v1628, %v1696
  %v1698 = vpop.f32.mrb[0].mxu0
  %1699 = vdwg.mxu0
  %v1700 = vadd.f32 %v1282, %v1531
  %v1701 = vxor.u32 %v1700, 2147483648
  %v1702 = vmul.f32 %v1701, 1.442695
  %v1703 = vpow.pop %v1702
  %v1704 = vadd.f32 %v1703, 1.0
  %v1705 = vrcp.pop %v1704
  %v1706 = vmul.f32 1.0, %v1705
  %v1707 = vadd.f32 %v1365, %v1614
  %v1708 = vxor.u32 %v1707, 2147483648
  %v1709 = vmul.f32 %v1708, 1.442695
  %v1710 = vpow.pop %v1709
  %v1711 = vadd.f32 %v1710, 1.0
  %v1712 = vrcp.pop %v1711
  %v1713 = vmul.f32 1.0, %v1712
  %v1714 = vmul.f32 %v1706, %v1697
  %v1715 = vadd.f32 %v1448, %v1714
  %v1716 = vtanh.pop %v1715
  %v1717 = vsub.f32 1.0, %v1713
  %v1718 = vmul.f32 %v1717, %v1716
  %v1719 = vmul.f32 %v1713, 0.0
  %v1720 = vadd.f32 %v1718, %v1719
  %v1721 = vmul.f32 %v70, %v1201
  %v1722 = vsub.f32 1.0, %v70
  %v1723 = vmul.f32 %v1722, %v1720
  %v1724 = vadd.f32 %v1721, %v1723
  %1725 = vmatprep.subr.mxu0 0.0
  %1726 = vmatpush1.msra.mxu0 %v1724
  %1727 = vmatprep.subr.mxu0 0.0
  %1728 = vmatpush1.msra.mxu0 0.0
  %1729 = vmatprep.subr.mxu0 0.0
  %1730 = vmatpush1.msra.mxu0 0.0
  %1731 = vmatprep.subr.mxu0 0.0
  %1732 = vmatpush1.msra.mxu0 0.0
  %1733 = vmatprep.subr.mxu0 0.0
  %1734 = vmatpush1.msra.mxu0 0.0
  %1735 = vmatprep.subr.mxu0 0.0
  %1736 = vmatpush1.msra.mxu0 0.0
  %1737 = vmatprep.subr.mxu0 0.0
  %1738 = vmatpush1.msra.mxu0 0.0
  %1739 = vmatprep.subr.mxu0 0.0
  %1740 = vmatpush1.msra.mxu0 0.0
  %1741 = vmatprep.subr.mxu0 0.0
  %1742 = vmatpush1.msra.mxu0 0.0
  %1743 = vmatprep.subr.mxu0 0.0
  %1744 = vmatpush1.msra.mxu0 0.0
  %1745 = vmatprep.subr.mxu0 0.0
  %1746 = vmatpush1.msra.mxu0 0.0
  %1747 = vmatprep.subr.mxu0 0.0
  %1748 = vmatpush1.msra.mxu0 0.0
  %1749 = vmatprep.subr.mxu0 0.0
  %1750 = vmatpush1.msra.mxu0 0.0
  %1751 = vmatprep.subr.mxu0 0.0
  %1752 = vmatpush1.msra.mxu0 0.0
  %1753 = vmatprep.subr.mxu0 0.0
  %1754 = vmatpush1.msra.mxu0 0.0
  %1755 = vmatprep.subr.mxu0 0.0
  %1756 = vmatpush1.msra.mxu0 0.0
  %1757 = vmatprep.subr.mxu0 0.0
  %1758 = vmatpush1.msra.mxu0 0.0
  %1759 = vmatprep.subr.mxu0 0.0
  %1760 = vmatpush1.msra.mxu0 0.0
  %1761 = vmatprep.subr.mxu0 0.0
  %1762 = vmatpush1.msra.mxu0 0.0
  %1763 = vmatprep.subr.mxu0 0.0
  %1764 = vmatpush1.msra.mxu0 0.0
  %1765 = vmatprep.subr.mxu0 0.0
  %1766 = vmatpush1.msra.mxu0 0.0
  %1767 = vmatprep.subr.mxu0 0.0
  %1768 = vmatpush1.msra.mxu0 0.0
  %1769 = vmatprep.subr.mxu0 0.0
  %1770 = vmatpush1.msra.mxu0 0.0
  %1771 = vmatprep.subr.mxu0 0.0
  %1772 = vmatpush1.msra.mxu0 0.0
  %1773 = vmatprep.subr.mxu0 0.0
  %1774 = vmatpush1.msra.mxu0 0.0
  %1775 = vmatprep.subr.mxu0 0.0
  %1776 = vmatpush1.msra.mxu0 0.0
  %1777 = vmatprep.subr.mxu0 0.0
  %1778 = vmatpush1.msra.mxu0 0.0
  %1779 = vmatprep.subr.mxu0 0.0
  %1780 = vmatpush1.msra.mxu0 0.0
  %1781 = vmatprep.subr.mxu0 0.0
  %1782 = vmatpush1.msra.mxu0 0.0
  %1783 = vmatprep.subr.mxu0 0.0
  %1784 = vmatpush1.msra.mxu0 0.0
  %1785 = vmatprep.subr.mxu0 0.0
  %1786 = vmatpush1.msra.mxu0 0.0
  %1787 = vmatprep.subr.mxu0 0.0
  %1788 = vmatpush1.msra.mxu0 0.0
  %1789 = vmatprep.mubr.f32.mxu0 0.0
  %1790 = vmatmul.mubr.f32.gmra.mrb[0].mxu0 %v102
  %v1791 = vpop.f32.mrb[0].mxu0
  %v1792 = vadd.f32 0.0, %v1791
  %v1793 = vpop.f32.mrb[0].mxu0
  %1794 = vmatprep.mubr.f32.mxu0 0.0
  %1795 = vmatmul.mubr.f32.gmra.mrb[0].mxu0 %v105
  %v1796 = vpop.f32.mrb[0].mxu0
  %v1797 = vadd.f32 0.0, %v1796
  %v1798 = vpop.f32.mrb[0].mxu0
  %1799 = vdwg.mxu0
  %1800 = vmatprep.subr.mxu0 0.0
  %1801 = vmatpush1.msra.mxu0 %v1724
  %1802 = vmatprep.subr.mxu0 0.0
  %1803 = vmatpush1.msra.mxu0 0.0
  %1804 = vmatprep.subr.mxu0 0.0
  %1805 = vmatpush1.msra.mxu0 0.0
  %1806 = vmatprep.subr.mxu0 0.0
  %1807 = vmatpush1.msra.mxu0 0.0
  %1808 = vmatprep.subr.mxu0 0.0
  %1809 = vmatpush1.msra.mxu0 0.0
  %1810 = vmatprep.subr.mxu0 0.0
  %1811 = vmatpush1.msra.mxu0 0.0
  %1812 = vmatprep.subr.mxu0 0.0
  %1813 = vmatpush1.msra.mxu0 0.0
  %1814 = vmatprep.subr.mxu0 0.0
  %1815 = vmatpush1.msra.mxu0 0.0
  %1816 = vmatprep.subr.mxu0 0.0
  %1817 = vmatpush1.msra.mxu0 0.0
  %1818 = vmatprep.subr.mxu0 0.0
  %1819 = vmatpush1.msra.mxu0 0.0
  %1820 = vmatprep.subr.mxu0 0.0
  %1821 = vmatpush1.msra.mxu0 0.0
  %1822 = vmatprep.subr.mxu0 0.0
  %1823 = vmatpush1.msra.mxu0 0.0
  %1824 = vmatprep.subr.mxu0 0.0
  %1825 = vmatpush1.msra.mxu0 0.0
  %1826 = vmatprep.subr.mxu0 0.0
  %1827 = vmatpush1.msra.mxu0 0.0
  %1828 = vmatprep.subr.mxu0 0.0
  %1829 = vmatpush1.msra.mxu0 0.0
  %1830 = vmatprep.subr.mxu0 0.0
  %1831 = vmatpush1.msra.mxu0 0.0
  %1832 = vmatprep.subr.mxu0 0.0
  %1833 = vmatpush1.msra.mxu0 0.0
  %1834 = vmatprep.subr.mxu0 0.0
  %1835 = vmatpush1.msra.mxu0 0.0
  %1836 = vmatprep.subr.mxu0 0.0
  %1837 = vmatpush1.msra.mxu0 0.0
  %1838 = vmatprep.subr.mxu0 0.0
  %1839 = vmatpush1.msra.mxu0 0.0
  %1840 = vmatprep.subr.mxu0 0.0
  %1841 = vmatpush1.msra.mxu0 0.0
  %1842 = vmatprep.subr.mxu0 0.0
  %1843 = vmatpush1.msra.mxu0 0.0
  %1844 = vmatprep.subr.mxu0 0.0
  %1845 = vmatpush1.msra.mxu0 0.0
  %1846 = vmatprep.subr.mxu0 0.0
  %1847 = vmatpush1.msra.mxu0 0.0
  %1848 = vmatprep.subr.mxu0 0.0
  %1849 = vmatpush1.msra.mxu0 0.0
  %1850 = vmatprep.subr.mxu0 0.0
  %1851 = vmatpush1.msra.mxu0 0.0
  %1852 = vmatprep.subr.mxu0 0.0
  %1853 = vmatpush1.msra.mxu0 0.0
  %1854 = vmatprep.subr.mxu0 0.0
  %1855 = vmatpush1.msra.mxu0 0.0
  %1856 = vmatprep.subr.mxu0 0.0
  %1857 = vmatpush1.msra.mxu0 0.0
  %1858 = vmatprep.subr.mxu0 0.0
  %1859 = vmatpush1.msra.mxu0 0.0
  %1860 = vmatprep.subr.mxu0 0.0
  %1861 = vmatpush1.msra.mxu0 0.0
  %1862 = vmatprep.subr.mxu0 0.0
  %1863 = vmatpush1.msra.mxu0 0.0
  %1864 = vmatprep.mubr.f32.mxu0 0.0
  %1865 = vmatmul.mubr.f32.gmra.mrb[0].mxu0 %v183
  %v1866 = vpop.f32.mrb[0].mxu0
  %v1867 = vadd.f32 0.0, %v1866
  %v1868 = vpop.f32.mrb[0].mxu0
  %1869 = vmatprep.mubr.f32.mxu0 0.0
  %1870 = vmatmul.mubr.f32.gmra.mrb[0].mxu0 %v186
  %v1871 = vpop.f32.mrb[0].mxu0
  %v1872 = vadd.f32 0.0, %v1871
  %v1873 = vpop.f32.mrb[0].mxu0
  %1874 = vdwg.mxu0
  %v1876 = vsel %vm263, %v1867, 0
  %v1879 = vsel %vm263, %v1872, 0
  %1881 = vmatprep.subr.mxu0 0.0
  %1882 = vmatpush1.msra.mxu0 %v78
  %1883 = vmatprep.subr.mxu0 0.0
  %1884 = vmatpush1.msra.mxu0 %v79
  %1885 = vmatprep.subr.mxu0 0.0
  %1886 = vmatpush1.msra.mxu0 %v80
  %1887 = vmatprep.subr.mxu0 0.0
  %1888 = vmatpush1.msra.mxu0 %v81
  %1889 = vmatprep.subr.mxu0 0.0
  %1890 = vmatpush1.msra.mxu0 0.0
  %1891 = vmatprep.subr.mxu0 0.0
  %1892 = vmatpush1.msra.mxu0 0.0
  %1893 = vmatprep.subr.mxu0 0.0
  %1894 = vmatpush1.msra.mxu0 0.0
  %1895 = vmatprep.subr.mxu0 0.0
  %1896 = vmatpush1.msra.mxu0 0.0
  %1897 = vmatprep.subr.mxu0 0.0
  %1898 = vmatpush1.msra.mxu0 0.0
  %1899 = vmatprep.subr.mxu0 0.0
  %1900 = vmatpush1.msra.mxu0 0.0
  %1901 = vmatprep.subr.mxu0 0.0
  %1902 = vmatpush1.msra.mxu0 0.0
  %1903 = vmatprep.subr.mxu0 0.0
  %1904 = vmatpush1.msra.mxu0 0.0
  %1905 = vmatprep.subr.mxu0 0.0
  %1906 = vmatpush1.msra.mxu0 0.0
  %1907 = vmatprep.subr.mxu0 0.0
  %1908 = vmatpush1.msra.mxu0 0.0
  %1909 = vmatprep.subr.mxu0 0.0
  %1910 = vmatpush1.msra.mxu0 0.0
  %1911 = vmatprep.subr.mxu0 0.0
  %1912 = vmatpush1.msra.mxu0 0.0
  %1913 = vmatprep.subr.mxu0 0.0
  %1914 = vmatpush1.msra.mxu0 0.0
  %1915 = vmatprep.subr.mxu0 0.0
  %1916 = vmatpush1.msra.mxu0 0.0
  %1917 = vmatprep.subr.mxu0 0.0
  %1918 = vmatpush1.msra.mxu0 0.0
  %1919 = vmatprep.subr.mxu0 0.0
  %1920 = vmatpush1.msra.mxu0 0.0
  %1921 = vmatprep.subr.mxu0 0.0
  %1922 = vmatpush1.msra.mxu0 0.0
  %1923 = vmatprep.subr.mxu0 0.0
  %1924 = vmatpush1.msra.mxu0 0.0
  %1925 = vmatprep.subr.mxu0 0.0
  %1926 = vmatpush1.msra.mxu0 0.0
  %1927 = vmatprep.subr.mxu0 0.0
  %1928 = vmatpush1.msra.mxu0 0.0
  %1929 = vmatprep.subr.mxu0 0.0
  %1930 = vmatpush1.msra.mxu0 0.0
  %1931 = vmatprep.subr.mxu0 0.0
  %1932 = vmatpush1.msra.mxu0 0.0
  %1933 = vmatprep.subr.mxu0 0.0
  %1934 = vmatpush1.msra.mxu0 0.0
  %1935 = vmatprep.subr.mxu0 0.0
  %1936 = vmatpush1.msra.mxu0 0.0
  %1937 = vmatprep.subr.mxu0 0.0
  %1938 = vmatpush1.msra.mxu0 0.0
  %1939 = vmatprep.subr.mxu0 0.0
  %1940 = vmatpush1.msra.mxu0 0.0
  %1941 = vmatprep.subr.mxu0 0.0
  %1942 = vmatpush1.msra.mxu0 0.0
  %1943 = vmatprep.subr.mxu0 0.0
  %1944 = vmatpush1.msra.mxu0 0.0
  %1945 = vmatprep.mubr.f32.mxu0 0.0
  %1946 = vmatmul.mubr.f32.gmra.mrb[0].mxu0 %v1876
  %v1947 = vpop.f32.mrb[0].mxu0
  %v1948 = vadd.f32 0.0, %v1947
  %v1949 = vpop.f32.mrb[0].mxu0
  %1950 = vmatprep.mubr.f32.mxu0 0.0
  %1951 = vmatmul.mubr.f32.gmra.mrb[0].mxu0 %v1879
  %v1952 = vpop.f32.mrb[0].mxu0
  %v1953 = vadd.f32 0.0, %v1952
  %v1954 = vpop.f32.mrb[0].mxu0
  %1955 = vdwg.mxu0
  %v1957 = vsel %vm263, %v1792, 0
  %v1960 = vsel %vm263, %v1797, 0
  %1962 = vmatprep.subr.mxu0 0.0
  %1963 = vmatpush1.msra.mxu0 %v73
  %1964 = vmatprep.subr.mxu0 0.0
  %1965 = vmatpush1.msra.mxu0 %v74
  %1966 = vmatprep.subr.mxu0 0.0
  %1967 = vmatpush1.msra.mxu0 %v75
  %1968 = vmatprep.subr.mxu0 0.0
  %1969 = vmatpush1.msra.mxu0 %v76
  %1970 = vmatprep.subr.mxu0 0.0
  %1971 = vmatpush1.msra.mxu0 0.0
  %1972 = vmatprep.subr.mxu0 0.0
  %1973 = vmatpush1.msra.mxu0 0.0
  %1974 = vmatprep.subr.mxu0 0.0
  %1975 = vmatpush1.msra.mxu0 0.0
  %1976 = vmatprep.subr.mxu0 0.0
  %1977 = vmatpush1.msra.mxu0 0.0
  %1978 = vmatprep.subr.mxu0 0.0
  %1979 = vmatpush1.msra.mxu0 0.0
  %1980 = vmatprep.subr.mxu0 0.0
  %1981 = vmatpush1.msra.mxu0 0.0
  %1982 = vmatprep.subr.mxu0 0.0
  %1983 = vmatpush1.msra.mxu0 0.0
  %1984 = vmatprep.subr.mxu0 0.0
  %1985 = vmatpush1.msra.mxu0 0.0
  %1986 = vmatprep.subr.mxu0 0.0
  %1987 = vmatpush1.msra.mxu0 0.0
  %1988 = vmatprep.subr.mxu0 0.0
  %1989 = vmatpush1.msra.mxu0 0.0
  %1990 = vmatprep.subr.mxu0 0.0
  %1991 = vmatpush1.msra.mxu0 0.0
  %1992 = vmatprep.subr.mxu0 0.0
  %1993 = vmatpush1.msra.mxu0 0.0
  %1994 = vmatprep.subr.mxu0 0.0
  %1995 = vmatpush1.msra.mxu0 0.0
  %1996 = vmatprep.subr.mxu0 0.0
  %1997 = vmatpush1.msra.mxu0 0.0
  %1998 = vmatprep.subr.mxu0 0.0
  %1999 = vmatpush1.msra.mxu0 0.0
  %2000 = vmatprep.subr.mxu0 0.0
  %2001 = vmatpush1.msra.mxu0 0.0
  %2002 = vmatprep.subr.mxu0 0.0
  %2003 = vmatpush1.msra.mxu0 0.0
  %2004 = vmatprep.subr.mxu0 0.0
  %2005 = vmatpush1.msra.mxu0 0.0
  %2006 = vmatprep.subr.mxu0 0.0
  %2007 = vmatpush1.msra.mxu0 0.0
  %2008 = vmatprep.subr.mxu0 0.0
  %2009 = vmatpush1.msra.mxu0 0.0
  %2010 = vmatprep.subr.mxu0 0.0
  %2011 = vmatpush1.msra.mxu0 0.0
  %2012 = vmatprep.subr.mxu0 0.0
  %2013 = vmatpush1.msra.mxu0 0.0
  %2014 = vmatprep.subr.mxu0 0.0
  %2015 = vmatpush1.msra.mxu0 0.0
  %2016 = vmatprep.subr.mxu0 0.0
  %2017 = vmatpush1.msra.mxu0 0.0
  %2018 = vmatprep.subr.mxu0 0.0
  %2019 = vmatpush1.msra.mxu0 0.0
  %2020 = vmatprep.subr.mxu0 0.0
  %2021 = vmatpush1.msra.mxu0 0.0
  %2022 = vmatprep.subr.mxu0 0.0
  %2023 = vmatpush1.msra.mxu0 0.0
  %2024 = vmatprep.subr.mxu0 0.0
  %2025 = vmatpush1.msra.mxu0 0.0
  %2026 = vmatprep.mubr.f32.mxu0 0.0
  %2027 = vmatmul.mubr.f32.gmra.mrb[0].mxu0 %v1957
  %v2028 = vpop.f32.mrb[0].mxu0
  %v2029 = vadd.f32 %v1948, %v2028
  %v2030 = vpop.f32.mrb[0].mxu0
  %2031 = vmatprep.mubr.f32.mxu0 0.0
  %2032 = vmatmul.mubr.f32.gmra.mrb[0].mxu0 %v1960
  %v2033 = vpop.f32.mrb[0].mxu0
  %v2034 = vadd.f32 %v1953, %v2033
  %v2035 = vpop.f32.mrb[0].mxu0
  %2036 = vdwg.mxu0
  %v2037 = vadd.f32 %v2029, %v71
  %v2038 = vadd.f32 %v2034, %v72
  %v2039 = vmax.f32 %v2037, 0.0
  %v2040 = vmax.f32 %v2038, 0.0
  %v2042 = vsel %vm436, %v2039, 0
  %v2045 = vsel %vm436, %v2040, 0
  %2047 = vmatprep.subr.mxu0 0.0
  %2048 = vmatpush1.msra.mxu0 %v82
  %2049 = vmatprep.subr.mxu0 0.0
  %2050 = vmatpush1.msra.mxu0 %v83
  %2051 = vmatprep.subr.mxu0 0.0
  %2052 = vmatpush1.msra.mxu0 %v84
  %2053 = vmatprep.subr.mxu0 0.0
  %2054 = vmatpush1.msra.mxu0 %v85
  %2055 = vmatprep.subr.mxu0 0.0
  %2056 = vmatpush1.msra.mxu0 %v86
  %2057 = vmatprep.subr.mxu0 0.0
  %2058 = vmatpush1.msra.mxu0 %v87
  %2059 = vmatprep.subr.mxu0 0.0
  %2060 = vmatpush1.msra.mxu0 %v88
  %2061 = vmatprep.subr.mxu0 0.0
  %2062 = vmatpush1.msra.mxu0 %v89
  %2063 = vmatprep.subr.mxu0 0.0
  %2064 = vmatpush1.msra.mxu0 0.0
  %2065 = vmatprep.subr.mxu0 0.0
  %2066 = vmatpush1.msra.mxu0 0.0
  %2067 = vmatprep.subr.mxu0 0.0
  %2068 = vmatpush1.msra.mxu0 0.0
  %2069 = vmatprep.subr.mxu0 0.0
  %2070 = vmatpush1.msra.mxu0 0.0
  %2071 = vmatprep.subr.mxu0 0.0
  %2072 = vmatpush1.msra.mxu0 0.0
  %2073 = vmatprep.subr.mxu0 0.0
  %2074 = vmatpush1.msra.mxu0 0.0
  %2075 = vmatprep.subr.mxu0 0.0
  %2076 = vmatpush1.msra.mxu0 0.0
  %2077 = vmatprep.subr.mxu0 0.0
  %2078 = vmatpush1.msra.mxu0 0.0
  %2079 = vmatprep.subr.mxu0 0.0
  %2080 = vmatpush1.msra.mxu0 0.0
  %2081 = vmatprep.subr.mxu0 0.0
  %2082 = vmatpush1.msra.mxu0 0.0
  %2083 = vmatprep.subr.mxu0 0.0
  %2084 = vmatpush1.msra.mxu0 0.0
  %2085 = vmatprep.subr.mxu0 0.0
  %2086 = vmatpush1.msra.mxu0 0.0
  %2087 = vmatprep.subr.mxu0 0.0
  %2088 = vmatpush1.msra.mxu0 0.0
  %2089 = vmatprep.subr.mxu0 0.0
  %2090 = vmatpush1.msra.mxu0 0.0
  %2091 = vmatprep.subr.mxu0 0.0
  %2092 = vmatpush1.msra.mxu0 0.0
  %2093 = vmatprep.subr.mxu0 0.0
  %2094 = vmatpush1.msra.mxu0 0.0
  %2095 = vmatprep.subr.mxu0 0.0
  %2096 = vmatpush1.msra.mxu0 0.0
  %2097 = vmatprep.subr.mxu0 0.0
  %2098 = vmatpush1.msra.mxu0 0.0
  %2099 = vmatprep.subr.mxu0 0.0
  %2100 = vmatpush1.msra.mxu0 0.0
  %2101 = vmatprep.subr.mxu0 0.0
  %2102 = vmatpush1.msra.mxu0 0.0
  %2103 = vmatprep.subr.mxu0 0.0
  %2104 = vmatpush1.msra.mxu0 0.0
  %2105 = vmatprep.subr.mxu0 0.0
  %2106 = vmatpush1.msra.mxu0 0.0
  %2107 = vmatprep.subr.mxu0 0.0
  %2108 = vmatpush1.msra.mxu0 0.0
  %2109 = vmatprep.subr.mxu0 0.0
  %2110 = vmatpush1.msra.mxu0 0.0
  %2111 = vmatprep.mubr.f32.mxu0 0.0
  %2112 = vmatmul.mubr.f32.gmra.mrb[0].mxu0 %v2042
  %v2113 = vpop.f32.mrb[0].mxu0
  %v2114 = vadd.f32 %v434, %v2113
  %v2115 = vpop.f32.mrb[0].mxu0
  %2116 = vmatprep.mubr.f32.mxu0 0.0
  %2117 = vmatmul.mubr.f32.gmra.mrb[0].mxu0 %v2045
  %v2118 = vpop.f32.mrb[0].mxu0
  %v2119 = vadd.f32 %v434, %v2118
  %v2120 = vpop.f32.mrb[0].mxu0
  %2121 = vdwg.mxu0
  %v2122 = vmax.f32 %v2114, 0.0
  %v2123 = vmax.f32 %v2119, 0.0
  %v2125 = vsel %vm436, %v2122, 0
  %v2128 = vsel %vm436, %v2123, 0
  %2130 = vmatprep.subr.mxu0 0.0
  %2131 = vmatpush1.msra.mxu0 %v91
  %2132 = vmatprep.subr.mxu0 0.0
  %2133 = vmatpush1.msra.mxu0 %v92
  %2134 = vmatprep.subr.mxu0 0.0
  %2135 = vmatpush1.msra.mxu0 %v93
  %2136 = vmatprep.subr.mxu0 0.0
  %2137 = vmatpush1.msra.mxu0 %v94
  %2138 = vmatprep.subr.mxu0 0.0
  %2139 = vmatpush1.msra.mxu0 %v95
  %2140 = vmatprep.subr.mxu0 0.0
  %2141 = vmatpush1.msra.mxu0 %v96
  %2142 = vmatprep.subr.mxu0 0.0
  %2143 = vmatpush1.msra.mxu0 %v97
  %2144 = vmatprep.subr.mxu0 0.0
  %2145 = vmatpush1.msra.mxu0 %v98
  %2146 = vmatprep.subr.mxu0 0.0
  %2147 = vmatpush1.msra.mxu0 0.0
  %2148 = vmatprep.subr.mxu0 0.0
  %2149 = vmatpush1.msra.mxu0 0.0
  %2150 = vmatprep.subr.mxu0 0.0
  %2151 = vmatpush1.msra.mxu0 0.0
  %2152 = vmatprep.subr.mxu0 0.0
  %2153 = vmatpush1.msra.mxu0 0.0
  %2154 = vmatprep.subr.mxu0 0.0
  %2155 = vmatpush1.msra.mxu0 0.0
  %2156 = vmatprep.subr.mxu0 0.0
  %2157 = vmatpush1.msra.mxu0 0.0
  %2158 = vmatprep.subr.mxu0 0.0
  %2159 = vmatpush1.msra.mxu0 0.0
  %2160 = vmatprep.subr.mxu0 0.0
  %2161 = vmatpush1.msra.mxu0 0.0
  %2162 = vmatprep.subr.mxu0 0.0
  %2163 = vmatpush1.msra.mxu0 0.0
  %2164 = vmatprep.subr.mxu0 0.0
  %2165 = vmatpush1.msra.mxu0 0.0
  %2166 = vmatprep.subr.mxu0 0.0
  %2167 = vmatpush1.msra.mxu0 0.0
  %2168 = vmatprep.subr.mxu0 0.0
  %2169 = vmatpush1.msra.mxu0 0.0
  %2170 = vmatprep.subr.mxu0 0.0
  %2171 = vmatpush1.msra.mxu0 0.0
  %2172 = vmatprep.subr.mxu0 0.0
  %2173 = vmatpush1.msra.mxu0 0.0
  %2174 = vmatprep.subr.mxu0 0.0
  %2175 = vmatpush1.msra.mxu0 0.0
  %2176 = vmatprep.subr.mxu0 0.0
  %2177 = vmatpush1.msra.mxu0 0.0
  %2178 = vmatprep.subr.mxu0 0.0
  %2179 = vmatpush1.msra.mxu0 0.0
  %2180 = vmatprep.subr.mxu0 0.0
  %2181 = vmatpush1.msra.mxu0 0.0
  %2182 = vmatprep.subr.mxu0 0.0
  %2183 = vmatpush1.msra.mxu0 0.0
  %2184 = vmatprep.subr.mxu0 0.0
  %2185 = vmatpush1.msra.mxu0 0.0
  %2186 = vmatprep.subr.mxu0 0.0
  %2187 = vmatpush1.msra.mxu0 0.0
  %2188 = vmatprep.subr.mxu0 0.0
  %2189 = vmatpush1.msra.mxu0 0.0
  %2190 = vmatprep.subr.mxu0 0.0
  %2191 = vmatpush1.msra.mxu0 0.0
  %2192 = vmatprep.subr.mxu0 0.0
  %2193 = vmatpush1.msra.mxu0 0.0
  %2194 = vmatprep.mubr.f32.mxu0 0.0
  %2195 = vmatmul.mubr.f32.gmra.mrb[0].mxu0 %v2125
  %v2196 = vpop.f32.mrb[0].mxu0
  %v2197 = vadd.f32 %v524, %v2196
  %v2198 = vpop.f32.mrb[0].mxu0
  %2199 = vmatprep.mubr.f32.mxu0 0.0
  %2200 = vmatmul.mubr.f32.gmra.mrb[0].mxu0 %v2128
  %v2201 = vpop.f32.mrb[0].mxu0
  %v2202 = vadd.f32 %v524, %v2201
  %v2203 = vpop.f32.mrb[0].mxu0
  %2204 = vdwg.mxu0
  %2205 = vmatprep.subr.mxu0 0.0
  %2206 = vmatpush1.msra.mxu0 %v2197
  %2207 = vmatprep.subr.mxu0 0.0
  %2208 = vmatpush1.msra.mxu0 %v2202
  %2209 = vmatprep.subr.mxu0 0.0
  %2210 = vmatpush1.msra.mxu0 0.0
  %2211 = vmatprep.subr.mxu0 0.0
  %2212 = vmatpush1.msra.mxu0 0.0
  %2213 = vmatprep.subr.mxu0 0.0
  %2214 = vmatpush1.msra.mxu0 0.0
  %2215 = vmatprep.subr.mxu0 0.0
  %2216 = vmatpush1.msra.mxu0 0.0
  %2217 = vmatprep.subr.mxu0 0.0
  %2218 = vmatpush1.msra.mxu0 0.0
  %2219 = vmatprep.subr.mxu0 0.0
  %2220 = vmatpush1.msra.mxu0 0.0
  %2221 = vmatprep.subr.mxu0 0.0
  %2222 = vmatpush1.msra.mxu0 0.0
  %2223 = vmatprep.subr.mxu0 0.0
  %2224 = vmatpush1.msra.mxu0 0.0
  %2225 = vmatprep.subr.mxu0 0.0
  %2226 = vmatpush1.msra.mxu0 0.0
  %2227 = vmatprep.subr.mxu0 0.0
  %2228 = vmatpush1.msra.mxu0 0.0
  %2229 = vmatprep.subr.mxu0 0.0
  %2230 = vmatpush1.msra.mxu0 0.0
  %2231 = vmatprep.subr.mxu0 0.0
  %2232 = vmatpush1.msra.mxu0 0.0
  %2233 = vmatprep.subr.mxu0 0.0
  %2234 = vmatpush1.msra.mxu0 0.0
  %2235 = vmatprep.subr.mxu0 0.0
  %2236 = vmatpush1.msra.mxu0 0.0
  %2237 = vmatprep.subr.mxu0 0.0
  %2238 = vmatpush1.msra.mxu0 0.0
  %2239 = vmatprep.subr.mxu0 0.0
  %2240 = vmatpush1.msra.mxu0 0.0
  %2241 = vmatprep.subr.mxu0 0.0
  %2242 = vmatpush1.msra.mxu0 0.0
  %2243 = vmatprep.subr.mxu0 0.0
  %2244 = vmatpush1.msra.mxu0 0.0
  %2245 = vmatprep.subr.mxu0 0.0
  %2246 = vmatpush1.msra.mxu0 0.0
  %2247 = vmatprep.subr.mxu0 0.0
  %2248 = vmatpush1.msra.mxu0 0.0
  %2249 = vmatprep.subr.mxu0 0.0
  %2250 = vmatpush1.msra.mxu0 0.0
  %2251 = vmatprep.subr.mxu0 0.0
  %2252 = vmatpush1.msra.mxu0 0.0
  %2253 = vmatprep.subr.mxu0 0.0
  %2254 = vmatpush1.msra.mxu0 0.0
  %2255 = vmatprep.subr.mxu0 0.0
  %2256 = vmatpush1.msra.mxu0 0.0
  %2257 = vmatprep.subr.mxu0 0.0
  %2258 = vmatpush1.msra.mxu0 0.0
  %2259 = vmatprep.subr.mxu0 0.0
  %2260 = vmatpush1.msra.mxu0 0.0
  %2261 = vmatprep.subr.mxu0 0.0
  %2262 = vmatpush1.msra.mxu0 0.0
  %2263 = vmatprep.subr.mxu0 0.0
  %2264 = vmatpush1.msra.mxu0 0.0
  %2265 = vmatprep.subr.mxu0 0.0
  %2266 = vmatpush1.msra.mxu0 0.0
  %2267 = vmatprep.subr.mxu0 0.0
  %2268 = vmatpush1.msra.mxu0 0.0
  %2269 = vmatprep.mubr.f32.mxu0 0.0
  %2270 = vmatmul.mubr.f32.gmra.mrb[0].mxu0 %v609
  %v2271 = vpop.f32.mrb[0].mxu0
  %v2272 = vadd.f32 0.0, %v2271
  %v2273 = vpop.f32.mrb[0].mxu0
  %2274 = vdwg.mxu0
  %v2276 = vsel %vm263, %v2272, 0
  %2278 = vmatprep.subr.mxu0 0.0
  %2279 = vmatpush1.msra.mxu0 %v681
  %2280 = vmatprep.subr.mxu0 0.0
  %2281 = vmatpush1.msra.mxu0 %v682
  %2282 = vmatprep.subr.mxu0 0.0
  %2283 = vmatpush1.msra.mxu0 %v683
  %2284 = vmatprep.subr.mxu0 0.0
  %2285 = vmatpush1.msra.mxu0 %v684
  %2286 = vmatprep.subr.mxu0 0.0
  %2287 = vmatpush1.msra.mxu0 0.0
  %2288 = vmatprep.subr.mxu0 0.0
  %2289 = vmatpush1.msra.mxu0 0.0
  %2290 = vmatprep.subr.mxu0 0.0
  %2291 = vmatpush1.msra.mxu0 0.0
  %2292 = vmatprep.subr.mxu0 0.0
  %2293 = vmatpush1.msra.mxu0 0.0
  %2294 = vmatprep.subr.mxu0 0.0
  %2295 = vmatpush1.msra.mxu0 0.0
  %2296 = vmatprep.subr.mxu0 0.0
  %2297 = vmatpush1.msra.mxu0 0.0
  %2298 = vmatprep.subr.mxu0 0.0
  %2299 = vmatpush1.msra.mxu0 0.0
  %2300 = vmatprep.subr.mxu0 0.0
  %2301 = vmatpush1.msra.mxu0 0.0
  %2302 = vmatprep.subr.mxu0 0.0
  %2303 = vmatpush1.msra.mxu0 0.0
  %2304 = vmatprep.subr.mxu0 0.0
  %2305 = vmatpush1.msra.mxu0 0.0
  %2306 = vmatprep.subr.mxu0 0.0
  %2307 = vmatpush1.msra.mxu0 0.0
  %2308 = vmatprep.subr.mxu0 0.0
  %2309 = vmatpush1.msra.mxu0 0.0
  %2310 = vmatprep.subr.mxu0 0.0
  %2311 = vmatpush1.msra.mxu0 0.0
  %2312 = vmatprep.subr.mxu0 0.0
  %2313 = vmatpush1.msra.mxu0 0.0
  %2314 = vmatprep.subr.mxu0 0.0
  %2315 = vmatpush1.msra.mxu0 0.0
  %2316 = vmatprep.subr.mxu0 0.0
  %2317 = vmatpush1.msra.mxu0 0.0
  %2318 = vmatprep.subr.mxu0 0.0
  %2319 = vmatpush1.msra.mxu0 0.0
  %2320 = vmatprep.subr.mxu0 0.0
  %2321 = vmatpush1.msra.mxu0 0.0
  %2322 = vmatprep.subr.mxu0 0.0
  %2323 = vmatpush1.msra.mxu0 0.0
  %2324 = vmatprep.subr.mxu0 0.0
  %2325 = vmatpush1.msra.mxu0 0.0
  %2326 = vmatprep.subr.mxu0 0.0
  %2327 = vmatpush1.msra.mxu0 0.0
  %2328 = vmatprep.subr.mxu0 0.0
  %2329 = vmatpush1.msra.mxu0 0.0
  %2330 = vmatprep.subr.mxu0 0.0
  %2331 = vmatpush1.msra.mxu0 0.0
  %2332 = vmatprep.subr.mxu0 0.0
  %2333 = vmatpush1.msra.mxu0 0.0
  %2334 = vmatprep.subr.mxu0 0.0
  %2335 = vmatpush1.msra.mxu0 0.0
  %2336 = vmatprep.subr.mxu0 0.0
  %2337 = vmatpush1.msra.mxu0 0.0
  %2338 = vmatprep.subr.mxu0 0.0
  %2339 = vmatpush1.msra.mxu0 0.0
  %2340 = vmatprep.subr.mxu0 0.0
  %2341 = vmatpush1.msra.mxu0 0.0
  %2342 = vmatprep.mubr.f32.mxu0 0.0
  %2343 = vmatmul.mubr.f32.gmra.mrb[0].mxu0 %v2276
  %v2344 = vpop.f32.mrb[0].mxu0
  %v2345 = vadd.f32 %v690, %v2344
  %v2346 = vpop.f32.mrb[0].mxu0
  %2347 = vdwg.mxu0
  %2348 = vmatprep.subr.mxu0 0.0
  %2349 = vmatpush1.msra.mxu0 %v766
  %2350 = vmatprep.subr.mxu0 0.0
  %2351 = vmatpush1.msra.mxu0 %v767
  %2352 = vmatprep.subr.mxu0 0.0
  %2353 = vmatpush1.msra.mxu0 %v768
  %2354 = vmatprep.subr.mxu0 0.0
  %2355 = vmatpush1.msra.mxu0 %v769
  %2356 = vmatprep.subr.mxu0 0.0
  %2357 = vmatpush1.msra.mxu0 0.0
  %2358 = vmatprep.subr.mxu0 0.0
  %2359 = vmatpush1.msra.mxu0 0.0
  %2360 = vmatprep.subr.mxu0 0.0
  %2361 = vmatpush1.msra.mxu0 0.0
  %2362 = vmatprep.subr.mxu0 0.0
  %2363 = vmatpush1.msra.mxu0 0.0
  %2364 = vmatprep.subr.mxu0 0.0
  %2365 = vmatpush1.msra.mxu0 0.0
  %2366 = vmatprep.subr.mxu0 0.0
  %2367 = vmatpush1.msra.mxu0 0.0
  %2368 = vmatprep.subr.mxu0 0.0
  %2369 = vmatpush1.msra.mxu0 0.0
  %2370 = vmatprep.subr.mxu0 0.0
  %2371 = vmatpush1.msra.mxu0 0.0
  %2372 = vmatprep.subr.mxu0 0.0
  %2373 = vmatpush1.msra.mxu0 0.0
  %2374 = vmatprep.subr.mxu0 0.0
  %2375 = vmatpush1.msra.mxu0 0.0
  %2376 = vmatprep.subr.mxu0 0.0
  %2377 = vmatpush1.msra.mxu0 0.0
  %2378 = vmatprep.subr.mxu0 0.0
  %2379 = vmatpush1.msra.mxu0 0.0
  %2380 = vmatprep.subr.mxu0 0.0
  %2381 = vmatpush1.msra.mxu0 0.0
  %2382 = vmatprep.subr.mxu0 0.0
  %2383 = vmatpush1.msra.mxu0 0.0
  %2384 = vmatprep.subr.mxu0 0.0
  %2385 = vmatpush1.msra.mxu0 0.0
  %2386 = vmatprep.subr.mxu0 0.0
  %2387 = vmatpush1.msra.mxu0 0.0
  %2388 = vmatprep.subr.mxu0 0.0
  %2389 = vmatpush1.msra.mxu0 0.0
  %2390 = vmatprep.subr.mxu0 0.0
  %2391 = vmatpush1.msra.mxu0 0.0
  %2392 = vmatprep.subr.mxu0 0.0
  %2393 = vmatpush1.msra.mxu0 0.0
  %2394 = vmatprep.subr.mxu0 0.0
  %2395 = vmatpush1.msra.mxu0 0.0
  %2396 = vmatprep.subr.mxu0 0.0
  %2397 = vmatpush1.msra.mxu0 0.0
  %2398 = vmatprep.subr.mxu0 0.0
  %2399 = vmatpush1.msra.mxu0 0.0
  %2400 = vmatprep.subr.mxu0 0.0
  %2401 = vmatpush1.msra.mxu0 0.0
  %2402 = vmatprep.subr.mxu0 0.0
  %2403 = vmatpush1.msra.mxu0 0.0
  %2404 = vmatprep.subr.mxu0 0.0
  %2405 = vmatpush1.msra.mxu0 0.0
  %2406 = vmatprep.subr.mxu0 0.0
  %2407 = vmatpush1.msra.mxu0 0.0
  %2408 = vmatprep.subr.mxu0 0.0
  %2409 = vmatpush1.msra.mxu0 0.0
  %2410 = vmatprep.subr.mxu0 0.0
  %2411 = vmatpush1.msra.mxu0 0.0
  %2412 = vmatprep.mubr.f32.mxu0 0.0
  %2413 = vmatmul.mubr.f32.gmra.mrb[0].mxu0 %v2276
  %v2414 = vpop.f32.mrb[0].mxu0
  %v2415 = vadd.f32 %v776, %v2414
  %v2416 = vpop.f32.mrb[0].mxu0
  %2417 = vdwg.mxu0
  %2418 = vmatprep.subr.mxu0 0.0
  %2419 = vmatpush1.msra.mxu0 %v849
  %2420 = vmatprep.subr.mxu0 0.0
  %2421 = vmatpush1.msra.mxu0 %v850
  %2422 = vmatprep.subr.mxu0 0.0
  %2423 = vmatpush1.msra.mxu0 %v851
  %2424 = vmatprep.subr.mxu0 0.0
  %2425 = vmatpush1.msra.mxu0 %v852
  %2426 = vmatprep.subr.mxu0 0.0
  %2427 = vmatpush1.msra.mxu0 0.0
  %2428 = vmatprep.subr.mxu0 0.0
  %2429 = vmatpush1.msra.mxu0 0.0
  %2430 = vmatprep.subr.mxu0 0.0
  %2431 = vmatpush1.msra.mxu0 0.0
  %2432 = vmatprep.subr.mxu0 0.0
  %2433 = vmatpush1.msra.mxu0 0.0
  %2434 = vmatprep.subr.mxu0 0.0
  %2435 = vmatpush1.msra.mxu0 0.0
  %2436 = vmatprep.subr.mxu0 0.0
  %2437 = vmatpush1.msra.mxu0 0.0
  %2438 = vmatprep.subr.mxu0 0.0
  %2439 = vmatpush1.msra.mxu0 0.0
  %2440 = vmatprep.subr.mxu0 0.0
  %2441 = vmatpush1.msra.mxu0 0.0
  %2442 = vmatprep.subr.mxu0 0.0
  %2443 = vmatpush1.msra.mxu0 0.0
  %2444 = vmatprep.subr.mxu0 0.0
  %2445 = vmatpush1.msra.mxu0 0.0
  %2446 = vmatprep.subr.mxu0 0.0
  %2447 = vmatpush1.msra.mxu0 0.0
  %2448 = vmatprep.subr.mxu0 0.0
  %2449 = vmatpush1.msra.mxu0 0.0
  %2450 = vmatprep.subr.mxu0 0.0
  %2451 = vmatpush1.msra.mxu0 0.0
  %2452 = vmatprep.subr.mxu0 0.0
  %2453 = vmatpush1.msra.mxu0 0.0
  %2454 = vmatprep.subr.mxu0 0.0
  %2455 = vmatpush1.msra.mxu0 0.0
  %2456 = vmatprep.subr.mxu0 0.0
  %2457 = vmatpush1.msra.mxu0 0.0
  %2458 = vmatprep.subr.mxu0 0.0
  %2459 = vmatpush1.msra.mxu0 0.0
  %2460 = vmatprep.subr.mxu0 0.0
  %2461 = vmatpush1.msra.mxu0 0.0
  %2462 = vmatprep.subr.mxu0 0.0
  %2463 = vmatpush1.msra.mxu0 0.0
  %2464 = vmatprep.subr.mxu0 0.0
  %2465 = vmatpush1.msra.mxu0 0.0
  %2466 = vmatprep.subr.mxu0 0.0
  %2467 = vmatpush1.msra.mxu0 0.0
  %2468 = vmatprep.subr.mxu0 0.0
  %2469 = vmatpush1.msra.mxu0 0.0
  %2470 = vmatprep.subr.mxu0 0.0
  %2471 = vmatpush1.msra.mxu0 0.0
  %2472 = vmatprep.subr.mxu0 0.0
  %2473 = vmatpush1.msra.mxu0 0.0
  %2474 = vmatprep.subr.mxu0 0.0
  %2475 = vmatpush1.msra.mxu0 0.0
  %2476 = vmatprep.subr.mxu0 0.0
  %2477 = vmatpush1.msra.mxu0 0.0
  %2478 = vmatprep.subr.mxu0 0.0
  %2479 = vmatpush1.msra.mxu0 0.0
  %2480 = vmatprep.subr.mxu0 0.0
  %2481 = vmatpush1.msra.mxu0 0.0
  %2482 = vmatprep.mubr.f32.mxu0 0.0
  %2483 = vmatmul.mubr.f32.gmra.mrb[0].mxu0 %v2276
  %v2484 = vpop.f32.mrb[0].mxu0
  %v2485 = vadd.f32 %v859, %v2484
  %v2486 = vpop.f32.mrb[0].mxu0
  %2487 = vdwg.mxu0
  %v2489 = vsel %vm263, %v1724, 0
  %2491 = vmatprep.subr.mxu0 0.0
  %2492 = vmatpush1.msra.mxu0 %v931
  %2493 = vmatprep.subr.mxu0 0.0
  %2494 = vmatpush1.msra.mxu0 %v932
  %2495 = vmatprep.subr.mxu0 0.0
  %2496 = vmatpush1.msra.mxu0 %v933
  %2497 = vmatprep.subr.mxu0 0.0
  %2498 = vmatpush1.msra.mxu0 %v934
  %2499 = vmatprep.subr.mxu0 0.0
  %2500 = vmatpush1.msra.mxu0 0.0
  %2501 = vmatprep.subr.mxu0 0.0
  %2502 = vmatpush1.msra.mxu0 0.0
  %2503 = vmatprep.subr.mxu0 0.0
  %2504 = vmatpush1.msra.mxu0 0.0
  %2505 = vmatprep.subr.mxu0 0.0
  %2506 = vmatpush1.msra.mxu0 0.0
  %2507 = vmatprep.subr.mxu0 0.0
  %2508 = vmatpush1.msra.mxu0 0.0
  %2509 = vmatprep.subr.mxu0 0.0
  %2510 = vmatpush1.msra.mxu0 0.0
  %2511 = vmatprep.subr.mxu0 0.0
  %2512 = vmatpush1.msra.mxu0 0.0
  %2513 = vmatprep.subr.mxu0 0.0
  %2514 = vmatpush1.msra.mxu0 0.0
  %2515 = vmatprep.subr.mxu0 0.0
  %2516 = vmatpush1.msra.mxu0 0.0
  %2517 = vmatprep.subr.mxu0 0.0
  %2518 = vmatpush1.msra.mxu0 0.0
  %2519 = vmatprep.subr.mxu0 0.0
  %2520 = vmatpush1.msra.mxu0 0.0
  %2521 = vmatprep.subr.mxu0 0.0
  %2522 = vmatpush1.msra.mxu0 0.0
  %2523 = vmatprep.subr.mxu0 0.0
  %2524 = vmatpush1.msra.mxu0 0.0
  %2525 = vmatprep.subr.mxu0 0.0
  %2526 = vmatpush1.msra.mxu0 0.0
  %2527 = vmatprep.subr.mxu0 0.0
  %2528 = vmatpush1.msra.mxu0 0.0
  %2529 = vmatprep.subr.mxu0 0.0
  %2530 = vmatpush1.msra.mxu0 0.0
  %2531 = vmatprep.subr.mxu0 0.0
  %2532 = vmatpush1.msra.mxu0 0.0
  %2533 = vmatprep.subr.mxu0 0.0
  %2534 = vmatpush1.msra.mxu0 0.0
  %2535 = vmatprep.subr.mxu0 0.0
  %2536 = vmatpush1.msra.mxu0 0.0
  %2537 = vmatprep.subr.mxu0 0.0
  %2538 = vmatpush1.msra.mxu0 0.0
  %2539 = vmatprep.subr.mxu0 0.0
  %2540 = vmatpush1.msra.mxu0 0.0
  %2541 = vmatprep.subr.mxu0 0.0
  %2542 = vmatpush1.msra.mxu0 0.0
  %2543 = vmatprep.subr.mxu0 0.0
  %2544 = vmatpush1.msra.mxu0 0.0
  %2545 = vmatprep.subr.mxu0 0.0
  %2546 = vmatpush1.msra.mxu0 0.0
  %2547 = vmatprep.subr.mxu0 0.0
  %2548 = vmatpush1.msra.mxu0 0.0
  %2549 = vmatprep.subr.mxu0 0.0
  %2550 = vmatpush1.msra.mxu0 0.0
  %2551 = vmatprep.subr.mxu0 0.0
  %2552 = vmatpush1.msra.mxu0 0.0
  %2553 = vmatprep.subr.mxu0 0.0
  %2554 = vmatpush1.msra.mxu0 0.0
  %2555 = vmatprep.mubr.f32.mxu0 0.0
  %2556 = vmatmul.mubr.f32.gmra.mrb[0].mxu0 %v2489
  %v2557 = vpop.f32.mrb[0].mxu0
  %v2558 = vadd.f32 %v940, %v2557
  %v2559 = vpop.f32.mrb[0].mxu0
  %2560 = vdwg.mxu0
  %2561 = vmatprep.subr.mxu0 0.0
  %2562 = vmatpush1.msra.mxu0 %v1016
  %2563 = vmatprep.subr.mxu0 0.0
  %2564 = vmatpush1.msra.mxu0 %v1017
  %2565 = vmatprep.subr.mxu0 0.0
  %2566 = vmatpush1.msra.mxu0 %v1018
  %2567 = vmatprep.subr.mxu0 0.0
  %2568 = vmatpush1.msra.mxu0 %v1019
  %2569 = vmatprep.subr.mxu0 0.0
  %2570 = vmatpush1.msra.mxu0 0.0
  %2571 = vmatprep.subr.mxu0 0.0
  %2572 = vmatpush1.msra.mxu0 0.0
  %2573 = vmatprep.subr.mxu0 0.0
  %2574 = vmatpush1.msra.mxu0 0.0
  %2575 = vmatprep.subr.mxu0 0.0
  %2576 = vmatpush1.msra.mxu0 0.0
  %2577 = vmatprep.subr.mxu0 0.0
  %2578 = vmatpush1.msra.mxu0 0.0
  %2579 = vmatprep.subr.mxu0 0.0
  %2580 = vmatpush1.msra.mxu0 0.0
  %2581 = vmatprep.subr.mxu0 0.0
  %2582 = vmatpush1.msra.mxu0 0.0
  %2583 = vmatprep.subr.mxu0 0.0
  %2584 = vmatpush1.msra.mxu0 0.0
  %2585 = vmatprep.subr.mxu0 0.0
  %2586 = vmatpush1.msra.mxu0 0.0
  %2587 = vmatprep.subr.mxu0 0.0
  %2588 = vmatpush1.msra.mxu0 0.0
  %2589 = vmatprep.subr.mxu0 0.0
  %2590 = vmatpush1.msra.mxu0 0.0
  %2591 = vmatprep.subr.mxu0 0.0
  %2592 = vmatpush1.msra.mxu0 0.0
  %2593 = vmatprep.subr.mxu0 0.0
  %2594 = vmatpush1.msra.mxu0 0.0
  %2595 = vmatprep.subr.mxu0 0.0
  %2596 = vmatpush1.msra.mxu0 0.0
  %2597 = vmatprep.subr.mxu0 0.0
  %2598 = vmatpush1.msra.mxu0 0.0
  %2599 = vmatprep.subr.mxu0 0.0
  %2600 = vmatpush1.msra.mxu0 0.0
  %2601 = vmatprep.subr.mxu0 0.0
  %2602 = vmatpush1.msra.mxu0 0.0
  %2603 = vmatprep.subr.mxu0 0.0
  %2604 = vmatpush1.msra.mxu0 0.0
  %2605 = vmatprep.subr.mxu0 0.0
  %2606 = vmatpush1.msra.mxu0 0.0
  %2607 = vmatprep.subr.mxu0 0.0
  %2608 = vmatpush1.msra.mxu0 0.0
  %2609 = vmatprep.subr.mxu0 0.0
  %2610 = vmatpush1.msra.mxu0 0.0
  %2611 = vmatprep.subr.mxu0 0.0
  %2612 = vmatpush1.msra.mxu0 0.0
  %2613 = vmatprep.subr.mxu0 0.0
  %2614 = vmatpush1.msra.mxu0 0.0
  %2615 = vmatprep.subr.mxu0 0.0
  %2616 = vmatpush1.msra.mxu0 0.0
  %2617 = vmatprep.subr.mxu0 0.0
  %2618 = vmatpush1.msra.mxu0 0.0
  %2619 = vmatprep.subr.mxu0 0.0
  %2620 = vmatpush1.msra.mxu0 0.0
  %2621 = vmatprep.subr.mxu0 0.0
  %2622 = vmatpush1.msra.mxu0 0.0
  %2623 = vmatprep.subr.mxu0 0.0
  %2624 = vmatpush1.msra.mxu0 0.0
  %2625 = vmatprep.mubr.f32.mxu0 0.0
  %2626 = vmatmul.mubr.f32.gmra.mrb[0].mxu0 %v2489
  %v2627 = vpop.f32.mrb[0].mxu0
  %v2628 = vadd.f32 %v1026, %v2627
  %v2629 = vpop.f32.mrb[0].mxu0
  %2630 = vdwg.mxu0
  %2631 = vmatprep.subr.mxu0 0.0
  %2632 = vmatpush1.msra.mxu0 %v1099
  %2633 = vmatprep.subr.mxu0 0.0
  %2634 = vmatpush1.msra.mxu0 %v1100
  %2635 = vmatprep.subr.mxu0 0.0
  %2636 = vmatpush1.msra.mxu0 %v1101
  %2637 = vmatprep.subr.mxu0 0.0
  %2638 = vmatpush1.msra.mxu0 %v1102
  %2639 = vmatprep.subr.mxu0 0.0
  %2640 = vmatpush1.msra.mxu0 0.0
  %2641 = vmatprep.subr.mxu0 0.0
  %2642 = vmatpush1.msra.mxu0 0.0
  %2643 = vmatprep.subr.mxu0 0.0
  %2644 = vmatpush1.msra.mxu0 0.0
  %2645 = vmatprep.subr.mxu0 0.0
  %2646 = vmatpush1.msra.mxu0 0.0
  %2647 = vmatprep.subr.mxu0 0.0
  %2648 = vmatpush1.msra.mxu0 0.0
  %2649 = vmatprep.subr.mxu0 0.0
  %2650 = vmatpush1.msra.mxu0 0.0
  %2651 = vmatprep.subr.mxu0 0.0
  %2652 = vmatpush1.msra.mxu0 0.0
  %2653 = vmatprep.subr.mxu0 0.0
  %2654 = vmatpush1.msra.mxu0 0.0
  %2655 = vmatprep.subr.mxu0 0.0
  %2656 = vmatpush1.msra.mxu0 0.0
  %2657 = vmatprep.subr.mxu0 0.0
  %2658 = vmatpush1.msra.mxu0 0.0
  %2659 = vmatprep.subr.mxu0 0.0
  %2660 = vmatpush1.msra.mxu0 0.0
  %2661 = vmatprep.subr.mxu0 0.0
  %2662 = vmatpush1.msra.mxu0 0.0
  %2663 = vmatprep.subr.mxu0 0.0
  %2664 = vmatpush1.msra.mxu0 0.0
  %2665 = vmatprep.subr.mxu0 0.0
  %2666 = vmatpush1.msra.mxu0 0.0
  %2667 = vmatprep.subr.mxu0 0.0
  %2668 = vmatpush1.msra.mxu0 0.0
  %2669 = vmatprep.subr.mxu0 0.0
  %2670 = vmatpush1.msra.mxu0 0.0
  %2671 = vmatprep.subr.mxu0 0.0
  %2672 = vmatpush1.msra.mxu0 0.0
  %2673 = vmatprep.subr.mxu0 0.0
  %2674 = vmatpush1.msra.mxu0 0.0
  %2675 = vmatprep.subr.mxu0 0.0
  %2676 = vmatpush1.msra.mxu0 0.0
  %2677 = vmatprep.subr.mxu0 0.0
  %2678 = vmatpush1.msra.mxu0 0.0
  %2679 = vmatprep.subr.mxu0 0.0
  %2680 = vmatpush1.msra.mxu0 0.0
  %2681 = vmatprep.subr.mxu0 0.0
  %2682 = vmatpush1.msra.mxu0 0.0
  %2683 = vmatprep.subr.mxu0 0.0
  %2684 = vmatpush1.msra.mxu0 0.0
  %2685 = vmatprep.subr.mxu0 0.0
  %2686 = vmatpush1.msra.mxu0 0.0
  %2687 = vmatprep.subr.mxu0 0.0
  %2688 = vmatpush1.msra.mxu0 0.0
  %2689 = vmatprep.subr.mxu0 0.0
  %2690 = vmatpush1.msra.mxu0 0.0
  %2691 = vmatprep.subr.mxu0 0.0
  %2692 = vmatpush1.msra.mxu0 0.0
  %2693 = vmatprep.subr.mxu0 0.0
  %2694 = vmatpush1.msra.mxu0 0.0
  %2695 = vmatprep.mubr.f32.mxu0 0.0
  %2696 = vmatmul.mubr.f32.gmra.mrb[0].mxu0 %v2489
  %v2697 = vpop.f32.mrb[0].mxu0
  %v2698 = vadd.f32 %v1109, %v2697
  %v2699 = vpop.f32.mrb[0].mxu0
  %2700 = vdwg.mxu0
  %v2701 = vadd.f32 %v2345, %v2558
  %v2702 = vxor.u32 %v2701, 2147483648
  %v2703 = vmul.f32 %v2702, 1.442695
  %v2704 = vpow.pop %v2703
  %v2705 = vadd.f32 %v2704, 1.0
  %v2706 = vrcp.pop %v2705
  %v2707 = vmul.f32 1.0, %v2706
  %v2708 = vadd.f32 %v2415, %v2628
  %v2709 = vxor.u32 %v2708, 2147483648
  %v2710 = vmul.f32 %v2709, 1.442695
  %v2711 = vpow.pop %v2710
  %v2712 = vadd.f32 %v2711, 1.0
  %v2713 = vrcp.pop %v2712
  %v2714 = vmul.f32 1.0, %v2713
  %v2715 = vmul.f32 %v2707, %v2698
  %v2716 = vadd.f32 %v2485, %v2715
  %v2717 = vtanh.pop %v2716
  %v2718 = vsub.f32 1.0, %v2714
  %v2719 = vmul.f32 %v2718, %v2717
  %v2720 = vmul.f32 %v2714, %v1724
  %v2721 = vadd.f32 %v2719, %v2720
  %2722 = vmatprep.subr.mxu0 0.0
  %2723 = vmatpush1.msra.mxu0 %v1203
  %2724 = vmatprep.subr.mxu0 0.0
  %2725 = vmatpush1.msra.mxu0 %v1204
  %2726 = vmatprep.subr.mxu0 0.0
  %2727 = vmatpush1.msra.mxu0 %v1205
  %2728 = vmatprep.subr.mxu0 0.0
  %2729 = vmatpush1.msra.mxu0 %v1206
  %2730 = vmatprep.subr.mxu0 0.0
  %2731 = vmatpush1.msra.mxu0 0.0
  %2732 = vmatprep.subr.mxu0 0.0
  %2733 = vmatpush1.msra.mxu0 0.0
  %2734 = vmatprep.subr.mxu0 0.0
  %2735 = vmatpush1.msra.mxu0 0.0
  %2736 = vmatprep.subr.mxu0 0.0
  %2737 = vmatpush1.msra.mxu0 0.0
  %2738 = vmatprep.subr.mxu0 0.0
  %2739 = vmatpush1.msra.mxu0 0.0
  %2740 = vmatprep.subr.mxu0 0.0
  %2741 = vmatpush1.msra.mxu0 0.0
  %2742 = vmatprep.subr.mxu0 0.0
  %2743 = vmatpush1.msra.mxu0 0.0
  %2744 = vmatprep.subr.mxu0 0.0
  %2745 = vmatpush1.msra.mxu0 0.0
  %2746 = vmatprep.subr.mxu0 0.0
  %2747 = vmatpush1.msra.mxu0 0.0
  %2748 = vmatprep.subr.mxu0 0.0
  %2749 = vmatpush1.msra.mxu0 0.0
  %2750 = vmatprep.subr.mxu0 0.0
  %2751 = vmatpush1.msra.mxu0 0.0
  %2752 = vmatprep.subr.mxu0 0.0
  %2753 = vmatpush1.msra.mxu0 0.0
  %2754 = vmatprep.subr.mxu0 0.0
  %2755 = vmatpush1.msra.mxu0 0.0
  %2756 = vmatprep.subr.mxu0 0.0
  %2757 = vmatpush1.msra.mxu0 0.0
  %2758 = vmatprep.subr.mxu0 0.0
  %2759 = vmatpush1.msra.mxu0 0.0
  %2760 = vmatprep.subr.mxu0 0.0
  %2761 = vmatpush1.msra.mxu0 0.0
  %2762 = vmatprep.subr.mxu0 0.0
  %2763 = vmatpush1.msra.mxu0 0.0
  %2764 = vmatprep.subr.mxu0 0.0
  %2765 = vmatpush1.msra.mxu0 0.0
  %2766 = vmatprep.subr.mxu0 0.0
  %2767 = vmatpush1.msra.mxu0 0.0
  %2768 = vmatprep.subr.mxu0 0.0
  %2769 = vmatpush1.msra.mxu0 0.0
  %2770 = vmatprep.subr.mxu0 0.0
  %2771 = vmatpush1.msra.mxu0 0.0
  %2772 = vmatprep.subr.mxu0 0.0
  %2773 = vmatpush1.msra.mxu0 0.0
  %2774 = vmatprep.subr.mxu0 0.0
  %2775 = vmatpush1.msra.mxu0 0.0
  %2776 = vmatprep.subr.mxu0 0.0
  %2777 = vmatpush1.msra.mxu0 0.0
  %2778 = vmatprep.subr.mxu0 0.0
  %2779 = vmatpush1.msra.mxu0 0.0
  %2780 = vmatprep.subr.mxu0 0.0
  %2781 = vmatpush1.msra.mxu0 0.0
  %2782 = vmatprep.subr.mxu0 0.0
  %2783 = vmatpush1.msra.mxu0 0.0
  %2784 = vmatprep.subr.mxu0 0.0
  %2785 = vmatpush1.msra.mxu0 0.0
  %2786 = vmatprep.mubr.f32.mxu0 0.0
  %2787 = vmatmul.mubr.f32.gmra.mrb[0].mxu0 %v2276
  %v2788 = vpop.f32.mrb[0].mxu0
  %v2789 = vadd.f32 %v1213, %v2788
  %v2790 = vpop.f32.mrb[0].mxu0
  %2791 = vdwg.mxu0
  %2792 = vmatprep.subr.mxu0 0.0
  %2793 = vmatpush1.msra.mxu0 %v1286
  %2794 = vmatprep.subr.mxu0 0.0
  %2795 = vmatpush1.msra.mxu0 %v1287
  %2796 = vmatprep.subr.mxu0 0.0
  %2797 = vmatpush1.msra.mxu0 %v1288
  %2798 = vmatprep.subr.mxu0 0.0
  %2799 = vmatpush1.msra.mxu0 %v1289
  %2800 = vmatprep.subr.mxu0 0.0
  %2801 = vmatpush1.msra.mxu0 0.0
  %2802 = vmatprep.subr.mxu0 0.0
  %2803 = vmatpush1.msra.mxu0 0.0
  %2804 = vmatprep.subr.mxu0 0.0
  %2805 = vmatpush1.msra.mxu0 0.0
  %2806 = vmatprep.subr.mxu0 0.0
  %2807 = vmatpush1.msra.mxu0 0.0
  %2808 = vmatprep.subr.mxu0 0.0
  %2809 = vmatpush1.msra.mxu0 0.0
  %2810 = vmatprep.subr.mxu0 0.0
  %2811 = vmatpush1.msra.mxu0 0.0
  %2812 = vmatprep.subr.mxu0 0.0
  %2813 = vmatpush1.msra.mxu0 0.0
  %2814 = vmatprep.subr.mxu0 0.0
  %2815 = vmatpush1.msra.mxu0 0.0
  %2816 = vmatprep.subr.mxu0 0.0
  %2817 = vmatpush1.msra.mxu0 0.0
  %2818 = vmatprep.subr.mxu0 0.0
  %2819 = vmatpush1.msra.mxu0 0.0
  %2820 = vmatprep.subr.mxu0 0.0
  %2821 = vmatpush1.msra.mxu0 0.0
  %2822 = vmatprep.subr.mxu0 0.0
  %2823 = vmatpush1.msra.mxu0 0.0
  %2824 = vmatprep.subr.mxu0 0.0
  %2825 = vmatpush1.msra.mxu0 0.0
  %2826 = vmatprep.subr.mxu0 0.0
  %2827 = vmatpush1.msra.mxu0 0.0
  %2828 = vmatprep.subr.mxu0 0.0
  %2829 = vmatpush1.msra.mxu0 0.0
  %2830 = vmatprep.subr.mxu0 0.0
  %2831 = vmatpush1.msra.mxu0 0.0
  %2832 = vmatprep.subr.mxu0 0.0
  %2833 = vmatpush1.msra.mxu0 0.0
  %2834 = vmatprep.subr.mxu0 0.0
  %2835 = vmatpush1.msra.mxu0 0.0
  %2836 = vmatprep.subr.mxu0 0.0
  %2837 = vmatpush1.msra.mxu0 0.0
  %2838 = vmatprep.subr.mxu0 0.0
  %2839 = vmatpush1.msra.mxu0 0.0
  %2840 = vmatprep.subr.mxu0 0.0
  %2841 = vmatpush1.msra.mxu0 0.0
  %2842 = vmatprep.subr.mxu0 0.0
  %2843 = vmatpush1.msra.mxu0 0.0
  %2844 = vmatprep.subr.mxu0 0.0
  %2845 = vmatpush1.msra.mxu0 0.0
  %2846 = vmatprep.subr.mxu0 0.0
  %2847 = vmatpush1.msra.mxu0 0.0
  %2848 = vmatprep.subr.mxu0 0.0
  %2849 = vmatpush1.msra.mxu0 0.0
  %2850 = vmatprep.subr.mxu0 0.0
  %2851 = vmatpush1.msra.mxu0 0.0
  %2852 = vmatprep.subr.mxu0 0.0
  %2853 = vmatpush1.msra.mxu0 0.0
  %2854 = vmatprep.subr.mxu0 0.0
  %2855 = vmatpush1.msra.mxu0 0.0
  %2856 = vmatprep.mubr.f32.mxu0 0.0
  %2857 = vmatmul.mubr.f32.gmra.mrb[0].mxu0 %v2276
  %v2858 = vpop.f32.mrb[0].mxu0
  %v2859 = vadd.f32 %v1296, %v2858
  %v2860 = vpop.f32.mrb[0].mxu0
  %2861 = vdwg.mxu0
  %2862 = vmatprep.subr.mxu0 0.0
  %2863 = vmatpush1.msra.mxu0 %v1369
  %2864 = vmatprep.subr.mxu0 0.0
  %2865 = vmatpush1.msra.mxu0 %v1370
  %2866 = vmatprep.subr.mxu0 0.0
  %2867 = vmatpush1.msra.mxu0 %v1371
  %2868 = vmatprep.subr.mxu0 0.0
  %2869 = vmatpush1.msra.mxu0 %v1372
  %2870 = vmatprep.subr.mxu0 0.0
  %2871 = vmatpush1.msra.mxu0 0.0
  %2872 = vmatprep.subr.mxu0 0.0
  %2873 = vmatpush1.msra.mxu0 0.0
  %2874 = vmatprep.subr.mxu0 0.0
  %2875 = vmatpush1.msra.mxu0 0.0
  %2876 = vmatprep.subr.mxu0 0.0
  %2877 = vmatpush1.msra.mxu0 0.0
  %2878 = vmatprep.subr.mxu0 0.0
  %2879 = vmatpush1.msra.mxu0 0.0
  %2880 = vmatprep.subr.mxu0 0.0
  %2881 = vmatpush1.msra.mxu0 0.0
  %2882 = vmatprep.subr.mxu0 0.0
  %2883 = vmatpush1.msra.mxu0 0.0
  %2884 = vmatprep.subr.mxu0 0.0
  %2885 = vmatpush1.msra.mxu0 0.0
  %2886 = vmatprep.subr.mxu0 0.0
  %2887 = vmatpush1.msra.mxu0 0.0
  %2888 = vmatprep.subr.mxu0 0.0
  %2889 = vmatpush1.msra.mxu0 0.0
  %2890 = vmatprep.subr.mxu0 0.0
  %2891 = vmatpush1.msra.mxu0 0.0
  %2892 = vmatprep.subr.mxu0 0.0
  %2893 = vmatpush1.msra.mxu0 0.0
  %2894 = vmatprep.subr.mxu0 0.0
  %2895 = vmatpush1.msra.mxu0 0.0
  %2896 = vmatprep.subr.mxu0 0.0
  %2897 = vmatpush1.msra.mxu0 0.0
  %2898 = vmatprep.subr.mxu0 0.0
  %2899 = vmatpush1.msra.mxu0 0.0
  %2900 = vmatprep.subr.mxu0 0.0
  %2901 = vmatpush1.msra.mxu0 0.0
  %2902 = vmatprep.subr.mxu0 0.0
  %2903 = vmatpush1.msra.mxu0 0.0
  %2904 = vmatprep.subr.mxu0 0.0
  %2905 = vmatpush1.msra.mxu0 0.0
  %2906 = vmatprep.subr.mxu0 0.0
  %2907 = vmatpush1.msra.mxu0 0.0
  %2908 = vmatprep.subr.mxu0 0.0
  %2909 = vmatpush1.msra.mxu0 0.0
  %2910 = vmatprep.subr.mxu0 0.0
  %2911 = vmatpush1.msra.mxu0 0.0
  %2912 = vmatprep.subr.mxu0 0.0
  %2913 = vmatpush1.msra.mxu0 0.0
  %2914 = vmatprep.subr.mxu0 0.0
  %2915 = vmatpush1.msra.mxu0 0.0
  %2916 = vmatprep.subr.mxu0 0.0
  %2917 = vmatpush1.msra.mxu0 0.0
  %2918 = vmatprep.subr.mxu0 0.0
  %2919 = vmatpush1.msra.mxu0 0.0
  %2920 = vmatprep.subr.mxu0 0.0
  %2921 = vmatpush1.msra.mxu0 0.0
  %2922 = vmatprep.subr.mxu0 0.0
  %2923 = vmatpush1.msra.mxu0 0.0
  %2924 = vmatprep.subr.mxu0 0.0
  %2925 = vmatpush1.msra.mxu0 0.0
  %2926 = vmatprep.mubr.f32.mxu0 0.0
  %2927 = vmatmul.mubr.f32.gmra.mrb[0].mxu0 %v2276
  %v2928 = vpop.f32.mrb[0].mxu0
  %v2929 = vadd.f32 %v1379, %v2928
  %v2930 = vpop.f32.mrb[0].mxu0
  %2931 = vdwg.mxu0
  %2932 = vmatprep.subr.mxu0 0.0
  %2933 = vmatpush1.msra.mxu0 %v1452
  %2934 = vmatprep.subr.mxu0 0.0
  %2935 = vmatpush1.msra.mxu0 %v1453
  %2936 = vmatprep.subr.mxu0 0.0
  %2937 = vmatpush1.msra.mxu0 %v1454
  %2938 = vmatprep.subr.mxu0 0.0
  %2939 = vmatpush1.msra.mxu0 %v1455
  %2940 = vmatprep.subr.mxu0 0.0
  %2941 = vmatpush1.msra.mxu0 0.0
  %2942 = vmatprep.subr.mxu0 0.0
  %2943 = vmatpush1.msra.mxu0 0.0
  %2944 = vmatprep.subr.mxu0 0.0
  %2945 = vmatpush1.msra.mxu0 0.0
  %2946 = vmatprep.subr.mxu0 0.0
  %2947 = vmatpush1.msra.mxu0 0.0
  %2948 = vmatprep.subr.mxu0 0.0
  %2949 = vmatpush1.msra.mxu0 0.0
  %2950 = vmatprep.subr.mxu0 0.0
  %2951 = vmatpush1.msra.mxu0 0.0
  %2952 = vmatprep.subr.mxu0 0.0
  %2953 = vmatpush1.msra.mxu0 0.0
  %2954 = vmatprep.subr.mxu0 0.0
  %2955 = vmatpush1.msra.mxu0 0.0
  %2956 = vmatprep.subr.mxu0 0.0
  %2957 = vmatpush1.msra.mxu0 0.0
  %2958 = vmatprep.subr.mxu0 0.0
  %2959 = vmatpush1.msra.mxu0 0.0
  %2960 = vmatprep.subr.mxu0 0.0
  %2961 = vmatpush1.msra.mxu0 0.0
  %2962 = vmatprep.subr.mxu0 0.0
  %2963 = vmatpush1.msra.mxu0 0.0
  %2964 = vmatprep.subr.mxu0 0.0
  %2965 = vmatpush1.msra.mxu0 0.0
  %2966 = vmatprep.subr.mxu0 0.0
  %2967 = vmatpush1.msra.mxu0 0.0
  %2968 = vmatprep.subr.mxu0 0.0
  %2969 = vmatpush1.msra.mxu0 0.0
  %2970 = vmatprep.subr.mxu0 0.0
  %2971 = vmatpush1.msra.mxu0 0.0
  %2972 = vmatprep.subr.mxu0 0.0
  %2973 = vmatpush1.msra.mxu0 0.0
  %2974 = vmatprep.subr.mxu0 0.0
  %2975 = vmatpush1.msra.mxu0 0.0
  %2976 = vmatprep.subr.mxu0 0.0
  %2977 = vmatpush1.msra.mxu0 0.0
  %2978 = vmatprep.subr.mxu0 0.0
  %2979 = vmatpush1.msra.mxu0 0.0
  %2980 = vmatprep.subr.mxu0 0.0
  %2981 = vmatpush1.msra.mxu0 0.0
  %2982 = vmatprep.subr.mxu0 0.0
  %2983 = vmatpush1.msra.mxu0 0.0
  %2984 = vmatprep.subr.mxu0 0.0
  %2985 = vmatpush1.msra.mxu0 0.0
  %2986 = vmatprep.subr.mxu0 0.0
  %2987 = vmatpush1.msra.mxu0 0.0
  %2988 = vmatprep.subr.mxu0 0.0
  %2989 = vmatpush1.msra.mxu0 0.0
  %2990 = vmatprep.subr.mxu0 0.0
  %2991 = vmatpush1.msra.mxu0 0.0
  %2992 = vmatprep.subr.mxu0 0.0
  %2993 = vmatpush1.msra.mxu0 0.0
  %2994 = vmatprep.subr.mxu0 0.0
  %2995 = vmatpush1.msra.mxu0 0.0
  %2996 = vmatprep.mubr.f32.mxu0 0.0
  %2997 = vmatmul.mubr.f32.gmra.mrb[0].mxu0 %v2489
  %v2998 = vpop.f32.mrb[0].mxu0
  %v2999 = vadd.f32 %v1462, %v2998
  %v3000 = vpop.f32.mrb[0].mxu0
  %3001 = vdwg.mxu0
  %3002 = vmatprep.subr.mxu0 0.0
  %3003 = vmatpush1.msra.mxu0 %v1535
  %3004 = vmatprep.subr.mxu0 0.0
  %3005 = vmatpush1.msra.mxu0 %v1536
  %3006 = vmatprep.subr.mxu0 0.0
  %3007 = vmatpush1.msra.mxu0 %v1537
  %3008 = vmatprep.subr.mxu0 0.0
  %3009 = vmatpush1.msra.mxu0 %v1538
  %3010 = vmatprep.subr.mxu0 0.0
  %3011 = vmatpush1.msra.mxu0 0.0
  %3012 = vmatprep.subr.mxu0 0.0
  %3013 = vmatpush1.msra.mxu0 0.0
  %3014 = vmatprep.subr.mxu0 0.0
  %3015 = vmatpush1.msra.mxu0 0.0
  %3016 = vmatprep.subr.mxu0 0.0
  %3017 = vmatpush1.msra.mxu0 0.0
  %3018 = vmatprep.subr.mxu0 0.0
  %3019 = vmatpush1.msra.mxu0 0.0
  %3020 = vmatprep.subr.mxu0 0.0
  %3021 = vmatpush1.msra.mxu0 0.0
  %3022 = vmatprep.subr.mxu0 0.0
  %3023 = vmatpush1.msra.mxu0 0.0
  %3024 = vmatprep.subr.mxu0 0.0
  %3025 = vmatpush1.msra.mxu0 0.0
  %3026 = vmatprep.subr.mxu0 0.0
  %3027 = vmatpush1.msra.mxu0 0.0
  %3028 = vmatprep.subr.mxu0 0.0
  %3029 = vmatpush1.msra.mxu0 0.0
  %3030 = vmatprep.subr.mxu0 0.0
  %3031 = vmatpush1.msra.mxu0 0.0
  %3032 = vmatprep.subr.mxu0 0.0
  %3033 = vmatpush1.msra.mxu0 0.0
  %3034 = vmatprep.subr.mxu0 0.0
  %3035 = vmatpush1.msra.mxu0 0.0
  %3036 = vmatprep.subr.mxu0 0.0
  %3037 = vmatpush1.msra.mxu0 0.0
  %3038 = vmatprep.subr.mxu0 0.0
  %3039 = vmatpush1.msra.mxu0 0.0
  %3040 = vmatprep.subr.mxu0 0.0
  %3041 = vmatpush1.msra.mxu0 0.0
  %3042 = vmatprep.subr.mxu0 0.0
  %3043 = vmatpush1.msra.mxu0 0.0
  %3044 = vmatprep.subr.mxu0 0.0
  %3045 = vmatpush1.msra.mxu0 0.0
  %3046 = vmatprep.subr.mxu0 0.0
  %3047 = vmatpush1.msra.mxu0 0.0
  %3048 = vmatprep.subr.mxu0 0.0
  %3049 = vmatpush1.msra.mxu0 0.0
  %3050 = vmatprep.subr.mxu0 0.0
  %3051 = vmatpush1.msra.mxu0 0.0
  %3052 = vmatprep.subr.mxu0 0.0
  %3053 = vmatpush1.msra.mxu0 0.0
  %3054 = vmatprep.subr.mxu0 0.0
  %3055 = vmatpush1.msra.mxu0 0.0
  %3056 = vmatprep.subr.mxu0 0.0
  %3057 = vmatpush1.msra.mxu0 0.0
  %3058 = vmatprep.subr.mxu0 0.0
  %3059 = vmatpush1.msra.mxu0 0.0
  %3060 = vmatprep.subr.mxu0 0.0
  %3061 = vmatpush1.msra.mxu0 0.0
  %3062 = vmatprep.subr.mxu0 0.0
  %3063 = vmatpush1.msra.mxu0 0.0
  %3064 = vmatprep.subr.mxu0 0.0
  %3065 = vmatpush1.msra.mxu0 0.0
  %3066 = vmatprep.mubr.f32.mxu0 0.0
  %3067 = vmatmul.mubr.f32.gmra.mrb[0].mxu0 %v2489
  %v3068 = vpop.f32.mrb[0].mxu0
  %v3069 = vadd.f32 %v1545, %v3068
  %v3070 = vpop.f32.mrb[0].mxu0
  %3071 = vdwg.mxu0
  %3072 = vmatprep.subr.mxu0 0.0
  %3073 = vmatpush1.msra.mxu0 %v1618
  %3074 = vmatprep.subr.mxu0 0.0
  %3075 = vmatpush1.msra.mxu0 %v1619
  %3076 = vmatprep.subr.mxu0 0.0
  %3077 = vmatpush1.msra.mxu0 %v1620
  %3078 = vmatprep.subr.mxu0 0.0
  %3079 = vmatpush1.msra.mxu0 %v1621
  %3080 = vmatprep.subr.mxu0 0.0
  %3081 = vmatpush1.msra.mxu0 0.0
  %3082 = vmatprep.subr.mxu0 0.0
  %3083 = vmatpush1.msra.mxu0 0.0
  %3084 = vmatprep.subr.mxu0 0.0
  %3085 = vmatpush1.msra.mxu0 0.0
  %3086 = vmatprep.subr.mxu0 0.0
  %3087 = vmatpush1.msra.mxu0 0.0
  %3088 = vmatprep.subr.mxu0 0.0
  %3089 = vmatpush1.msra.mxu0 0.0
  %3090 = vmatprep.subr.mxu0 0.0
  %3091 = vmatpush1.msra.mxu0 0.0
  %3092 = vmatprep.subr.mxu0 0.0
  %3093 = vmatpush1.msra.mxu0 0.0
  %3094 = vmatprep.subr.mxu0 0.0
  %3095 = vmatpush1.msra.mxu0 0.0
  %3096 = vmatprep.subr.mxu0 0.0
  %3097 = vmatpush1.msra.mxu0 0.0
  %3098 = vmatprep.subr.mxu0 0.0
  %3099 = vmatpush1.msra.mxu0 0.0
  %3100 = vmatprep.subr.mxu0 0.0
  %3101 = vmatpush1.msra.mxu0 0.0
  %3102 = vmatprep.subr.mxu0 0.0
  %3103 = vmatpush1.msra.mxu0 0.0
  %3104 = vmatprep.subr.mxu0 0.0
  %3105 = vmatpush1.msra.mxu0 0.0
  %3106 = vmatprep.subr.mxu0 0.0
  %3107 = vmatpush1.msra.mxu0 0.0
  %3108 = vmatprep.subr.mxu0 0.0
  %3109 = vmatpush1.msra.mxu0 0.0
  %3110 = vmatprep.subr.mxu0 0.0
  %3111 = vmatpush1.msra.mxu0 0.0
  %3112 = vmatprep.subr.mxu0 0.0
  %3113 = vmatpush1.msra.mxu0 0.0
  %3114 = vmatprep.subr.mxu0 0.0
  %3115 = vmatpush1.msra.mxu0 0.0
  %3116 = vmatprep.subr.mxu0 0.0
  %3117 = vmatpush1.msra.mxu0 0.0
  %3118 = vmatprep.subr.mxu0 0.0
  %3119 = vmatpush1.msra.mxu0 0.0
  %3120 = vmatprep.subr.mxu0 0.0
  %3121 = vmatpush1.msra.mxu0 0.0
  %3122 = vmatprep.subr.mxu0 0.0
  %3123 = vmatpush1.msra.mxu0 0.0
  %3124 = vmatprep.subr.mxu0 0.0
  %3125 = vmatpush1.msra.mxu0 0.0
  %3126 = vmatprep.subr.mxu0 0.0
  %3127 = vmatpush1.msra.mxu0 0.0
  %3128 = vmatprep.subr.mxu0 0.0
  %3129 = vmatpush1.msra.mxu0 0.0
  %3130 = vmatprep.subr.mxu0 0.0
  %3131 = vmatpush1.msra.mxu0 0.0
  %3132 = vmatprep.subr.mxu0 0.0
  %3133 = vmatpush1.msra.mxu0 0.0
  %3134 = vmatprep.subr.mxu0 0.0
  %3135 = vmatpush1.msra.mxu0 0.0
  %3136 = vmatprep.mubr.f32.mxu0 0.0
  %3137 = vmatmul.mubr.f32.gmra.mrb[0].mxu0 %v2489
  %v3138 = vpop.f32.mrb[0].mxu0
  %v3139 = vadd.f32 %v1628, %v3138
  %v3140 = vpop.f32.mrb[0].mxu0
  %3141 = vdwg.mxu0
  %v3142 = vadd.f32 %v2789, %v2999
  %v3143 = vxor.u32 %v3142, 2147483648
  %v3144 = vmul.f32 %v3143, 1.442695
  %v3145 = vpow.pop %v3144
  %v3146 = vadd.f32 %v3145, 1.0
  %v3147 = vrcp.pop %v3146
  %v3148 = vmul.f32 1.0, %v3147
  %v3149 = vadd.f32 %v2859, %v3069
  %v3150 = vxor.u32 %v3149, 2147483648
  %v3151 = vmul.f32 %v3150, 1.442695
  %v3152 = vpow.pop %v3151
  %v3153 = vadd.f32 %v3152, 1.0
  %v3154 = vrcp.pop %v3153
  %v3155 = vmul.f32 1.0, %v3154
  %v3156 = vmul.f32 %v3148, %v3139
  %v3157 = vadd.f32 %v2929, %v3156
  %v3158 = vtanh.pop %v3157
  %v3159 = vsub.f32 1.0, %v3155
  %v3160 = vmul.f32 %v3159, %v3158
  %v3161 = vmul.f32 %v3155, %v1724
  %v3162 = vadd.f32 %v3160, %v3161
  %v3163 = vmul.f32 %v70, %v2721
  %v3164 = vmul.f32 %v1722, %v3162
  %v3165 = vadd.f32 %v3163, %v3164
  %3166 = vmatprep.subr.mxu0 0.0
  %3167 = vmatpush1.msra.mxu0 %v3165
  %3168 = vmatprep.subr.mxu0 0.0
  %3169 = vmatpush1.msra.mxu0 0.0
  %3170 = vmatprep.subr.mxu0 0.0
  %3171 = vmatpush1.msra.mxu0 0.0
  %3172 = vmatprep.subr.mxu0 0.0
  %3173 = vmatpush1.msra.mxu0 0.0
  %3174 = vmatprep.subr.mxu0 0.0
  %3175 = vmatpush1.msra.mxu0 0.0
  %3176 = vmatprep.subr.mxu0 0.0
  %3177 = vmatpush1.msra.mxu0 0.0
  %3178 = vmatprep.subr.mxu0 0.0
  %3179 = vmatpush1.msra.mxu0 0.0
  %3180 = vmatprep.subr.mxu0 0.0
  %3181 = vmatpush1.msra.mxu0 0.0
  %3182 = vmatprep.subr.mxu0 0.0
  %3183 = vmatpush1.msra.mxu0 0.0
  %3184 = vmatprep.subr.mxu0 0.0
  %3185 = vmatpush1.msra.mxu0 0.0
  %3186 = vmatprep.subr.mxu0 0.0
  %3187 = vmatpush1.msra.mxu0 0.0
  %3188 = vmatprep.subr.mxu0 0.0
  %3189 = vmatpush1.msra.mxu0 0.0
  %3190 = vmatprep.subr.mxu0 0.0
  %3191 = vmatpush1.msra.mxu0 0.0
  %3192 = vmatprep.subr.mxu0 0.0
  %3193 = vmatpush1.msra.mxu0 0.0
  %3194 = vmatprep.subr.mxu0 0.0
  %3195 = vmatpush1.msra.mxu0 0.0
  %3196 = vmatprep.subr.mxu0 0.0
  %3197 = vmatpush1.msra.mxu0 0.0
  %3198 = vmatprep.subr.mxu0 0.0
  %3199 = vmatpush1.msra.mxu0 0.0
  %3200 = vmatprep.subr.mxu0 0.0
  %3201 = vmatpush1.msra.mxu0 0.0
  %3202 = vmatprep.subr.mxu0 0.0
  %3203 = vmatpush1.msra.mxu0 0.0
  %3204 = vmatprep.subr.mxu0 0.0
  %3205 = vmatpush1.msra.mxu0 0.0
  %3206 = vmatprep.subr.mxu0 0.0
  %3207 = vmatpush1.msra.mxu0 0.0
  %3208 = vmatprep.subr.mxu0 0.0
  %3209 = vmatpush1.msra.mxu0 0.0
  %3210 = vmatprep.subr.mxu0 0.0
  %3211 = vmatpush1.msra.mxu0 0.0
  %3212 = vmatprep.subr.mxu0 0.0
  %3213 = vmatpush1.msra.mxu0 0.0
  %3214 = vmatprep.subr.mxu0 0.0
  %3215 = vmatpush1.msra.mxu0 0.0
  %3216 = vmatprep.subr.mxu0 0.0
  %3217 = vmatpush1.msra.mxu0 0.0
  %3218 = vmatprep.subr.mxu0 0.0
  %3219 = vmatpush1.msra.mxu0 0.0
  %3220 = vmatprep.subr.mxu0 0.0
  %3221 = vmatpush1.msra.mxu0 0.0
  %3222 = vmatprep.subr.mxu0 0.0
  %3223 = vmatpush1.msra.mxu0 0.0
  %3224 = vmatprep.subr.mxu0 0.0
  %3225 = vmatpush1.msra.mxu0 0.0
  %3226 = vmatprep.subr.mxu0 0.0
  %3227 = vmatpush1.msra.mxu0 0.0
  %3228 = vmatprep.subr.mxu0 0.0
  %3229 = vmatpush1.msra.mxu0 0.0
  %3230 = vmatprep.mubr.f32.mxu0 0.0
  %3231 = vmatmul.mubr.f32.gmra.mrb[0].mxu0 %v102
  %v3232 = vpop.f32.mrb[0].mxu0
  %v3233 = vadd.f32 0.0, %v3232
  %v3234 = vpop.f32.mrb[0].mxu0
  %3235 = vmatprep.mubr.f32.mxu0 0.0
  %3236 = vmatmul.mubr.f32.gmra.mrb[0].mxu0 %v105
  %v3237 = vpop.f32.mrb[0].mxu0
  %v3238 = vadd.f32 0.0, %v3237
  %v3239 = vpop.f32.mrb[0].mxu0
  %3240 = vdwg.mxu0
  %3241 = vmatprep.subr.mxu0 0.0
  %3242 = vmatpush1.msra.mxu0 %v3165
  %3243 = vmatprep.subr.mxu0 0.0
  %3244 = vmatpush1.msra.mxu0 0.0
  %3245 = vmatprep.subr.mxu0 0.0
  %3246 = vmatpush1.msra.mxu0 0.0
  %3247 = vmatprep.subr.mxu0 0.0
  %3248 = vmatpush1.msra.mxu0 0.0
  %3249 = vmatprep.subr.mxu0 0.0
  %3250 = vmatpush1.msra.mxu0 0.0
  %3251 = vmatprep.subr.mxu0 0.0
  %3252 = vmatpush1.msra.mxu0 0.0
  %3253 = vmatprep.subr.mxu0 0.0
  %3254 = vmatpush1.msra.mxu0 0.0
  %3255 = vmatprep.subr.mxu0 0.0
  %3256 = vmatpush1.msra.mxu0 0.0
  %3257 = vmatprep.subr.mxu0 0.0
  %3258 = vmatpush1.msra.mxu0 0.0
  %3259 = vmatprep.subr.mxu0 0.0
  %3260 = vmatpush1.msra.mxu0 0.0
  %3261 = vmatprep.subr.mxu0 0.0
  %3262 = vmatpush1.msra.mxu0 0.0
  %3263 = vmatprep.subr.mxu0 0.0
  %3264 = vmatpush1.msra.mxu0 0.0
  %3265 = vmatprep.subr.mxu0 0.0
  %3266 = vmatpush1.msra.mxu0 0.0
  %3267 = vmatprep.subr.mxu0 0.0
  %3268 = vmatpush1.msra.mxu0 0.0
  %3269 = vmatprep.subr.mxu0 0.0
  %3270 = vmatpush1.msra.mxu0 0.0
  %3271 = vmatprep.subr.mxu0 0.0
  %3272 = vmatpush1.msra.mxu0 0.0
  %3273 = vmatprep.subr.mxu0 0.0
  %3274 = vmatpush1.msra.mxu0 0.0
  %3275 = vmatprep.subr.mxu0 0.0
  %3276 = vmatpush1.msra.mxu0 0.0
  %3277 = vmatprep.subr.mxu0 0.0
  %3278 = vmatpush1.msra.mxu0 0.0
  %3279 = vmatprep.subr.mxu0 0.0
  %3280 = vmatpush1.msra.mxu0 0.0
  %3281 = vmatprep.subr.mxu0 0.0
  %3282 = vmatpush1.msra.mxu0 0.0
  %3283 = vmatprep.subr.mxu0 0.0
  %3284 = vmatpush1.msra.mxu0 0.0
  %3285 = vmatprep.subr.mxu0 0.0
  %3286 = vmatpush1.msra.mxu0 0.0
  %3287 = vmatprep.subr.mxu0 0.0
  %3288 = vmatpush1.msra.mxu0 0.0
  %3289 = vmatprep.subr.mxu0 0.0
  %3290 = vmatpush1.msra.mxu0 0.0
  %3291 = vmatprep.subr.mxu0 0.0
  %3292 = vmatpush1.msra.mxu0 0.0
  %3293 = vmatprep.subr.mxu0 0.0
  %3294 = vmatpush1.msra.mxu0 0.0
  %3295 = vmatprep.subr.mxu0 0.0
  %3296 = vmatpush1.msra.mxu0 0.0
  %3297 = vmatprep.subr.mxu0 0.0
  %3298 = vmatpush1.msra.mxu0 0.0
  %3299 = vmatprep.subr.mxu0 0.0
  %3300 = vmatpush1.msra.mxu0 0.0
  %3301 = vmatprep.subr.mxu0 0.0
  %3302 = vmatpush1.msra.mxu0 0.0
  %3303 = vmatprep.subr.mxu0 0.0
  %3304 = vmatpush1.msra.mxu0 0.0
  %3305 = vmatprep.mubr.f32.mxu0 0.0
  %3306 = vmatmul.mubr.f32.gmra.mrb[0].mxu0 %v183
  %v3307 = vpop.f32.mrb[0].mxu0
  %v3308 = vadd.f32 0.0, %v3307
  %v3309 = vpop.f32.mrb[0].mxu0
  %3310 = vmatprep.mubr.f32.mxu0 0.0
  %3311 = vmatmul.mubr.f32.gmra.mrb[0].mxu0 %v186
  %v3312 = vpop.f32.mrb[0].mxu0
  %v3313 = vadd.f32 0.0, %v3312
  %v3314 = vpop.f32.mrb[0].mxu0
  %3315 = vdwg.mxu0
  %v3317 = vsel %vm263, %v3308, 0
  %v3320 = vsel %vm263, %v3313, 0
  %3322 = vmatprep.subr.mxu0 0.0
  %3323 = vmatpush1.msra.mxu0 %v78
  %3324 = vmatprep.subr.mxu0 0.0
  %3325 = vmatpush1.msra.mxu0 %v79
  %3326 = vmatprep.subr.mxu0 0.0
  %3327 = vmatpush1.msra.mxu0 %v80
  %3328 = vmatprep.subr.mxu0 0.0
  %3329 = vmatpush1.msra.mxu0 %v81
  %3330 = vmatprep.subr.mxu0 0.0
  %3331 = vmatpush1.msra.mxu0 0.0
  %3332 = vmatprep.subr.mxu0 0.0
  %3333 = vmatpush1.msra.mxu0 0.0
  %3334 = vmatprep.subr.mxu0 0.0
  %3335 = vmatpush1.msra.mxu0 0.0
  %3336 = vmatprep.subr.mxu0 0.0
  %3337 = vmatpush1.msra.mxu0 0.0
  %3338 = vmatprep.subr.mxu0 0.0
  %3339 = vmatpush1.msra.mxu0 0.0
  %3340 = vmatprep.subr.mxu0 0.0
  %3341 = vmatpush1.msra.mxu0 0.0
  %3342 = vmatprep.subr.mxu0 0.0
  %3343 = vmatpush1.msra.mxu0 0.0
  %3344 = vmatprep.subr.mxu0 0.0
  %3345 = vmatpush1.msra.mxu0 0.0
  %3346 = vmatprep.subr.mxu0 0.0
  %3347 = vmatpush1.msra.mxu0 0.0
  %3348 = vmatprep.subr.mxu0 0.0
  %3349 = vmatpush1.msra.mxu0 0.0
  %3350 = vmatprep.subr.mxu0 0.0
  %3351 = vmatpush1.msra.mxu0 0.0
  %3352 = vmatprep.subr.mxu0 0.0
  %3353 = vmatpush1.msra.mxu0 0.0
  %3354 = vmatprep.subr.mxu0 0.0
  %3355 = vmatpush1.msra.mxu0 0.0
  %3356 = vmatprep.subr.mxu0 0.0
  %3357 = vmatpush1.msra.mxu0 0.0
  %3358 = vmatprep.subr.mxu0 0.0
  %3359 = vmatpush1.msra.mxu0 0.0
  %3360 = vmatprep.subr.mxu0 0.0
  %3361 = vmatpush1.msra.mxu0 0.0
  %3362 = vmatprep.subr.mxu0 0.0
  %3363 = vmatpush1.msra.mxu0 0.0
  %3364 = vmatprep.subr.mxu0 0.0
  %3365 = vmatpush1.msra.mxu0 0.0
  %3366 = vmatprep.subr.mxu0 0.0
  %3367 = vmatpush1.msra.mxu0 0.0
  %3368 = vmatprep.subr.mxu0 0.0
  %3369 = vmatpush1.msra.mxu0 0.0
  %3370 = vmatprep.subr.mxu0 0.0
  %3371 = vmatpush1.msra.mxu0 0.0
  %3372 = vmatprep.subr.mxu0 0.0
  %3373 = vmatpush1.msra.mxu0 0.0
  %3374 = vmatprep.subr.mxu0 0.0
  %3375 = vmatpush1.msra.mxu0 0.0
  %3376 = vmatprep.subr.mxu0 0.0
  %3377 = vmatpush1.msra.mxu0 0.0
  %3378 = vmatprep.subr.mxu0 0.0
  %3379 = vmatpush1.msra.mxu0 0.0
  %3380 = vmatprep.subr.mxu0 0.0
  %3381 = vmatpush1.msra.mxu0 0.0
  %3382 = vmatprep.subr.mxu0 0.0
  %3383 = vmatpush1.msra.mxu0 0.0
  %3384 = vmatprep.subr.mxu0 0.0
  %3385 = vmatpush1.msra.mxu0 0.0
  %3386 = vmatprep.mubr.f32.mxu0 0.0
  %3387 = vmatmul.mubr.f32.gmra.mrb[0].mxu0 %v3317
  %v3388 = vpop.f32.mrb[0].mxu0
  %v3389 = vadd.f32 0.0, %v3388
  %v3390 = vpop.f32.mrb[0].mxu0
  %3391 = vmatprep.mubr.f32.mxu0 0.0
  %3392 = vmatmul.mubr.f32.gmra.mrb[0].mxu0 %v3320
  %v3393 = vpop.f32.mrb[0].mxu0
  %v3394 = vadd.f32 0.0, %v3393
  %v3395 = vpop.f32.mrb[0].mxu0
  %3396 = vdwg.mxu0
  %v3398 = vsel %vm263, %v3233, 0
  %v3401 = vsel %vm263, %v3238, 0
  %3403 = vmatprep.subr.mxu0 0.0
  %3404 = vmatpush1.msra.mxu0 %v73
  %3405 = vmatprep.subr.mxu0 0.0
  %3406 = vmatpush1.msra.mxu0 %v74
  %3407 = vmatprep.subr.mxu0 0.0
  %3408 = vmatpush1.msra.mxu0 %v75
  %3409 = vmatprep.subr.mxu0 0.0
  %3410 = vmatpush1.msra.mxu0 %v76
  %3411 = vmatprep.subr.mxu0 0.0
  %3412 = vmatpush1.msra.mxu0 0.0
  %3413 = vmatprep.subr.mxu0 0.0
  %3414 = vmatpush1.msra.mxu0 0.0
  %3415 = vmatprep.subr.mxu0 0.0
  %3416 = vmatpush1.msra.mxu0 0.0
  %3417 = vmatprep.subr.mxu0 0.0
  %3418 = vmatpush1.msra.mxu0 0.0
  %3419 = vmatprep.subr.mxu0 0.0
  %3420 = vmatpush1.msra.mxu0 0.0
  %3421 = vmatprep.subr.mxu0 0.0
  %3422 = vmatpush1.msra.mxu0 0.0
  %3423 = vmatprep.subr.mxu0 0.0
  %3424 = vmatpush1.msra.mxu0 0.0
  %3425 = vmatprep.subr.mxu0 0.0
  %3426 = vmatpush1.msra.mxu0 0.0
  %3427 = vmatprep.subr.mxu0 0.0
  %3428 = vmatpush1.msra.mxu0 0.0
  %3429 = vmatprep.subr.mxu0 0.0
  %3430 = vmatpush1.msra.mxu0 0.0
  %3431 = vmatprep.subr.mxu0 0.0
  %3432 = vmatpush1.msra.mxu0 0.0
  %3433 = vmatprep.subr.mxu0 0.0
  %3434 = vmatpush1.msra.mxu0 0.0
  %3435 = vmatprep.subr.mxu0 0.0
  %3436 = vmatpush1.msra.mxu0 0.0
  %3437 = vmatprep.subr.mxu0 0.0
  %3438 = vmatpush1.msra.mxu0 0.0
  %3439 = vmatprep.subr.mxu0 0.0
  %3440 = vmatpush1.msra.mxu0 0.0
  %3441 = vmatprep.subr.mxu0 0.0
  %3442 = vmatpush1.msra.mxu0 0.0
  %3443 = vmatprep.subr.mxu0 0.0
  %3444 = vmatpush1.msra.mxu0 0.0
  %3445 = vmatprep.subr.mxu0 0.0
  %3446 = vmatpush1.msra.mxu0 0.0
  %3447 = vmatprep.subr.mxu0 0.0
  %3448 = vmatpush1.msra.mxu0 0.0
  %3449 = vmatprep.subr.mxu0 0.0
  %3450 = vmatpush1.msra.mxu0 0.0
  %3451 = vmatprep.subr.mxu0 0.0
  %3452 = vmatpush1.msra.mxu0 0.0
  %3453 = vmatprep.subr.mxu0 0.0
  %3454 = vmatpush1.msra.mxu0 0.0
  %3455 = vmatprep.subr.mxu0 0.0
  %3456 = vmatpush1.msra.mxu0 0.0
  %3457 = vmatprep.subr.mxu0 0.0
  %3458 = vmatpush1.msra.mxu0 0.0
  %3459 = vmatprep.subr.mxu0 0.0
  %3460 = vmatpush1.msra.mxu0 0.0
  %3461 = vmatprep.subr.mxu0 0.0
  %3462 = vmatpush1.msra.mxu0 0.0
  %3463 = vmatprep.subr.mxu0 0.0
  %3464 = vmatpush1.msra.mxu0 0.0
  %3465 = vmatprep.subr.mxu0 0.0
  %3466 = vmatpush1.msra.mxu0 0.0
  %3467 = vmatprep.mubr.f32.mxu0 0.0
  %3468 = vmatmul.mubr.f32.gmra.mrb[0].mxu0 %v3398
  %v3469 = vpop.f32.mrb[0].mxu0
  %v3470 = vadd.f32 %v3389, %v3469
  %v3471 = vpop.f32.mrb[0].mxu0
  %3472 = vmatprep.mubr.f32.mxu0 0.0
  %3473 = vmatmul.mubr.f32.gmra.mrb[0].mxu0 %v3401
  %v3474 = vpop.f32.mrb[0].mxu0
  %v3475 = vadd.f32 %v3394, %v3474
  %v3476 = vpop.f32.mrb[0].mxu0
  %3477 = vdwg.mxu0
  %v3478 = vadd.f32 %v3470, %v71
  %v3479 = vadd.f32 %v3475, %v72
  %v3480 = vmax.f32 %v3478, 0.0
  %v3481 = vmax.f32 %v3479, 0.0
  %v3483 = vsel %vm436, %v3480, 0
  %v3486 = vsel %vm436, %v3481, 0
  %3488 = vmatprep.subr.mxu0 0.0
  %3489 = vmatpush1.msra.mxu0 %v82
  %3490 = vmatprep.subr.mxu0 0.0
  %3491 = vmatpush1.msra.mxu0 %v83
  %3492 = vmatprep.subr.mxu0 0.0
  %3493 = vmatpush1.msra.mxu0 %v84
  %3494 = vmatprep.subr.mxu0 0.0
  %3495 = vmatpush1.msra.mxu0 %v85
  %3496 = vmatprep.subr.mxu0 0.0
  %3497 = vmatpush1.msra.mxu0 %v86
  %3498 = vmatprep.subr.mxu0 0.0
  %3499 = vmatpush1.msra.mxu0 %v87
  %3500 = vmatprep.subr.mxu0 0.0
  %3501 = vmatpush1.msra.mxu0 %v88
  %3502 = vmatprep.subr.mxu0 0.0
  %3503 = vmatpush1.msra.mxu0 %v89
  %3504 = vmatprep.subr.mxu0 0.0
  %3505 = vmatpush1.msra.mxu0 0.0
  %3506 = vmatprep.subr.mxu0 0.0
  %3507 = vmatpush1.msra.mxu0 0.0
  %3508 = vmatprep.subr.mxu0 0.0
  %3509 = vmatpush1.msra.mxu0 0.0
  %3510 = vmatprep.subr.mxu0 0.0
  %3511 = vmatpush1.msra.mxu0 0.0
  %3512 = vmatprep.subr.mxu0 0.0
  %3513 = vmatpush1.msra.mxu0 0.0
  %3514 = vmatprep.subr.mxu0 0.0
  %3515 = vmatpush1.msra.mxu0 0.0
  %3516 = vmatprep.subr.mxu0 0.0
  %3517 = vmatpush1.msra.mxu0 0.0
  %3518 = vmatprep.subr.mxu0 0.0
  %3519 = vmatpush1.msra.mxu0 0.0
  %3520 = vmatprep.subr.mxu0 0.0
  %3521 = vmatpush1.msra.mxu0 0.0
  %3522 = vmatprep.subr.mxu0 0.0
  %3523 = vmatpush1.msra.mxu0 0.0
  %3524 = vmatprep.subr.mxu0 0.0
  %3525 = vmatpush1.msra.mxu0 0.0
  %3526 = vmatprep.subr.mxu0 0.0
  %3527 = vmatpush1.msra.mxu0 0.0
  %3528 = vmatprep.subr.mxu0 0.0
  %3529 = vmatpush1.msra.mxu0 0.0
  %3530 = vmatprep.subr.mxu0 0.0
  %3531 = vmatpush1.msra.mxu0 0.0
  %3532 = vmatprep.subr.mxu0 0.0
  %3533 = vmatpush1.msra.mxu0 0.0
  %3534 = vmatprep.subr.mxu0 0.0
  %3535 = vmatpush1.msra.mxu0 0.0
  %3536 = vmatprep.subr.mxu0 0.0
  %3537 = vmatpush1.msra.mxu0 0.0
  %3538 = vmatprep.subr.mxu0 0.0
  %3539 = vmatpush1.msra.mxu0 0.0
  %3540 = vmatprep.subr.mxu0 0.0
  %3541 = vmatpush1.msra.mxu0 0.0
  %3542 = vmatprep.subr.mxu0 0.0
  %3543 = vmatpush1.msra.mxu0 0.0
  %3544 = vmatprep.subr.mxu0 0.0
  %3545 = vmatpush1.msra.mxu0 0.0
  %3546 = vmatprep.subr.mxu0 0.0
  %3547 = vmatpush1.msra.mxu0 0.0
  %3548 = vmatprep.subr.mxu0 0.0
  %3549 = vmatpush1.msra.mxu0 0.0
  %3550 = vmatprep.subr.mxu0 0.0
  %3551 = vmatpush1.msra.mxu0 0.0
  %3552 = vmatprep.mubr.f32.mxu0 0.0
  %3553 = vmatmul.mubr.f32.gmra.mrb[0].mxu0 %v3483
  %v3554 = vpop.f32.mrb[0].mxu0
  %v3555 = vadd.f32 %v434, %v3554
  %v3556 = vpop.f32.mrb[0].mxu0
  %3557 = vmatprep.mubr.f32.mxu0 0.0
  %3558 = vmatmul.mubr.f32.gmra.mrb[0].mxu0 %v3486
  %v3559 = vpop.f32.mrb[0].mxu0
  %v3560 = vadd.f32 %v434, %v3559
  %v3561 = vpop.f32.mrb[0].mxu0
  %3562 = vdwg.mxu0
  %v3563 = vmax.f32 %v3555, 0.0
  %v3564 = vmax.f32 %v3560, 0.0
  %v3566 = vsel %vm436, %v3563, 0
  %v3569 = vsel %vm436, %v3564, 0
  %3571 = vmatprep.subr.mxu0 0.0
  %3572 = vmatpush1.msra.mxu0 %v91
  %3573 = vmatprep.subr.mxu0 0.0
  %3574 = vmatpush1.msra.mxu0 %v92
  %3575 = vmatprep.subr.mxu0 0.0
  %3576 = vmatpush1.msra.mxu0 %v93
  %3577 = vmatprep.subr.mxu0 0.0
  %3578 = vmatpush1.msra.mxu0 %v94
  %3579 = vmatprep.subr.mxu0 0.0
  %3580 = vmatpush1.msra.mxu0 %v95
  %3581 = vmatprep.subr.mxu0 0.0
  %3582 = vmatpush1.msra.mxu0 %v96
  %3583 = vmatprep.subr.mxu0 0.0
  %3584 = vmatpush1.msra.mxu0 %v97
  %3585 = vmatprep.subr.mxu0 0.0
  %3586 = vmatpush1.msra.mxu0 %v98
  %3587 = vmatprep.subr.mxu0 0.0
  %3588 = vmatpush1.msra.mxu0 0.0
  %3589 = vmatprep.subr.mxu0 0.0
  %3590 = vmatpush1.msra.mxu0 0.0
  %3591 = vmatprep.subr.mxu0 0.0
  %3592 = vmatpush1.msra.mxu0 0.0
  %3593 = vmatprep.subr.mxu0 0.0
  %3594 = vmatpush1.msra.mxu0 0.0
  %3595 = vmatprep.subr.mxu0 0.0
  %3596 = vmatpush1.msra.mxu0 0.0
  %3597 = vmatprep.subr.mxu0 0.0
  %3598 = vmatpush1.msra.mxu0 0.0
  %3599 = vmatprep.subr.mxu0 0.0
  %3600 = vmatpush1.msra.mxu0 0.0
  %3601 = vmatprep.subr.mxu0 0.0
  %3602 = vmatpush1.msra.mxu0 0.0
  %3603 = vmatprep.subr.mxu0 0.0
  %3604 = vmatpush1.msra.mxu0 0.0
  %3605 = vmatprep.subr.mxu0 0.0
  %3606 = vmatpush1.msra.mxu0 0.0
  %3607 = vmatprep.subr.mxu0 0.0
  %3608 = vmatpush1.msra.mxu0 0.0
  %3609 = vmatprep.subr.mxu0 0.0
  %3610 = vmatpush1.msra.mxu0 0.0
  %3611 = vmatprep.subr.mxu0 0.0
  %3612 = vmatpush1.msra.mxu0 0.0
  %3613 = vmatprep.subr.mxu0 0.0
  %3614 = vmatpush1.msra.mxu0 0.0
  %3615 = vmatprep.subr.mxu0 0.0
  %3616 = vmatpush1.msra.mxu0 0.0
  %3617 = vmatprep.subr.mxu0 0.0
  %3618 = vmatpush1.msra.mxu0 0.0
  %3619 = vmatprep.subr.mxu0 0.0
  %3620 = vmatpush1.msra.mxu0 0.0
  %3621 = vmatprep.subr.mxu0 0.0
  %3622 = vmatpush1.msra.mxu0 0.0
  %3623 = vmatprep.subr.mxu0 0.0
  %3624 = vmatpush1.msra.mxu0 0.0
  %3625 = vmatprep.subr.mxu0 0.0
  %3626 = vmatpush1.msra.mxu0 0.0
  %3627 = vmatprep.subr.mxu0 0.0
  %3628 = vmatpush1.msra.mxu0 0.0
  %3629 = vmatprep.subr.mxu0 0.0
  %3630 = vmatpush1.msra.mxu0 0.0
  %3631 = vmatprep.subr.mxu0 0.0
  %3632 = vmatpush1.msra.mxu0 0.0
  %3633 = vmatprep.subr.mxu0 0.0
  %3634 = vmatpush1.msra.mxu0 0.0
  %3635 = vmatprep.mubr.f32.mxu0 0.0
  %3636 = vmatmul.mubr.f32.gmra.mrb[0].mxu0 %v3566
  %v3637 = vpop.f32.mrb[0].mxu0
  %v3638 = vadd.f32 %v524, %v3637
  %v3639 = vpop.f32.mrb[0].mxu0
  %3640 = vmatprep.mubr.f32.mxu0 0.0
  %3641 = vmatmul.mubr.f32.gmra.mrb[0].mxu0 %v3569
  %v3642 = vpop.f32.mrb[0].mxu0
  %v3643 = vadd.f32 %v524, %v3642
  %v3644 = vpop.f32.mrb[0].mxu0
  %3645 = vdwg.mxu0
  %3646 = vmatprep.subr.mxu0 0.0
  %3647 = vmatpush1.msra.mxu0 %v3638
  %3648 = vmatprep.subr.mxu0 0.0
  %3649 = vmatpush1.msra.mxu0 %v3643
  %3650 = vmatprep.subr.mxu0 0.0
  %3651 = vmatpush1.msra.mxu0 0.0
  %3652 = vmatprep.subr.mxu0 0.0
  %3653 = vmatpush1.msra.mxu0 0.0
  %3654 = vmatprep.subr.mxu0 0.0
  %3655 = vmatpush1.msra.mxu0 0.0
  %3656 = vmatprep.subr.mxu0 0.0
  %3657 = vmatpush1.msra.mxu0 0.0
  %3658 = vmatprep.subr.mxu0 0.0
  %3659 = vmatpush1.msra.mxu0 0.0
  %3660 = vmatprep.subr.mxu0 0.0
  %3661 = vmatpush1.msra.mxu0 0.0
  %3662 = vmatprep.subr.mxu0 0.0
  %3663 = vmatpush1.msra.mxu0 0.0
  %3664 = vmatprep.subr.mxu0 0.0
  %3665 = vmatpush1.msra.mxu0 0.0
  %3666 = vmatprep.subr.mxu0 0.0
  %3667 = vmatpush1.msra.mxu0 0.0
  %3668 = vmatprep.subr.mxu0 0.0
  %3669 = vmatpush1.msra.mxu0 0.0
  %3670 = vmatprep.subr.mxu0 0.0
  %3671 = vmatpush1.msra.mxu0 0.0
  %3672 = vmatprep.subr.mxu0 0.0
  %3673 = vmatpush1.msra.mxu0 0.0
  %3674 = vmatprep.subr.mxu0 0.0
  %3675 = vmatpush1.msra.mxu0 0.0
  %3676 = vmatprep.subr.mxu0 0.0
  %3677 = vmatpush1.msra.mxu0 0.0
  %3678 = vmatprep.subr.mxu0 0.0
  %3679 = vmatpush1.msra.mxu0 0.0
  %3680 = vmatprep.subr.mxu0 0.0
  %3681 = vmatpush1.msra.mxu0 0.0
  %3682 = vmatprep.subr.mxu0 0.0
  %3683 = vmatpush1.msra.mxu0 0.0
  %3684 = vmatprep.subr.mxu0 0.0
  %3685 = vmatpush1.msra.mxu0 0.0
  %3686 = vmatprep.subr.mxu0 0.0
  %3687 = vmatpush1.msra.mxu0 0.0
  %3688 = vmatprep.subr.mxu0 0.0
  %3689 = vmatpush1.msra.mxu0 0.0
  %3690 = vmatprep.subr.mxu0 0.0
  %3691 = vmatpush1.msra.mxu0 0.0
  %3692 = vmatprep.subr.mxu0 0.0
  %3693 = vmatpush1.msra.mxu0 0.0
  %3694 = vmatprep.subr.mxu0 0.0
  %3695 = vmatpush1.msra.mxu0 0.0
  %3696 = vmatprep.subr.mxu0 0.0
  %3697 = vmatpush1.msra.mxu0 0.0
  %3698 = vmatprep.subr.mxu0 0.0
  %3699 = vmatpush1.msra.mxu0 0.0
  %3700 = vmatprep.subr.mxu0 0.0
  %3701 = vmatpush1.msra.mxu0 0.0
  %3702 = vmatprep.subr.mxu0 0.0
  %3703 = vmatpush1.msra.mxu0 0.0
  %3704 = vmatprep.subr.mxu0 0.0
  %3705 = vmatpush1.msra.mxu0 0.0
  %3706 = vmatprep.subr.mxu0 0.0
  %3707 = vmatpush1.msra.mxu0 0.0
  %3708 = vmatprep.subr.mxu0 0.0
  %3709 = vmatpush1.msra.mxu0 0.0
  %3710 = vmatprep.mubr.f32.mxu0 0.0
  %3711 = vmatmul.mubr.f32.gmra.mrb[0].mxu0 %v609
  %v3712 = vpop.f32.mrb[0].mxu0
  %v3713 = vadd.f32 0.0, %v3712
  %v3714 = vpop.f32.mrb[0].mxu0
  %3715 = vdwg.mxu0
  %v3717 = vsel %vm263, %v3713, 0
  %3719 = vmatprep.subr.mxu0 0.0
  %3720 = vmatpush1.msra.mxu0 %v681
  %3721 = vmatprep.subr.mxu0 0.0
  %3722 = vmatpush1.msra.mxu0 %v682
  %3723 = vmatprep.subr.mxu0 0.0
  %3724 = vmatpush1.msra.mxu0 %v683
  %3725 = vmatprep.subr.mxu0 0.0
  %3726 = vmatpush1.msra.mxu0 %v684
  %3727 = vmatprep.subr.mxu0 0.0
  %3728 = vmatpush1.msra.mxu0 0.0
  %3729 = vmatprep.subr.mxu0 0.0
  %3730 = vmatpush1.msra.mxu0 0.0
  %3731 = vmatprep.subr.mxu0 0.0
  %3732 = vmatpush1.msra.mxu0 0.0
  %3733 = vmatprep.subr.mxu0 0.0
  %3734 = vmatpush1.msra.mxu0 0.0
  %3735 = vmatprep.subr.mxu0 0.0
  %3736 = vmatpush1.msra.mxu0 0.0
  %3737 = vmatprep.subr.mxu0 0.0
  %3738 = vmatpush1.msra.mxu0 0.0
  %3739 = vmatprep.subr.mxu0 0.0
  %3740 = vmatpush1.msra.mxu0 0.0
  %3741 = vmatprep.subr.mxu0 0.0
  %3742 = vmatpush1.msra.mxu0 0.0
  %3743 = vmatprep.subr.mxu0 0.0
  %3744 = vmatpush1.msra.mxu0 0.0
  %3745 = vmatprep.subr.mxu0 0.0
  %3746 = vmatpush1.msra.mxu0 0.0
  %3747 = vmatprep.subr.mxu0 0.0
  %3748 = vmatpush1.msra.mxu0 0.0
  %3749 = vmatprep.subr.mxu0 0.0
  %3750 = vmatpush1.msra.mxu0 0.0
  %3751 = vmatprep.subr.mxu0 0.0
  %3752 = vmatpush1.msra.mxu0 0.0
  %3753 = vmatprep.subr.mxu0 0.0
  %3754 = vmatpush1.msra.mxu0 0.0
  %3755 = vmatprep.subr.mxu0 0.0
  %3756 = vmatpush1.msra.mxu0 0.0
  %3757 = vmatprep.subr.mxu0 0.0
  %3758 = vmatpush1.msra.mxu0 0.0
  %3759 = vmatprep.subr.mxu0 0.0
  %3760 = vmatpush1.msra.mxu0 0.0
  %3761 = vmatprep.subr.mxu0 0.0
  %3762 = vmatpush1.msra.mxu0 0.0
  %3763 = vmatprep.subr.mxu0 0.0
  %3764 = vmatpush1.msra.mxu0 0.0
  %3765 = vmatprep.subr.mxu0 0.0
  %3766 = vmatpush1.msra.mxu0 0.0
  %3767 = vmatprep.subr.mxu0 0.0
  %3768 = vmatpush1.msra.mxu0 0.0
  %3769 = vmatprep.subr.mxu0 0.0
  %3770 = vmatpush1.msra.mxu0 0.0
  %3771 = vmatprep.subr.mxu0 0.0
  %3772 = vmatpush1.msra.mxu0 0.0
  %3773 = vmatprep.subr.mxu0 0.0
  %3774 = vmatpush1.msra.mxu0 0.0
  %3775 = vmatprep.subr.mxu0 0.0
  %3776 = vmatpush1.msra.mxu0 0.0
  %3777 = vmatprep.subr.mxu0 0.0
  %3778 = vmatpush1.msra.mxu0 0.0
  %3779 = vmatprep.subr.mxu0 0.0
  %3780 = vmatpush1.msra.mxu0 0.0
  %3781 = vmatprep.subr.mxu0 0.0
  %3782 = vmatpush1.msra.mxu0 0.0
  %3783 = vmatprep.mubr.f32.mxu0 0.0
  %3784 = vmatmul.mubr.f32.gmra.mrb[0].mxu0 %v3717
  %v3785 = vpop.f32.mrb[0].mxu0
  %v3786 = vadd.f32 %v690, %v3785
  %v3787 = vpop.f32.mrb[0].mxu0
  %3788 = vdwg.mxu0
  %3789 = vmatprep.subr.mxu0 0.0
  %3790 = vmatpush1.msra.mxu0 %v766
  %3791 = vmatprep.subr.mxu0 0.0
  %3792 = vmatpush1.msra.mxu0 %v767
  %3793 = vmatprep.subr.mxu0 0.0
  %3794 = vmatpush1.msra.mxu0 %v768
  %3795 = vmatprep.subr.mxu0 0.0
  %3796 = vmatpush1.msra.mxu0 %v769
  %3797 = vmatprep.subr.mxu0 0.0
  %3798 = vmatpush1.msra.mxu0 0.0
  %3799 = vmatprep.subr.mxu0 0.0
  %3800 = vmatpush1.msra.mxu0 0.0
  %3801 = vmatprep.subr.mxu0 0.0
  %3802 = vmatpush1.msra.mxu0 0.0
  %3803 = vmatprep.subr.mxu0 0.0
  %3804 = vmatpush1.msra.mxu0 0.0
  %3805 = vmatprep.subr.mxu0 0.0
  %3806 = vmatpush1.msra.mxu0 0.0
  %3807 = vmatprep.subr.mxu0 0.0
  %3808 = vmatpush1.msra.mxu0 0.0
  %3809 = vmatprep.subr.mxu0 0.0
  %3810 = vmatpush1.msra.mxu0 0.0
  %3811 = vmatprep.subr.mxu0 0.0
  %3812 = vmatpush1.msra.mxu0 0.0
  %3813 = vmatprep.subr.mxu0 0.0
  %3814 = vmatpush1.msra.mxu0 0.0
  %3815 = vmatprep.subr.mxu0 0.0
  %3816 = vmatpush1.msra.mxu0 0.0
  %3817 = vmatprep.subr.mxu0 0.0
  %3818 = vmatpush1.msra.mxu0 0.0
  %3819 = vmatprep.subr.mxu0 0.0
  %3820 = vmatpush1.msra.mxu0 0.0
  %3821 = vmatprep.subr.mxu0 0.0
  %3822 = vmatpush1.msra.mxu0 0.0
  %3823 = vmatprep.subr.mxu0 0.0
  %3824 = vmatpush1.msra.mxu0 0.0
  %3825 = vmatprep.subr.mxu0 0.0
  %3826 = vmatpush1.msra.mxu0 0.0
  %3827 = vmatprep.subr.mxu0 0.0
  %3828 = vmatpush1.msra.mxu0 0.0
  %3829 = vmatprep.subr.mxu0 0.0
  %3830 = vmatpush1.msra.mxu0 0.0
  %3831 = vmatprep.subr.mxu0 0.0
  %3832 = vmatpush1.msra.mxu0 0.0
  %3833 = vmatprep.subr.mxu0 0.0
  %3834 = vmatpush1.msra.mxu0 0.0
  %3835 = vmatprep.subr.mxu0 0.0
  %3836 = vmatpush1.msra.mxu0 0.0
  %3837 = vmatprep.subr.mxu0 0.0
  %3838 = vmatpush1.msra.mxu0 0.0
  %3839 = vmatprep.subr.mxu0 0.0
  %3840 = vmatpush1.msra.mxu0 0.0
  %3841 = vmatprep.subr.mxu0 0.0
  %3842 = vmatpush1.msra.mxu0 0.0
  %3843 = vmatprep.subr.mxu0 0.0
  %3844 = vmatpush1.msra.mxu0 0.0
  %3845 = vmatprep.subr.mxu0 0.0
  %3846 = vmatpush1.msra.mxu0 0.0
  %3847 = vmatprep.subr.mxu0 0.0
  %3848 = vmatpush1.msra.mxu0 0.0
  %3849 = vmatprep.subr.mxu0 0.0
  %3850 = vmatpush1.msra.mxu0 0.0
  %3851 = vmatprep.subr.mxu0 0.0
  %3852 = vmatpush1.msra.mxu0 0.0
  %3853 = vmatprep.mubr.f32.mxu0 0.0
  %3854 = vmatmul.mubr.f32.gmra.mrb[0].mxu0 %v3717
  %v3855 = vpop.f32.mrb[0].mxu0
  %v3856 = vadd.f32 %v776, %v3855
  %v3857 = vpop.f32.mrb[0].mxu0
  %3858 = vdwg.mxu0
  %3859 = vmatprep.subr.mxu0 0.0
  %3860 = vmatpush1.msra.mxu0 %v849
  %3861 = vmatprep.subr.mxu0 0.0
  %3862 = vmatpush1.msra.mxu0 %v850
  %3863 = vmatprep.subr.mxu0 0.0
  %3864 = vmatpush1.msra.mxu0 %v851
  %3865 = vmatprep.subr.mxu0 0.0
  %3866 = vmatpush1.msra.mxu0 %v852
  %3867 = vmatprep.subr.mxu0 0.0
  %3868 = vmatpush1.msra.mxu0 0.0
  %3869 = vmatprep.subr.mxu0 0.0
  %3870 = vmatpush1.msra.mxu0 0.0
  %3871 = vmatprep.subr.mxu0 0.0
  %3872 = vmatpush1.msra.mxu0 0.0
  %3873 = vmatprep.subr.mxu0 0.0
  %3874 = vmatpush1.msra.mxu0 0.0
  %3875 = vmatprep.subr.mxu0 0.0
  %3876 = vmatpush1.msra.mxu0 0.0
  %3877 = vmatprep.subr.mxu0 0.0
  %3878 = vmatpush1.msra.mxu0 0.0
  %3879 = vmatprep.subr.mxu0 0.0
  %3880 = vmatpush1.msra.mxu0 0.0
  %3881 = vmatprep.subr.mxu0 0.0
  %3882 = vmatpush1.msra.mxu0 0.0
  %3883 = vmatprep.subr.mxu0 0.0
  %3884 = vmatpush1.msra.mxu0 0.0
  %3885 = vmatprep.subr.mxu0 0.0
  %3886 = vmatpush1.msra.mxu0 0.0
  %3887 = vmatprep.subr.mxu0 0.0
  %3888 = vmatpush1.msra.mxu0 0.0
  %3889 = vmatprep.subr.mxu0 0.0
  %3890 = vmatpush1.msra.mxu0 0.0
  %3891 = vmatprep.subr.mxu0 0.0
  %3892 = vmatpush1.msra.mxu0 0.0
  %3893 = vmatprep.subr.mxu0 0.0
  %3894 = vmatpush1.msra.mxu0 0.0
  %3895 = vmatprep.subr.mxu0 0.0
  %3896 = vmatpush1.msra.mxu0 0.0
  %3897 = vmatprep.subr.mxu0 0.0
  %3898 = vmatpush1.msra.mxu0 0.0
  %3899 = vmatprep.subr.mxu0 0.0
  %3900 = vmatpush1.msra.mxu0 0.0
  %3901 = vmatprep.subr.mxu0 0.0
  %3902 = vmatpush1.msra.mxu0 0.0
  %3903 = vmatprep.subr.mxu0 0.0
  %3904 = vmatpush1.msra.mxu0 0.0
  %3905 = vmatprep.subr.mxu0 0.0
  %3906 = vmatpush1.msra.mxu0 0.0
  %3907 = vmatprep.subr.mxu0 0.0
  %3908 = vmatpush1.msra.mxu0 0.0
  %3909 = vmatprep.subr.mxu0 0.0
  %3910 = vmatpush1.msra.mxu0 0.0
  %3911 = vmatprep.subr.mxu0 0.0
  %3912 = vmatpush1.msra.mxu0 0.0
  %3913 = vmatprep.subr.mxu0 0.0
  %3914 = vmatpush1.msra.mxu0 0.0
  %3915 = vmatprep.subr.mxu0 0.0
  %3916 = vmatpush1.msra.mxu0 0.0
  %3917 = vmatprep.subr.mxu0 0.0
  %3918 = vmatpush1.msra.mxu0 0.0
  %3919 = vmatprep.subr.mxu0 0.0
  %3920 = vmatpush1.msra.mxu0 0.0
  %3921 = vmatprep.subr.mxu0 0.0
  %3922 = vmatpush1.msra.mxu0 0.0
  %3923 = vmatprep.mubr.f32.mxu0 0.0
  %3924 = vmatmul.mubr.f32.gmra.mrb[0].mxu0 %v3717
  %v3925 = vpop.f32.mrb[0].mxu0
  %v3926 = vadd.f32 %v859, %v3925
  %v3927 = vpop.f32.mrb[0].mxu0
  %3928 = vdwg.mxu0
  %v3930 = vsel %vm263, %v3165, 0
  %3932 = vmatprep.subr.mxu0 0.0
  %3933 = vmatpush1.msra.mxu0 %v931
  %3934 = vmatprep.subr.mxu0 0.0
  %3935 = vmatpush1.msra.mxu0 %v932
  %3936 = vmatprep.subr.mxu0 0.0
  %3937 = vmatpush1.msra.mxu0 %v933
  %3938 = vmatprep.subr.mxu0 0.0
  %3939 = vmatpush1.msra.mxu0 %v934
  %3940 = vmatprep.subr.mxu0 0.0
  %3941 = vmatpush1.msra.mxu0 0.0
  %3942 = vmatprep.subr.mxu0 0.0
  %3943 = vmatpush1.msra.mxu0 0.0
  %3944 = vmatprep.subr.mxu0 0.0
  %3945 = vmatpush1.msra.mxu0 0.0
  %3946 = vmatprep.subr.mxu0 0.0
  %3947 = vmatpush1.msra.mxu0 0.0
  %3948 = vmatprep.subr.mxu0 0.0
  %3949 = vmatpush1.msra.mxu0 0.0
  %3950 = vmatprep.subr.mxu0 0.0
  %3951 = vmatpush1.msra.mxu0 0.0
  %3952 = vmatprep.subr.mxu0 0.0
  %3953 = vmatpush1.msra.mxu0 0.0
  %3954 = vmatprep.subr.mxu0 0.0
  %3955 = vmatpush1.msra.mxu0 0.0
  %3956 = vmatprep.subr.mxu0 0.0
  %3957 = vmatpush1.msra.mxu0 0.0
  %3958 = vmatprep.subr.mxu0 0.0
  %3959 = vmatpush1.msra.mxu0 0.0
  %3960 = vmatprep.subr.mxu0 0.0
  %3961 = vmatpush1.msra.mxu0 0.0
  %3962 = vmatprep.subr.mxu0 0.0
  %3963 = vmatpush1.msra.mxu0 0.0
  %3964 = vmatprep.subr.mxu0 0.0
  %3965 = vmatpush1.msra.mxu0 0.0
  %3966 = vmatprep.subr.mxu0 0.0
  %3967 = vmatpush1.msra.mxu0 0.0
  %3968 = vmatprep.subr.mxu0 0.0
  %3969 = vmatpush1.msra.mxu0 0.0
  %3970 = vmatprep.subr.mxu0 0.0
  %3971 = vmatpush1.msra.mxu0 0.0
  %3972 = vmatprep.subr.mxu0 0.0
  %3973 = vmatpush1.msra.mxu0 0.0
  %3974 = vmatprep.subr.mxu0 0.0
  %3975 = vmatpush1.msra.mxu0 0.0
  %3976 = vmatprep.subr.mxu0 0.0
  %3977 = vmatpush1.msra.mxu0 0.0
  %3978 = vmatprep.subr.mxu0 0.0
  %3979 = vmatpush1.msra.mxu0 0.0
  %3980 = vmatprep.subr.mxu0 0.0
  %3981 = vmatpush1.msra.mxu0 0.0
  %3982 = vmatprep.subr.mxu0 0.0
  %3983 = vmatpush1.msra.mxu0 0.0
  %3984 = vmatprep.subr.mxu0 0.0
  %3985 = vmatpush1.msra.mxu0 0.0
  %3986 = vmatprep.subr.mxu0 0.0
  %3987 = vmatpush1.msra.mxu0 0.0
  %3988 = vmatprep.subr.mxu0 0.0
  %3989 = vmatpush1.msra.mxu0 0.0
  %3990 = vmatprep.subr.mxu0 0.0
  %3991 = vmatpush1.msra.mxu0 0.0
  %3992 = vmatprep.subr.mxu0 0.0
  %3993 = vmatpush1.msra.mxu0 0.0
  %3994 = vmatprep.subr.mxu0 0.0
  %3995 = vmatpush1.msra.mxu0 0.0
  %3996 = vmatprep.mubr.f32.mxu0 0.0
  %3997 = vmatmul.mubr.f32.gmra.mrb[0].mxu0 %v3930
  %v3998 = vpop.f32.mrb[0].mxu0
  %v3999 = vadd.f32 %v940, %v3998
  %v4000 = vpop.f32.mrb[0].mxu0
  %4001 = vdwg.mxu0
  %4002 = vmatprep.subr.mxu0 0.0
  %4003 = vmatpush1.msra.mxu0 %v1016
  %4004 = vmatprep.subr.mxu0 0.0
  %4005 = vmatpush1.msra.mxu0 %v1017
  %4006 = vmatprep.subr.mxu0 0.0
  %4007 = vmatpush1.msra.mxu0 %v1018
  %4008 = vmatprep.subr.mxu0 0.0
  %4009 = vmatpush1.msra.mxu0 %v1019
  %4010 = vmatprep.subr.mxu0 0.0
  %4011 = vmatpush1.msra.mxu0 0.0
  %4012 = vmatprep.subr.mxu0 0.0
  %4013 = vmatpush1.msra.mxu0 0.0
  %4014 = vmatprep.subr.mxu0 0.0
  %4015 = vmatpush1.msra.mxu0 0.0
  %4016 = vmatprep.subr.mxu0 0.0
  %4017 = vmatpush1.msra.mxu0 0.0
  %4018 = vmatprep.subr.mxu0 0.0
  %4019 = vmatpush1.msra.mxu0 0.0
  %4020 = vmatprep.subr.mxu0 0.0
  %4021 = vmatpush1.msra.mxu0 0.0
  %4022 = vmatprep.subr.mxu0 0.0
  %4023 = vmatpush1.msra.mxu0 0.0
  %4024 = vmatprep.subr.mxu0 0.0
  %4025 = vmatpush1.msra.mxu0 0.0
  %4026 = vmatprep.subr.mxu0 0.0
  %4027 = vmatpush1.msra.mxu0 0.0
  %4028 = vmatprep.subr.mxu0 0.0
  %4029 = vmatpush1.msra.mxu0 0.0
  %4030 = vmatprep.subr.mxu0 0.0
  %4031 = vmatpush1.msra.mxu0 0.0
  %4032 = vmatprep.subr.mxu0 0.0
  %4033 = vmatpush1.msra.mxu0 0.0
  %4034 = vmatprep.subr.mxu0 0.0
  %4035 = vmatpush1.msra.mxu0 0.0
  %4036 = vmatprep.subr.mxu0 0.0
  %4037 = vmatpush1.msra.mxu0 0.0
  %4038 = vmatprep.subr.mxu0 0.0
  %4039 = vmatpush1.msra.mxu0 0.0
  %4040 = vmatprep.subr.mxu0 0.0
  %4041 = vmatpush1.msra.mxu0 0.0
  %4042 = vmatprep.subr.mxu0 0.0
  %4043 = vmatpush1.msra.mxu0 0.0
  %4044 = vmatprep.subr.mxu0 0.0
  %4045 = vmatpush1.msra.mxu0 0.0
  %4046 = vmatprep.subr.mxu0 0.0
  %4047 = vmatpush1.msra.mxu0 0.0
  %4048 = vmatprep.subr.mxu0 0.0
  %4049 = vmatpush1.msra.mxu0 0.0
  %4050 = vmatprep.subr.mxu0 0.0
  %4051 = vmatpush1.msra.mxu0 0.0
  %4052 = vmatprep.subr.mxu0 0.0
  %4053 = vmatpush1.msra.mxu0 0.0
  %4054 = vmatprep.subr.mxu0 0.0
  %4055 = vmatpush1.msra.mxu0 0.0
  %4056 = vmatprep.subr.mxu0 0.0
  %4057 = vmatpush1.msra.mxu0 0.0
  %4058 = vmatprep.subr.mxu0 0.0
  %4059 = vmatpush1.msra.mxu0 0.0
  %4060 = vmatprep.subr.mxu0 0.0
  %4061 = vmatpush1.msra.mxu0 0.0
  %4062 = vmatprep.subr.mxu0 0.0
  %4063 = vmatpush1.msra.mxu0 0.0
  %4064 = vmatprep.subr.mxu0 0.0
  %4065 = vmatpush1.msra.mxu0 0.0
  %4066 = vmatprep.mubr.f32.mxu0 0.0
  %4067 = vmatmul.mubr.f32.gmra.mrb[0].mxu0 %v3930
  %v4068 = vpop.f32.mrb[0].mxu0
  %v4069 = vadd.f32 %v1026, %v4068
  %v4070 = vpop.f32.mrb[0].mxu0
  %4071 = vdwg.mxu0
  %4072 = vmatprep.subr.mxu0 0.0
  %4073 = vmatpush1.msra.mxu0 %v1099
  %4074 = vmatprep.subr.mxu0 0.0
  %4075 = vmatpush1.msra.mxu0 %v1100
  %4076 = vmatprep.subr.mxu0 0.0
  %4077 = vmatpush1.msra.mxu0 %v1101
  %4078 = vmatprep.subr.mxu0 0.0
  %4079 = vmatpush1.msra.mxu0 %v1102
  %4080 = vmatprep.subr.mxu0 0.0
  %4081 = vmatpush1.msra.mxu0 0.0
  %4082 = vmatprep.subr.mxu0 0.0
  %4083 = vmatpush1.msra.mxu0 0.0
  %4084 = vmatprep.subr.mxu0 0.0
  %4085 = vmatpush1.msra.mxu0 0.0
  %4086 = vmatprep.subr.mxu0 0.0
  %4087 = vmatpush1.msra.mxu0 0.0
  %4088 = vmatprep.subr.mxu0 0.0
  %4089 = vmatpush1.msra.mxu0 0.0
  %4090 = vmatprep.subr.mxu0 0.0
  %4091 = vmatpush1.msra.mxu0 0.0
  %4092 = vmatprep.subr.mxu0 0.0
  %4093 = vmatpush1.msra.mxu0 0.0
  %4094 = vmatprep.subr.mxu0 0.0
  %4095 = vmatpush1.msra.mxu0 0.0
  %4096 = vmatprep.subr.mxu0 0.0
  %4097 = vmatpush1.msra.mxu0 0.0
  %4098 = vmatprep.subr.mxu0 0.0
  %4099 = vmatpush1.msra.mxu0 0.0
  %4100 = vmatprep.subr.mxu0 0.0
  %4101 = vmatpush1.msra.mxu0 0.0
  %4102 = vmatprep.subr.mxu0 0.0
  %4103 = vmatpush1.msra.mxu0 0.0
  %4104 = vmatprep.subr.mxu0 0.0
  %4105 = vmatpush1.msra.mxu0 0.0
  %4106 = vmatprep.subr.mxu0 0.0
  %4107 = vmatpush1.msra.mxu0 0.0
  %4108 = vmatprep.subr.mxu0 0.0
  %4109 = vmatpush1.msra.mxu0 0.0
  %4110 = vmatprep.subr.mxu0 0.0
  %4111 = vmatpush1.msra.mxu0 0.0
  %4112 = vmatprep.subr.mxu0 0.0
  %4113 = vmatpush1.msra.mxu0 0.0
  %4114 = vmatprep.subr.mxu0 0.0
  %4115 = vmatpush1.msra.mxu0 0.0
  %4116 = vmatprep.subr.mxu0 0.0
  %4117 = vmatpush1.msra.mxu0 0.0
  %4118 = vmatprep.subr.mxu0 0.0
  %4119 = vmatpush1.msra.mxu0 0.0
  %4120 = vmatprep.subr.mxu0 0.0
  %4121 = vmatpush1.msra.mxu0 0.0
  %4122 = vmatprep.subr.mxu0 0.0
  %4123 = vmatpush1.msra.mxu0 0.0
  %4124 = vmatprep.subr.mxu0 0.0
  %4125 = vmatpush1.msra.mxu0 0.0
  %4126 = vmatprep.subr.mxu0 0.0
  %4127 = vmatpush1.msra.mxu0 0.0
  %4128 = vmatprep.subr.mxu0 0.0
  %4129 = vmatpush1.msra.mxu0 0.0
  %4130 = vmatprep.subr.mxu0 0.0
  %4131 = vmatpush1.msra.mxu0 0.0
  %4132 = vmatprep.subr.mxu0 0.0
  %4133 = vmatpush1.msra.mxu0 0.0
  %4134 = vmatprep.subr.mxu0 0.0
  %4135 = vmatpush1.msra.mxu0 0.0
  %4136 = vmatprep.mubr.f32.mxu0 0.0
  %4137 = vmatmul.mubr.f32.gmra.mrb[0].mxu0 %v3930
  %v4138 = vpop.f32.mrb[0].mxu0
  %v4139 = vadd.f32 %v1109, %v4138
  %v4140 = vpop.f32.mrb[0].mxu0
  %4141 = vdwg.mxu0
  %v4142 = vadd.f32 %v3786, %v3999
  %v4143 = vxor.u32 %v4142, 2147483648
  %v4144 = vmul.f32 %v4143, 1.442695
  %v4145 = vpow.pop %v4144
  %v4146 = vadd.f32 %v4145, 1.0
  %v4147 = vrcp.pop %v4146
  %v4148 = vmul.f32 1.0, %v4147
  %v4149 = vadd.f32 %v3856, %v4069
  %v4150 = vxor.u32 %v4149, 2147483648
  %v4151 = vmul.f32 %v4150, 1.442695
  %v4152 = vpow.pop %v4151
  %v4153 = vadd.f32 %v4152, 1.0
  %v4154 = vrcp.pop %v4153
  %v4155 = vmul.f32 1.0, %v4154
  %v4156 = vmul.f32 %v4148, %v4139
  %v4157 = vadd.f32 %v3926, %v4156
  %v4158 = vtanh.pop %v4157
  %v4159 = vsub.f32 1.0, %v4155
  %v4160 = vmul.f32 %v4159, %v4158
  %v4161 = vmul.f32 %v4155, %v3165
  %v4162 = vadd.f32 %v4160, %v4161
  %4163 = vmatprep.subr.mxu0 0.0
  %4164 = vmatpush1.msra.mxu0 %v1203
  %4165 = vmatprep.subr.mxu0 0.0
  %4166 = vmatpush1.msra.mxu0 %v1204
  %4167 = vmatprep.subr.mxu0 0.0
  %4168 = vmatpush1.msra.mxu0 %v1205
  %4169 = vmatprep.subr.mxu0 0.0
  %4170 = vmatpush1.msra.mxu0 %v1206
  %4171 = vmatprep.subr.mxu0 0.0
  %4172 = vmatpush1.msra.mxu0 0.0
  %4173 = vmatprep.subr.mxu0 0.0
  %4174 = vmatpush1.msra.mxu0 0.0
  %4175 = vmatprep.subr.mxu0 0.0
  %4176 = vmatpush1.msra.mxu0 0.0
  %4177 = vmatprep.subr.mxu0 0.0
  %4178 = vmatpush1.msra.mxu0 0.0
  %4179 = vmatprep.subr.mxu0 0.0
  %4180 = vmatpush1.msra.mxu0 0.0
  %4181 = vmatprep.subr.mxu0 0.0
  %4182 = vmatpush1.msra.mxu0 0.0
  %4183 = vmatprep.subr.mxu0 0.0
  %4184 = vmatpush1.msra.mxu0 0.0
  %4185 = vmatprep.subr.mxu0 0.0
  %4186 = vmatpush1.msra.mxu0 0.0
  %4187 = vmatprep.subr.mxu0 0.0
  %4188 = vmatpush1.msra.mxu0 0.0
  %4189 = vmatprep.subr.mxu0 0.0
  %4190 = vmatpush1.msra.mxu0 0.0
  %4191 = vmatprep.subr.mxu0 0.0
  %4192 = vmatpush1.msra.mxu0 0.0
  %4193 = vmatprep.subr.mxu0 0.0
  %4194 = vmatpush1.msra.mxu0 0.0
  %4195 = vmatprep.subr.mxu0 0.0
  %4196 = vmatpush1.msra.mxu0 0.0
  %4197 = vmatprep.subr.mxu0 0.0
  %4198 = vmatpush1.msra.mxu0 0.0
  %4199 = vmatprep.subr.mxu0 0.0
  %4200 = vmatpush1.msra.mxu0 0.0
  %4201 = vmatprep.subr.mxu0 0.0
  %4202 = vmatpush1.msra.mxu0 0.0
  %4203 = vmatprep.subr.mxu0 0.0
  %4204 = vmatpush1.msra.mxu0 0.0
  %4205 = vmatprep.subr.mxu0 0.0
  %4206 = vmatpush1.msra.mxu0 0.0
  %4207 = vmatprep.subr.mxu0 0.0
  %4208 = vmatpush1.msra.mxu0 0.0
  %4209 = vmatprep.subr.mxu0 0.0
  %4210 = vmatpush1.msra.mxu0 0.0
  %4211 = vmatprep.subr.mxu0 0.0
  %4212 = vmatpush1.msra.mxu0 0.0
  %4213 = vmatprep.subr.mxu0 0.0
  %4214 = vmatpush1.msra.mxu0 0.0
  %4215 = vmatprep.subr.mxu0 0.0
  %4216 = vmatpush1.msra.mxu0 0.0
  %4217 = vmatprep.subr.mxu0 0.0
  %4218 = vmatpush1.msra.mxu0 0.0
  %4219 = vmatprep.subr.mxu0 0.0
  %4220 = vmatpush1.msra.mxu0 0.0
  %4221 = vmatprep.subr.mxu0 0.0
  %4222 = vmatpush1.msra.mxu0 0.0
  %4223 = vmatprep.subr.mxu0 0.0
  %4224 = vmatpush1.msra.mxu0 0.0
  %4225 = vmatprep.subr.mxu0 0.0
  %4226 = vmatpush1.msra.mxu0 0.0
  %4227 = vmatprep.mubr.f32.mxu0 0.0
  %4228 = vmatmul.mubr.f32.gmra.mrb[0].mxu0 %v3717
  %v4229 = vpop.f32.mrb[0].mxu0
  %v4230 = vadd.f32 %v1213, %v4229
  %v4231 = vpop.f32.mrb[0].mxu0
  %4232 = vdwg.mxu0
  %4233 = vmatprep.subr.mxu0 0.0
  %4234 = vmatpush1.msra.mxu0 %v1286
  %4235 = vmatprep.subr.mxu0 0.0
  %4236 = vmatpush1.msra.mxu0 %v1287
  %4237 = vmatprep.subr.mxu0 0.0
  %4238 = vmatpush1.msra.mxu0 %v1288
  %4239 = vmatprep.subr.mxu0 0.0
  %4240 = vmatpush1.msra.mxu0 %v1289
  %4241 = vmatprep.subr.mxu0 0.0
  %4242 = vmatpush1.msra.mxu0 0.0
  %4243 = vmatprep.subr.mxu0 0.0
  %4244 = vmatpush1.msra.mxu0 0.0
  %4245 = vmatprep.subr.mxu0 0.0
  %4246 = vmatpush1.msra.mxu0 0.0
  %4247 = vmatprep.subr.mxu0 0.0
  %4248 = vmatpush1.msra.mxu0 0.0
  %4249 = vmatprep.subr.mxu0 0.0
  %4250 = vmatpush1.msra.mxu0 0.0
  %4251 = vmatprep.subr.mxu0 0.0
  %4252 = vmatpush1.msra.mxu0 0.0
  %4253 = vmatprep.subr.mxu0 0.0
  %4254 = vmatpush1.msra.mxu0 0.0
  %4255 = vmatprep.subr.mxu0 0.0
  %4256 = vmatpush1.msra.mxu0 0.0
  %4257 = vmatprep.subr.mxu0 0.0
  %4258 = vmatpush1.msra.mxu0 0.0
  %4259 = vmatprep.subr.mxu0 0.0
  %4260 = vmatpush1.msra.mxu0 0.0
  %4261 = vmatprep.subr.mxu0 0.0
  %4262 = vmatpush1.msra.mxu0 0.0
  %4263 = vmatprep.subr.mxu0 0.0
  %4264 = vmatpush1.msra.mxu0 0.0
  %4265 = vmatprep.subr.mxu0 0.0
  %4266 = vmatpush1.msra.mxu0 0.0
  %4267 = vmatprep.subr.mxu0 0.0
  %4268 = vmatpush1.msra.mxu0 0.0
  %4269 = vmatprep.subr.mxu0 0.0
  %4270 = vmatpush1.msra.mxu0 0.0
  %4271 = vmatprep.subr.mxu0 0.0
  %4272 = vmatpush1.msra.mxu0 0.0
  %4273 = vmatprep.subr.mxu0 0.0
  %4274 = vmatpush1.msra.mxu0 0.0
  %4275 = vmatprep.subr.mxu0 0.0
  %4276 = vmatpush1.msra.mxu0 0.0
  %4277 = vmatprep.subr.mxu0 0.0
  %4278 = vmatpush1.msra.mxu0 0.0
  %4279 = vmatprep.subr.mxu0 0.0
  %4280 = vmatpush1.msra.mxu0 0.0
  %4281 = vmatprep.subr.mxu0 0.0
  %4282 = vmatpush1.msra.mxu0 0.0
  %4283 = vmatprep.subr.mxu0 0.0
  %4284 = vmatpush1.msra.mxu0 0.0
  %4285 = vmatprep.subr.mxu0 0.0
  %4286 = vmatpush1.msra.mxu0 0.0
  %4287 = vmatprep.subr.mxu0 0.0
  %4288 = vmatpush1.msra.mxu0 0.0
  %4289 = vmatprep.subr.mxu0 0.0
  %4290 = vmatpush1.msra.mxu0 0.0
  %4291 = vmatprep.subr.mxu0 0.0
  %4292 = vmatpush1.msra.mxu0 0.0
  %4293 = vmatprep.subr.mxu0 0.0
  %4294 = vmatpush1.msra.mxu0 0.0
  %4295 = vmatprep.subr.mxu0 0.0
  %4296 = vmatpush1.msra.mxu0 0.0
  %4297 = vmatprep.mubr.f32.mxu0 0.0
  %4298 = vmatmul.mubr.f32.gmra.mrb[0].mxu0 %v3717
  %v4299 = vpop.f32.mrb[0].mxu0
  %v4300 = vadd.f32 %v1296, %v4299
  %v4301 = vpop.f32.mrb[0].mxu0
  %4302 = vdwg.mxu0
  %4303 = vmatprep.subr.mxu0 0.0
  %4304 = vmatpush1.msra.mxu0 %v1369
  %4305 = vmatprep.subr.mxu0 0.0
  %4306 = vmatpush1.msra.mxu0 %v1370
  %4307 = vmatprep.subr.mxu0 0.0
  %4308 = vmatpush1.msra.mxu0 %v1371
  %4309 = vmatprep.subr.mxu0 0.0
  %4310 = vmatpush1.msra.mxu0 %v1372
  %4311 = vmatprep.subr.mxu0 0.0
  %4312 = vmatpush1.msra.mxu0 0.0
  %4313 = vmatprep.subr.mxu0 0.0
  %4314 = vmatpush1.msra.mxu0 0.0
  %4315 = vmatprep.subr.mxu0 0.0
  %4316 = vmatpush1.msra.mxu0 0.0
  %4317 = vmatprep.subr.mxu0 0.0
  %4318 = vmatpush1.msra.mxu0 0.0
  %4319 = vmatprep.subr.mxu0 0.0
  %4320 = vmatpush1.msra.mxu0 0.0
  %4321 = vmatprep.subr.mxu0 0.0
  %4322 = vmatpush1.msra.mxu0 0.0
  %4323 = vmatprep.subr.mxu0 0.0
  %4324 = vmatpush1.msra.mxu0 0.0
  %4325 = vmatprep.subr.mxu0 0.0
  %4326 = vmatpush1.msra.mxu0 0.0
  %4327 = vmatprep.subr.mxu0 0.0
  %4328 = vmatpush1.msra.mxu0 0.0
  %4329 = vmatprep.subr.mxu0 0.0
  %4330 = vmatpush1.msra.mxu0 0.0
  %4331 = vmatprep.subr.mxu0 0.0
  %4332 = vmatpush1.msra.mxu0 0.0
  %4333 = vmatprep.subr.mxu0 0.0
  %4334 = vmatpush1.msra.mxu0 0.0
  %4335 = vmatprep.subr.mxu0 0.0
  %4336 = vmatpush1.msra.mxu0 0.0
  %4337 = vmatprep.subr.mxu0 0.0
  %4338 = vmatpush1.msra.mxu0 0.0
  %4339 = vmatprep.subr.mxu0 0.0
  %4340 = vmatpush1.msra.mxu0 0.0
  %4341 = vmatprep.subr.mxu0 0.0
  %4342 = vmatpush1.msra.mxu0 0.0
  %4343 = vmatprep.subr.mxu0 0.0
  %4344 = vmatpush1.msra.mxu0 0.0
  %4345 = vmatprep.subr.mxu0 0.0
  %4346 = vmatpush1.msra.mxu0 0.0
  %4347 = vmatprep.subr.mxu0 0.0
  %4348 = vmatpush1.msra.mxu0 0.0
  %4349 = vmatprep.subr.mxu0 0.0
  %4350 = vmatpush1.msra.mxu0 0.0
  %4351 = vmatprep.subr.mxu0 0.0
  %4352 = vmatpush1.msra.mxu0 0.0
  %4353 = vmatprep.subr.mxu0 0.0
  %4354 = vmatpush1.msra.mxu0 0.0
  %4355 = vmatprep.subr.mxu0 0.0
  %4356 = vmatpush1.msra.mxu0 0.0
  %4357 = vmatprep.subr.mxu0 0.0
  %4358 = vmatpush1.msra.mxu0 0.0
  %4359 = vmatprep.subr.mxu0 0.0
  %4360 = vmatpush1.msra.mxu0 0.0
  %4361 = vmatprep.subr.mxu0 0.0
  %4362 = vmatpush1.msra.mxu0 0.0
  %4363 = vmatprep.subr.mxu0 0.0
  %4364 = vmatpush1.msra.mxu0 0.0
  %4365 = vmatprep.subr.mxu0 0.0
  %4366 = vmatpush1.msra.mxu0 0.0
  %4367 = vmatprep.mubr.f32.mxu0 0.0
  %4368 = vmatmul.mubr.f32.gmra.mrb[0].mxu0 %v3717
  %v4369 = vpop.f32.mrb[0].mxu0
  %v4370 = vadd.f32 %v1379, %v4369
  %v4371 = vpop.f32.mrb[0].mxu0
  %4372 = vdwg.mxu0
  %4373 = vmatprep.subr.mxu0 0.0
  %4374 = vmatpush1.msra.mxu0 %v1452
  %4375 = vmatprep.subr.mxu0 0.0
  %4376 = vmatpush1.msra.mxu0 %v1453
  %4377 = vmatprep.subr.mxu0 0.0
  %4378 = vmatpush1.msra.mxu0 %v1454
  %4379 = vmatprep.subr.mxu0 0.0
  %4380 = vmatpush1.msra.mxu0 %v1455
  %4381 = vmatprep.subr.mxu0 0.0
  %4382 = vmatpush1.msra.mxu0 0.0
  %4383 = vmatprep.subr.mxu0 0.0
  %4384 = vmatpush1.msra.mxu0 0.0
  %4385 = vmatprep.subr.mxu0 0.0
  %4386 = vmatpush1.msra.mxu0 0.0
  %4387 = vmatprep.subr.mxu0 0.0
  %4388 = vmatpush1.msra.mxu0 0.0
  %4389 = vmatprep.subr.mxu0 0.0
  %4390 = vmatpush1.msra.mxu0 0.0
  %4391 = vmatprep.subr.mxu0 0.0
  %4392 = vmatpush1.msra.mxu0 0.0
  %4393 = vmatprep.subr.mxu0 0.0
  %4394 = vmatpush1.msra.mxu0 0.0
  %4395 = vmatprep.subr.mxu0 0.0
  %4396 = vmatpush1.msra.mxu0 0.0
  %4397 = vmatprep.subr.mxu0 0.0
  %4398 = vmatpush1.msra.mxu0 0.0
  %4399 = vmatprep.subr.mxu0 0.0
  %4400 = vmatpush1.msra.mxu0 0.0
  %4401 = vmatprep.subr.mxu0 0.0
  %4402 = vmatpush1.msra.mxu0 0.0
  %4403 = vmatprep.subr.mxu0 0.0
  %4404 = vmatpush1.msra.mxu0 0.0
  %4405 = vmatprep.subr.mxu0 0.0
  %4406 = vmatpush1.msra.mxu0 0.0
  %4407 = vmatprep.subr.mxu0 0.0
  %4408 = vmatpush1.msra.mxu0 0.0
  %4409 = vmatprep.subr.mxu0 0.0
  %4410 = vmatpush1.msra.mxu0 0.0
  %4411 = vmatprep.subr.mxu0 0.0
  %4412 = vmatpush1.msra.mxu0 0.0
  %4413 = vmatprep.subr.mxu0 0.0
  %4414 = vmatpush1.msra.mxu0 0.0
  %4415 = vmatprep.subr.mxu0 0.0
  %4416 = vmatpush1.msra.mxu0 0.0
  %4417 = vmatprep.subr.mxu0 0.0
  %4418 = vmatpush1.msra.mxu0 0.0
  %4419 = vmatprep.subr.mxu0 0.0
  %4420 = vmatpush1.msra.mxu0 0.0
  %4421 = vmatprep.subr.mxu0 0.0
  %4422 = vmatpush1.msra.mxu0 0.0
  %4423 = vmatprep.subr.mxu0 0.0
  %4424 = vmatpush1.msra.mxu0 0.0
  %4425 = vmatprep.subr.mxu0 0.0
  %4426 = vmatpush1.msra.mxu0 0.0
  %4427 = vmatprep.subr.mxu0 0.0
  %4428 = vmatpush1.msra.mxu0 0.0
  %4429 = vmatprep.subr.mxu0 0.0
  %4430 = vmatpush1.msra.mxu0 0.0
  %4431 = vmatprep.subr.mxu0 0.0
  %4432 = vmatpush1.msra.mxu0 0.0
  %4433 = vmatprep.subr.mxu0 0.0
  %4434 = vmatpush1.msra.mxu0 0.0
  %4435 = vmatprep.subr.mxu0 0.0
  %4436 = vmatpush1.msra.mxu0 0.0
  %4437 = vmatprep.mubr.f32.mxu0 0.0
  %4438 = vmatmul.mubr.f32.gmra.mrb[0].mxu0 %v3930
  %v4439 = vpop.f32.mrb[0].mxu0
  %v4440 = vadd.f32 %v1462, %v4439
  %v4441 = vpop.f32.mrb[0].mxu0
  %4442 = vdwg.mxu0
  %4443 = vmatprep.subr.mxu0 0.0
  %4444 = vmatpush1.msra.mxu0 %v1535
  %4445 = vmatprep.subr.mxu0 0.0
  %4446 = vmatpush1.msra.mxu0 %v1536
  %4447 = vmatprep.subr.mxu0 0.0
  %4448 = vmatpush1.msra.mxu0 %v1537
  %4449 = vmatprep.subr.mxu0 0.0
  %4450 = vmatpush1.msra.mxu0 %v1538
  %4451 = vmatprep.subr.mxu0 0.0
  %4452 = vmatpush1.msra.mxu0 0.0
  %4453 = vmatprep.subr.mxu0 0.0
  %4454 = vmatpush1.msra.mxu0 0.0
  %4455 = vmatprep.subr.mxu0 0.0
  %4456 = vmatpush1.msra.mxu0 0.0
  %4457 = vmatprep.subr.mxu0 0.0
  %4458 = vmatpush1.msra.mxu0 0.0
  %4459 = vmatprep.subr.mxu0 0.0
  %4460 = vmatpush1.msra.mxu0 0.0
  %4461 = vmatprep.subr.mxu0 0.0
  %4462 = vmatpush1.msra.mxu0 0.0
  %4463 = vmatprep.subr.mxu0 0.0
  %4464 = vmatpush1.msra.mxu0 0.0
  %4465 = vmatprep.subr.mxu0 0.0
  %4466 = vmatpush1.msra.mxu0 0.0
  %4467 = vmatprep.subr.mxu0 0.0
  %4468 = vmatpush1.msra.mxu0 0.0
  %4469 = vmatprep.subr.mxu0 0.0
  %4470 = vmatpush1.msra.mxu0 0.0
  %4471 = vmatprep.subr.mxu0 0.0
  %4472 = vmatpush1.msra.mxu0 0.0
  %4473 = vmatprep.subr.mxu0 0.0
  %4474 = vmatpush1.msra.mxu0 0.0
  %4475 = vmatprep.subr.mxu0 0.0
  %4476 = vmatpush1.msra.mxu0 0.0
  %4477 = vmatprep.subr.mxu0 0.0
  %4478 = vmatpush1.msra.mxu0 0.0
  %4479 = vmatprep.subr.mxu0 0.0
  %4480 = vmatpush1.msra.mxu0 0.0
  %4481 = vmatprep.subr.mxu0 0.0
  %4482 = vmatpush1.msra.mxu0 0.0
  %4483 = vmatprep.subr.mxu0 0.0
  %4484 = vmatpush1.msra.mxu0 0.0
  %4485 = vmatprep.subr.mxu0 0.0
  %4486 = vmatpush1.msra.mxu0 0.0
  %4487 = vmatprep.subr.mxu0 0.0
  %4488 = vmatpush1.msra.mxu0 0.0
  %4489 = vmatprep.subr.mxu0 0.0
  %4490 = vmatpush1.msra.mxu0 0.0
  %4491 = vmatprep.subr.mxu0 0.0
  %4492 = vmatpush1.msra.mxu0 0.0
  %4493 = vmatprep.subr.mxu0 0.0
  %4494 = vmatpush1.msra.mxu0 0.0
  %4495 = vmatprep.subr.mxu0 0.0
  %4496 = vmatpush1.msra.mxu0 0.0
  %4497 = vmatprep.subr.mxu0 0.0
  %4498 = vmatpush1.msra.mxu0 0.0
  %4499 = vmatprep.subr.mxu0 0.0
  %4500 = vmatpush1.msra.mxu0 0.0
  %4501 = vmatprep.subr.mxu0 0.0
  %4502 = vmatpush1.msra.mxu0 0.0
  %4503 = vmatprep.subr.mxu0 0.0
  %4504 = vmatpush1.msra.mxu0 0.0
  %4505 = vmatprep.subr.mxu0 0.0
  %4506 = vmatpush1.msra.mxu0 0.0
  %4507 = vmatprep.mubr.f32.mxu0 0.0
  %4508 = vmatmul.mubr.f32.gmra.mrb[0].mxu0 %v3930
  %v4509 = vpop.f32.mrb[0].mxu0
  %v4510 = vadd.f32 %v1545, %v4509
  %v4511 = vpop.f32.mrb[0].mxu0
  %4512 = vdwg.mxu0
  %4513 = vmatprep.subr.mxu0 0.0
  %4514 = vmatpush1.msra.mxu0 %v1618
  %4515 = vmatprep.subr.mxu0 0.0
  %4516 = vmatpush1.msra.mxu0 %v1619
  %4517 = vmatprep.subr.mxu0 0.0
  %4518 = vmatpush1.msra.mxu0 %v1620
  %4519 = vmatprep.subr.mxu0 0.0
  %4520 = vmatpush1.msra.mxu0 %v1621
  %4521 = vmatprep.subr.mxu0 0.0
  %4522 = vmatpush1.msra.mxu0 0.0
  %4523 = vmatprep.subr.mxu0 0.0
  %4524 = vmatpush1.msra.mxu0 0.0
  %4525 = vmatprep.subr.mxu0 0.0
  %4526 = vmatpush1.msra.mxu0 0.0
  %4527 = vmatprep.subr.mxu0 0.0
  %4528 = vmatpush1.msra.mxu0 0.0
  %4529 = vmatprep.subr.mxu0 0.0
  %4530 = vmatpush1.msra.mxu0 0.0
  %4531 = vmatprep.subr.mxu0 0.0
  %4532 = vmatpush1.msra.mxu0 0.0
  %4533 = vmatprep.subr.mxu0 0.0
  %4534 = vmatpush1.msra.mxu0 0.0
  %4535 = vmatprep.subr.mxu0 0.0
  %4536 = vmatpush1.msra.mxu0 0.0
  %4537 = vmatprep.subr.mxu0 0.0
  %4538 = vmatpush1.msra.mxu0 0.0
  %4539 = vmatprep.subr.mxu0 0.0
  %4540 = vmatpush1.msra.mxu0 0.0
  %4541 = vmatprep.subr.mxu0 0.0
  %4542 = vmatpush1.msra.mxu0 0.0
  %4543 = vmatprep.subr.mxu0 0.0
  %4544 = vmatpush1.msra.mxu0 0.0
  %4545 = vmatprep.subr.mxu0 0.0
  %4546 = vmatpush1.msra.mxu0 0.0
  %4547 = vmatprep.subr.mxu0 0.0
  %4548 = vmatpush1.msra.mxu0 0.0
  %4549 = vmatprep.subr.mxu0 0.0
  %4550 = vmatpush1.msra.mxu0 0.0
  %4551 = vmatprep.subr.mxu0 0.0
  %4552 = vmatpush1.msra.mxu0 0.0
  %4553 = vmatprep.subr.mxu0 0.0
  %4554 = vmatpush1.msra.mxu0 0.0
  %4555 = vmatprep.subr.mxu0 0.0
  %4556 = vmatpush1.msra.mxu0 0.0
  %4557 = vmatprep.subr.mxu0 0.0
  %4558 = vmatpush1.msra.mxu0 0.0
  %4559 = vmatprep.subr.mxu0 0.0
  %4560 = vmatpush1.msra.mxu0 0.0
  %4561 = vmatprep.subr.mxu0 0.0
  %4562 = vmatpush1.msra.mxu0 0.0
  %4563 = vmatprep.subr.mxu0 0.0
  %4564 = vmatpush1.msra.mxu0 0.0
  %4565 = vmatprep.subr.mxu0 0.0
  %4566 = vmatpush1.msra.mxu0 0.0
  %4567 = vmatprep.subr.mxu0 0.0
  %4568 = vmatpush1.msra.mxu0 0.0
  %4569 = vmatprep.subr.mxu0 0.0
  %4570 = vmatpush1.msra.mxu0 0.0
  %4571 = vmatprep.subr.mxu0 0.0
  %4572 = vmatpush1.msra.mxu0 0.0
  %4573 = vmatprep.subr.mxu0 0.0
  %4574 = vmatpush1.msra.mxu0 0.0
  %4575 = vmatprep.subr.mxu0 0.0
  %4576 = vmatpush1.msra.mxu0 0.0
  %4577 = vmatprep.mubr.f32.mxu0 0.0
  %4578 = vmatmul.mubr.f32.gmra.mrb[0].mxu0 %v3930
  %v4579 = vpop.f32.mrb[0].mxu0
  %v4580 = vadd.f32 %v1628, %v4579
  %v4581 = vpop.f32.mrb[0].mxu0
  %4582 = vdwg.mxu0
  %v4583 = vadd.f32 %v4230, %v4440
  %v4584 = vxor.u32 %v4583, 2147483648
  %v4585 = vmul.f32 %v4584, 1.442695
  %v4586 = vpow.pop %v4585
  %v4587 = vadd.f32 %v4586, 1.0
  %v4588 = vrcp.pop %v4587
  %v4589 = vmul.f32 1.0, %v4588
  %v4590 = vadd.f32 %v4300, %v4510
  %v4591 = vxor.u32 %v4590, 2147483648
  %v4592 = vmul.f32 %v4591, 1.442695
  %v4593 = vpow.pop %v4592
  %v4594 = vadd.f32 %v4593, 1.0
  %v4595 = vrcp.pop %v4594
  %v4596 = vmul.f32 1.0, %v4595
  %v4597 = vmul.f32 %v4589, %v4580
  %v4598 = vadd.f32 %v4370, %v4597
  %v4599 = vtanh.pop %v4598
  %v4600 = vsub.f32 1.0, %v4596
  %v4601 = vmul.f32 %v4600, %v4599
  %v4602 = vmul.f32 %v4596, %v3165
  %v4603 = vadd.f32 %v4601, %v4602
  %v4604 = vmul.f32 %v70, %v4162
  %v4605 = vmul.f32 %v1722, %v4603
  %v4606 = vadd.f32 %v4604, %v4605
  %v4607 = vld [vmem:[%s14] sm:$0xff]
  %v4608 = vld [vmem:[%s14 + $0x8] sm:$0xff]
  %v4609 = vld [vmem:[%s14 + $0x10] sm:$0xff]
  %v4610 = vld [vmem:[%s14 + $0x18] sm:$0xff]
  %v4611 = vld [vmem:[%s15] sm:$0xff]
  %v4613 = vsel %vm263, %v4606, 0
  %4615 = vmatprep.subr.mxu0 0.0
  %4616 = vmatpush1.msra.mxu0 %v4607
  %4617 = vmatprep.subr.mxu0 0.0
  %4618 = vmatpush1.msra.mxu0 %v4608
  %4619 = vmatprep.subr.mxu0 0.0
  %4620 = vmatpush1.msra.mxu0 %v4609
  %4621 = vmatprep.subr.mxu0 0.0
  %4622 = vmatpush1.msra.mxu0 %v4610
  %4623 = vmatprep.subr.mxu0 0.0
  %4624 = vmatpush1.msra.mxu0 0.0
  %4625 = vmatprep.subr.mxu0 0.0
  %4626 = vmatpush1.msra.mxu0 0.0
  %4627 = vmatprep.subr.mxu0 0.0
  %4628 = vmatpush1.msra.mxu0 0.0
  %4629 = vmatprep.subr.mxu0 0.0
  %4630 = vmatpush1.msra.mxu0 0.0
  %4631 = vmatprep.subr.mxu0 0.0
  %4632 = vmatpush1.msra.mxu0 0.0
  %4633 = vmatprep.subr.mxu0 0.0
  %4634 = vmatpush1.msra.mxu0 0.0
  %4635 = vmatprep.subr.mxu0 0.0
  %4636 = vmatpush1.msra.mxu0 0.0
  %4637 = vmatprep.subr.mxu0 0.0
  %4638 = vmatpush1.msra.mxu0 0.0
  %4639 = vmatprep.subr.mxu0 0.0
  %4640 = vmatpush1.msra.mxu0 0.0
  %4641 = vmatprep.subr.mxu0 0.0
  %4642 = vmatpush1.msra.mxu0 0.0
  %4643 = vmatprep.subr.mxu0 0.0
  %4644 = vmatpush1.msra.mxu0 0.0
  %4645 = vmatprep.subr.mxu0 0.0
  %4646 = vmatpush1.msra.mxu0 0.0
  %4647 = vmatprep.subr.mxu0 0.0
  %4648 = vmatpush1.msra.mxu0 0.0
  %4649 = vmatprep.subr.mxu0 0.0
  %4650 = vmatpush1.msra.mxu0 0.0
  %4651 = vmatprep.subr.mxu0 0.0
  %4652 = vmatpush1.msra.mxu0 0.0
  %4653 = vmatprep.subr.mxu0 0.0
  %4654 = vmatpush1.msra.mxu0 0.0
  %4655 = vmatprep.subr.mxu0 0.0
  %4656 = vmatpush1.msra.mxu0 0.0
  %4657 = vmatprep.subr.mxu0 0.0
  %4658 = vmatpush1.msra.mxu0 0.0
  %4659 = vmatprep.subr.mxu0 0.0
  %4660 = vmatpush1.msra.mxu0 0.0
  %4661 = vmatprep.subr.mxu0 0.0
  %4662 = vmatpush1.msra.mxu0 0.0
  %4663 = vmatprep.subr.mxu0 0.0
  %4664 = vmatpush1.msra.mxu0 0.0
  %4665 = vmatprep.subr.mxu0 0.0
  %4666 = vmatpush1.msra.mxu0 0.0
  %4667 = vmatprep.subr.mxu0 0.0
  %4668 = vmatpush1.msra.mxu0 0.0
  %4669 = vmatprep.subr.mxu0 0.0
  %4670 = vmatpush1.msra.mxu0 0.0
  %4671 = vmatprep.subr.mxu0 0.0
  %4672 = vmatpush1.msra.mxu0 0.0
  %4673 = vmatprep.subr.mxu0 0.0
  %4674 = vmatpush1.msra.mxu0 0.0
  %4675 = vmatprep.subr.mxu0 0.0
  %4676 = vmatpush1.msra.mxu0 0.0
  %4677 = vmatprep.subr.mxu0 0.0
  %4678 = vmatpush1.msra.mxu0 0.0
  %4679 = vmatprep.mubr.f32.mxu0 0.0
  %4680 = vmatmul.mubr.f32.gmra.mrb[0].mxu0 %v4613
  %v4681 = vpop.f32.mrb[0].mxu0
  %v4682 = vadd.f32 %v4611, %v4681
  %v4683 = vpop.f32.mrb[0].mxu0
  %4684 = vdwg.mxu0
  %v4685 = vmax.f32 %v4682, 0.0
  %v4686 = vld [vmem:[%s16] sm:$0xff]
  %v4687 = vld [vmem:[%s16 + $0x8] sm:$0xff]
  %v4688 = vld [vmem:[%s16 + $0x10] sm:$0xff]
  %v4689 = vld [vmem:[%s16 + $0x18] sm:$0xff]
  %v4690 = vld [vmem:[%s16 + $0x20] sm:$0xff]
  %v4691 = vld [vmem:[%s16 + $0x28] sm:$0xff]
  %v4692 = vld [vmem:[%s16 + $0x30] sm:$0xff]
  %v4693 = vld [vmem:[%s16 + $0x38] sm:$0xff]
  %v4694 = vld [vmem:[%s17] sm:$0x1]
  %v4696 = vlaneseq
  %v4697 = vshrl.u32 %v4696, 7
  %v4698 = vsub.s32 0, %v4697
  %v4699 = vrot.slane %v4694, %v4698
  %v4702 = vsel %vm436, %v4685, 0
  %4704 = vmatprep.subr.mxu0 0.0
  %4705 = vmatpush1.msra.mxu0 %v4686
  %4706 = vmatprep.subr.mxu0 0.0
  %4707 = vmatpush1.msra.mxu0 %v4687
  %4708 = vmatprep.subr.mxu0 0.0
  %4709 = vmatpush1.msra.mxu0 %v4688
  %4710 = vmatprep.subr.mxu0 0.0
  %4711 = vmatpush1.msra.mxu0 %v4689
  %4712 = vmatprep.subr.mxu0 0.0
  %4713 = vmatpush1.msra.mxu0 %v4690
  %4714 = vmatprep.subr.mxu0 0.0
  %4715 = vmatpush1.msra.mxu0 %v4691
  %4716 = vmatprep.subr.mxu0 0.0
  %4717 = vmatpush1.msra.mxu0 %v4692
  %4718 = vmatprep.subr.mxu0 0.0
  %4719 = vmatpush1.msra.mxu0 %v4693
  %4720 = vmatprep.subr.mxu0 0.0
  %4721 = vmatpush1.msra.mxu0 0.0
  %4722 = vmatprep.subr.mxu0 0.0
  %4723 = vmatpush1.msra.mxu0 0.0
  %4724 = vmatprep.subr.mxu0 0.0
  %4725 = vmatpush1.msra.mxu0 0.0
  %4726 = vmatprep.subr.mxu0 0.0
  %4727 = vmatpush1.msra.mxu0 0.0
  %4728 = vmatprep.subr.mxu0 0.0
  %4729 = vmatpush1.msra.mxu0 0.0
  %4730 = vmatprep.subr.mxu0 0.0
  %4731 = vmatpush1.msra.mxu0 0.0
  %4732 = vmatprep.subr.mxu0 0.0
  %4733 = vmatpush1.msra.mxu0 0.0
  %4734 = vmatprep.subr.mxu0 0.0
  %4735 = vmatpush1.msra.mxu0 0.0
  %4736 = vmatprep.subr.mxu0 0.0
  %4737 = vmatpush1.msra.mxu0 0.0
  %4738 = vmatprep.subr.mxu0 0.0
  %4739 = vmatpush1.msra.mxu0 0.0
  %4740 = vmatprep.subr.mxu0 0.0
  %4741 = vmatpush1.msra.mxu0 0.0
  %4742 = vmatprep.subr.mxu0 0.0
  %4743 = vmatpush1.msra.mxu0 0.0
  %4744 = vmatprep.subr.mxu0 0.0
  %4745 = vmatpush1.msra.mxu0 0.0
  %4746 = vmatprep.subr.mxu0 0.0
  %4747 = vmatpush1.msra.mxu0 0.0
  %4748 = vmatprep.subr.mxu0 0.0
  %4749 = vmatpush1.msra.mxu0 0.0
  %4750 = vmatprep.subr.mxu0 0.0
  %4751 = vmatpush1.msra.mxu0 0.0
  %4752 = vmatprep.subr.mxu0 0.0
  %4753 = vmatpush1.msra.mxu0 0.0
  %4754 = vmatprep.subr.mxu0 0.0
  %4755 = vmatpush1.msra.mxu0 0.0
  %4756 = vmatprep.subr.mxu0 0.0
  %4757 = vmatpush1.msra.mxu0 0.0
  %4758 = vmatprep.subr.mxu0 0.0
  %4759 = vmatpush1.msra.mxu0 0.0
  %4760 = vmatprep.subr.mxu0 0.0
  %4761 = vmatpush1.msra.mxu0 0.0
  %4762 = vmatprep.subr.mxu0 0.0
  %4763 = vmatpush1.msra.mxu0 0.0
  %4764 = vmatprep.subr.mxu0 0.0
  %4765 = vmatpush1.msra.mxu0 0.0
  %4766 = vmatprep.subr.mxu0 0.0
  %4767 = vmatpush1.msra.mxu0 0.0
  %4768 = vmatprep.mubr.f32.mxu0 0.0
  %4769 = vmatmul.mubr.f32.gmra.mrb[0].mxu0 %v4702
  %v4770 = vpop.f32.mrb[0].mxu0
  %v4771 = vadd.f32 %v4699, %v4770
  %v4772 = vpop.f32.mrb[0].mxu0
  %4773 = vdwg.mxu0
  %v4774 = vmax.f32 %v4771, 0.0
  %v4775 = vld [vmem:[%s18] sm:$0xff]
  %v4776 = vld [vmem:[%s18 + $0x8] sm:$0xff]
  %v4777 = vld [vmem:[%s18 + $0x10] sm:$0xff]
  %v4778 = vld [vmem:[%s18 + $0x18] sm:$0xff]
  %v4779 = vld [vmem:[%s18 + $0x20] sm:$0xff]
  %v4780 = vld [vmem:[%s18 + $0x28] sm:$0xff]
  %v4781 = vld [vmem:[%s18 + $0x30] sm:$0xff]
  %v4782 = vld [vmem:[%s18 + $0x38] sm:$0xff]
  %v4783 = vld [vmem:[%s19] sm:$0x1]
  %v4785 = vlaneseq
  %v4786 = vshrl.u32 %v4785, 7
  %v4787 = vsub.s32 0, %v4786
  %v4788 = vrot.slane %v4783, %v4787
  %v4791 = vsel %vm436, %v4774, 0
  %4793 = vmatprep.subr.mxu0 0.0
  %4794 = vmatpush1.msra.mxu0 %v4775
  %4795 = vmatprep.subr.mxu0 0.0
  %4796 = vmatpush1.msra.mxu0 %v4776
  %4797 = vmatprep.subr.mxu0 0.0
  %4798 = vmatpush1.msra.mxu0 %v4777
  %4799 = vmatprep.subr.mxu0 0.0
  %4800 = vmatpush1.msra.mxu0 %v4778
  %4801 = vmatprep.subr.mxu0 0.0
  %4802 = vmatpush1.msra.mxu0 %v4779
  %4803 = vmatprep.subr.mxu0 0.0
  %4804 = vmatpush1.msra.mxu0 %v4780
  %4805 = vmatprep.subr.mxu0 0.0
  %4806 = vmatpush1.msra.mxu0 %v4781
  %4807 = vmatprep.subr.mxu0 0.0
  %4808 = vmatpush1.msra.mxu0 %v4782
  %4809 = vmatprep.subr.mxu0 0.0
  %4810 = vmatpush1.msra.mxu0 0.0
  %4811 = vmatprep.subr.mxu0 0.0
  %4812 = vmatpush1.msra.mxu0 0.0
  %4813 = vmatprep.subr.mxu0 0.0
  %4814 = vmatpush1.msra.mxu0 0.0
  %4815 = vmatprep.subr.mxu0 0.0
  %4816 = vmatpush1.msra.mxu0 0.0
  %4817 = vmatprep.subr.mxu0 0.0
  %4818 = vmatpush1.msra.mxu0 0.0
  %4819 = vmatprep.subr.mxu0 0.0
  %4820 = vmatpush1.msra.mxu0 0.0
  %4821 = vmatprep.subr.mxu0 0.0
  %4822 = vmatpush1.msra.mxu0 0.0
  %4823 = vmatprep.subr.mxu0 0.0
  %4824 = vmatpush1.msra.mxu0 0.0
  %4825 = vmatprep.subr.mxu0 0.0
  %4826 = vmatpush1.msra.mxu0 0.0
  %4827 = vmatprep.subr.mxu0 0.0
  %4828 = vmatpush1.msra.mxu0 0.0
  %4829 = vmatprep.subr.mxu0 0.0
  %4830 = vmatpush1.msra.mxu0 0.0
  %4831 = vmatprep.subr.mxu0 0.0
  %4832 = vmatpush1.msra.mxu0 0.0
  %4833 = vmatprep.subr.mxu0 0.0
  %4834 = vmatpush1.msra.mxu0 0.0
  %4835 = vmatprep.subr.mxu0 0.0
  %4836 = vmatpush1.msra.mxu0 0.0
  %4837 = vmatprep.subr.mxu0 0.0
  %4838 = vmatpush1.msra.mxu0 0.0
  %4839 = vmatprep.subr.mxu0 0.0
  %4840 = vmatpush1.msra.mxu0 0.0
  %4841 = vmatprep.subr.mxu0 0.0
  %4842 = vmatpush1.msra.mxu0 0.0
  %4843 = vmatprep.subr.mxu0 0.0
  %4844 = vmatpush1.msra.mxu0 0.0
  %4845 = vmatprep.subr.mxu0 0.0
  %4846 = vmatpush1.msra.mxu0 0.0
  %4847 = vmatprep.subr.mxu0 0.0
  %4848 = vmatpush1.msra.mxu0 0.0
  %4849 = vmatprep.subr.mxu0 0.0
  %4850 = vmatpush1.msra.mxu0 0.0
  %4851 = vmatprep.subr.mxu0 0.0
  %4852 = vmatpush1.msra.mxu0 0.0
  %4853 = vmatprep.subr.mxu0 0.0
  %4854 = vmatpush1.msra.mxu0 0.0
  %4855 = vmatprep.subr.mxu0 0.0
  %4856 = vmatpush1.msra.mxu0 0.0
  %4857 = vmatprep.mubr.f32.mxu0 0.0
  %4858 = vmatmul.mubr.f32.gmra.mrb[0].mxu0 %v4791
  %v4859 = vpop.f32.mrb[0].mxu0
  %v4860 = vadd.f32 %v4788, %v4859
  %v4861 = vpop.f32.mrb[0].mxu0
  %4862 = vdwg.mxu0
  %4864 = vrot.lane.b32.xlu0 %v4860, 127
  %v4865 = vpop.permute.xlu0 %4864
  %v4867 = vmax.f32 %v4860, %v4865
  %v4868 = vsub.f32 %v4860, %v4867
  %v4869 = vmul.f32 %v4868, 1.442695
  %v4870 = vpow.pop %v4869
  %4872 = vrot.lane.b32.xlu0 %v4867, 1
  %v4873 = vpop.permute.xlu0 %4872
  %v4875 = vsub.f32 %v4860, %v4873
  %v4876 = vmul.f32 %v4875, 1.442695
  %v4877 = vpow.pop %v4876
  %4879 = vrot.lane.b32.xlu0 %v4877, 127
  %v4880 = vpop.permute.xlu0 %4879
  %v4882 = vadd.f32 %v4870, %v4880
  %v4883 = vlog2.pop %v4882
  %v4884 = vmul.f32 %v4883, 0.6931472
  %v4885 = vadd.f32 %v4867, %v4884
  %4887 = vset.pattern.permute.xlu0 0
  %4888 = vperm.xlu0 %4887, %v4885
  %v4889 = vpop.permute.xlu0 %4888
  %v4891 = vsub.f32 %v4860, %v4889
  %vm4892 = vcmask 15360
  %4893 = vst.msk [vmem:[%s20] sm:$0xff] %vm4892, %v4891
  // Predicated region
  $region82: #{gnn_forward.1} parent=0 // pred_check
    _
  $region83: #{gnn_forward.1} parent=0 // pred_check_branch
    %4895 = sbr.rel (0) target = $region85
  $region84: #{gnn_forward.1} parent=0 // pred_region
    _
  $region85: #{gnn_forward.1} parent=0 // pred_fallthru
    _
  // Predicated region
  $region86: #{gnn_forward.1} parent=0 // pred_check
    _
  $region87: #{gnn_forward.1} parent=0 // pred_check_branch
    %4897 = sbr.rel (0) target = $region89
  $region88: #{gnn_forward.1} parent=0 // pred_region
    _
  $region89: #{gnn_forward.1} parent=0 // pred_fallthru
    _

</llo_original>
